<compile_context>
chip_gen: v5e
topology: v5e:2x2
jax: 0.10.0
libtpu: 0.0.40
codegen_flags: <defaults>
</compile_context>

<pallas_src>
import numpy as np
import jax
import jax.numpy as jnp
from jax.experimental import pallas as pl
from jax.experimental.pallas import tpu as pltpu

V = 90                  # per-anchor decoded vector length (_parse columns)
NA = 3                  # anchors per scale
COUT = NA * V           # 270 logical head output channels
VP = 128                # lane-padded per-anchor block width (lane-dense stores)
COUT_P = NA * VP        # 384 padded output channels
NCONST = 16             # rows of the per-scale resident constant slab
MAX_TILE_CELLS = 512    # cap on cell rows per grid step (VMEM-safe on v5e/v6e/v7x)

# Rows of the per-scale constant slab.
(ROW_BIAS, ROW_WHMASK, ROW_WH, ROW_N, ROW_X, ROW_Y, ROW_COORD,
 ROW_SCALE, ROW_SIG, ROW_BOX, ROW_BLK0, ROW_BLK1) = range(12)

SCALE_CFG = [(32, 13, "w13", "b13"),
             (16, 26, "w26", "b26"),
             (8, 52, "w52", "b52")]


def _round_up(a, m):
    return ((a + m - 1) // m) * m


# ----------------------------------------------------------------------------
# Fused 1x1-conv head + (_filter + _parse) decode kernel — all scales, one call
# ----------------------------------------------------------------------------
def make_fused_kernel(tile, case):
    icase2 = 1.0 / (float(case) * float(case))

    def kernel(tab_ref, x_ref, w_ref, c_ref, o_ref):
        i = pl.program_id(0)
        base_f = tab_ref[i, 1].astype(jnp.float32)   # first (scale-local) cell row
        hw_f = tab_ref[i, 2].astype(jnp.float32)     # hs * ws of this tile's scale
        wd_f = tab_ref[i, 3].astype(jnp.float32)     # ws of this tile's scale

        # Resident per-scale constant rows (selected by the index_map).
        bias = c_ref[ROW_BIAS:ROW_BIAS + 1, :]
        whmask = c_ref[ROW_WHMASK:ROW_WHMASK + 1, :]
        whanchor = c_ref[ROW_WH:ROW_WH + 1, :]
        n_row = c_ref[ROW_N:ROW_N + 1, :]
        x_row = c_ref[ROW_X:ROW_X + 1, :]
        y_row = c_ref[ROW_Y:ROW_Y + 1, :]
        coord_row = c_ref[ROW_COORD:ROW_COORD + 1, :]
        sel_scale = c_ref[ROW_SCALE:ROW_SCALE + 1, :] > 0.5
        sel_sig = c_ref[ROW_SIG:ROW_SIG + 1, :] > 0.5
        sel_box = c_ref[ROW_BOX:ROW_BOX + 1, :] > 0.5
        blk0 = c_ref[ROW_BLK0:ROW_BLK0 + 1, :] > 0.5
        blk1 = c_ref[ROW_BLK1:ROW_BLK1 + 1, :] > 0.5

        # 1x1-conv head on the MXU: (tile, CinP)f32 @ (CinP, 384)f32 + bias.
        # (weights were remapped on the host so logical channel c<5 already
        #  sits at lane c+1 of its anchor block; channel 5 is unused by _parse)
        raw = jnp.dot(x_ref[...], w_ref[...],
                      preferred_element_type=jnp.float32) + bias

        # [n, y, x] cell coordinates for this tile — narrow (tile, 1) math only.
        rows_f = base_f + jax.lax.broadcasted_iota(
            jnp.int32, (tile, 1), 0).astype(jnp.float32)
        n_f = jnp.floor((rows_f + 0.5) / hw_f)
        rem = rows_f - n_f * hw_f
        y_f = jnp.floor((rem + 0.5) / wd_f)
        x_f = rem - y_f * wd_f

        # Anchor box w/h: one lane-dense masked exp (exp(0)=1 on non-w/h lanes,
        # so the zero anchor row never multiplies an inf), then per-anchor
        # diag/case broadcast over its 128-lane block (3 broadcasts + 2 selects).
        wh_vals = whanchor * jnp.exp(raw * whmask)        # w @ col4, h @ col5
        d2 = wh_vals * wh_vals
        diag0 = jnp.sqrt((d2[:, 4:5] + d2[:, 5:6]) * icase2)
        diag1 = jnp.sqrt((d2[:, VP + 4:VP + 5] + d2[:, VP + 5:VP + 6]) * icase2)
        diag2 = jnp.sqrt((d2[:, 2 * VP + 4:2 * VP + 5]
                          + d2[:, 2 * VP + 5:2 * VP + 6]) * icase2)
        scale_full = jnp.where(blk0, diag0, jnp.where(blk1, diag1, diag2))

        # One full-width sigmoid: objectness (col 1) + the seg sigmoid columns.
        sig_all = jax.nn.sigmoid(raw)

        # [n, _, cx, cy, w, h] assembled lane-dense from the selector rows:
        #   col0 = n ; col2 = (x + v1)*t ; col3 = (y + v2)*t ; col4/5 = aw/ah*exp.
        box_full = (n_row * n_f + x_row * x_f + y_row * y_f
                    + coord_row * raw + wh_vals)

        # Single unmasked full-lane store of the decoded tile.
        o_ref[...] = jnp.where(
            sel_scale, raw * scale_full,
            jnp.where(sel_sig, sig_all,
                      jnp.where(sel_box, box_full, raw)))

    return kernel


def fused_head_decode(tab, x_all, w_stack, c_stack, *, tile, case):
    n_tiles = tab.shape[0]
    rows, cin_p = x_all.shape
    kernel = make_fused_kernel(tile, case)
    grid_spec = pltpu.PrefetchScalarGridSpec(
        num_scalar_prefetch=1,
        grid=(n_tiles,),
        in_specs=[
            pl.BlockSpec((tile, cin_p), lambda i, tr: (i, 0)),
            pl.BlockSpec((None, cin_p, COUT_P), lambda i, tr: (tr[i, 0], 0, 0)),
            pl.BlockSpec((None, NCONST, COUT_P), lambda i, tr: (tr[i, 0], 0, 0)),
        ],
        out_specs=pl.BlockSpec((tile, COUT_P), lambda i, tr: (i, 0)),
    )
    return pl.pallas_call(
        kernel,
        grid_spec=grid_spec,
        out_shape=jax.ShapeDtypeStruct((rows, COUT_P), jnp.float32),
        compiler_params=pltpu.CompilerParams(
            dimension_semantics=("parallel",)),
    )(tab, x_all, w_stack, c_stack)


# ----------------------------------------------------------------------------
# Host-side (one-time) parameter preparation
# ----------------------------------------------------------------------------
def _remap_head(w, b, cin_p):
    """Pad/remap a (Cin, 270) head so that, inside each anchor's 128-lane
    block, logical channel c (c < 5) lands at raw column c+1 (channel 5 is
    never used by _parse) and channels 6..89 stay in place.  The decoded output
    column layout then comes straight out of the matmul with no lane shuffle.
    """
    cin = w.shape[0]
    w3 = np.asarray(w, np.float32).reshape(cin, NA, V)
    b3 = np.asarray(b, np.float32).reshape(NA, V)
    wp = np.zeros((cin_p, NA, VP), np.float32)
    bp = np.zeros((NA, VP), np.float32)
    wp[:cin, :, 1:6] = w3[:, :, 0:5]
    wp[:cin, :, 6:V] = w3[:, :, 6:V]
    bp[:, 1:6] = b3[:, 0:5]
    bp[:, 6:V] = b3[:, 6:V]
    return wp.reshape(cin_p, COUT_P), bp.reshape(COUT_P)


def _const_slab(t, anchors_s, bias_remapped):
    c = np.zeros((NCONST, COUT_P), np.float32)
    c[ROW_BIAS] = bias_remapped
    t = float(t)
    for a in range(NA):
        o = a * VP
        c[ROW_WHMASK, o + 4] = 1.0
        c[ROW_WHMASK, o + 5] = 1.0
        c[ROW_WH, o + 4] = float(anchors_s[a][0])
        c[ROW_WH, o + 5] = float(anchors_s[a][1])
        c[ROW_N, o + 0] = 1.0
        c[ROW_X, o + 2] = t
        c[ROW_Y, o + 3] = t
        c[ROW_COORD, o + 2] = t
        c[ROW_COORD, o + 3] = t
        c[ROW_SCALE, o + 6:o + 18] = 1.0          # point cols 6..17
        c[ROW_SCALE, o + 18:o + V:3] = 1.0        # seg cols 18+3k
        c[ROW_SIG, o + 1] = 1.0                   # sigmoid(objectness)
        c[ROW_SIG, o + 19:o + V:3] = 1.0          # seg cols 19+3k
        c[ROW_SIG, o + 20:o + V:3] = 1.0          # seg cols 20+3k
        c[ROW_BOX, o + 0] = 1.0                   # n, cx, cy, w, h
        c[ROW_BOX, o + 2:o + 6] = 1.0
    c[ROW_BLK0, 0:VP] = 1.0
    c[ROW_BLK1, VP:2 * VP] = 1.0
    return c


# ----------------------------------------------------------------------------
# Detector forward
# ----------------------------------------------------------------------------
def detector_forward(x, thresh, anchors, case, params, return_dense=False):
    N, Cin, H, W = x.shape
    cin_p = _round_up(Cin, 8)

    # ---- host-side, once: scale geometry, tiling, remapped weights/consts ---
    dims, cells = [], []
    for stride, _, _, _ in SCALE_CFG:
        hs, ws = -(-H // stride), -(-W // stride)
        dims.append((hs, ws))
        cells.append(N * hs * ws)
    tile = min(MAX_TILE_CELLS, _round_up(max(cells), 16))

    w_stack = np.zeros((3, cin_p, COUT_P), np.float32)
    c_stack = np.zeros((3, NCONST, COUT_P), np.float32)
    tab_rows, metas = [], []
    for s, (stride, akey, wname, bname) in enumerate(SCALE_CFG):
        hs, ws = dims[s]
        n_cells = cells[s]
        rp = _round_up(n_cells, tile)
        metas.append((n_cells, rp))
        wp, bp = _remap_head(np.asarray(params[wname]),
                             np.asarray(params[bname]), cin_p)
        w_stack[s] = wp
        c_stack[s] = _const_slab(stride, anchors[akey], bp)
        for k in range(rp // tile):
            tab_rows.append([s, k * tile, hs * ws, ws])
    tab = jnp.asarray(np.asarray(tab_rows, np.int32))
    w_stack = jnp.asarray(w_stack)
    c_stack = jnp.asarray(c_stack)
    slab_pad = [rp for _, rp in metas]

    # ---- single jitted device pipeline: 3 feature slabs -> ONE pallas_call --
    @jax.jit
    def device_fn(x, tab, w_stack, c_stack):
        slabs = []
        for s, (stride, _, _, _) in enumerate(SCALE_CFG):
            feat = x[:, :, ::stride, ::stride]   # synthetic mymodel() backbone
            n_, ch, hs, ws = feat.shape
            x2d = jnp.transpose(feat, (0, 2, 3, 1)).reshape(n_ * hs * ws, ch)
            x2d = jnp.pad(x2d, ((0, slab_pad[s] - n_ * hs * ws),
                                (0, cin_p - ch)))
            slabs.append(x2d)
        x_all = jnp.concatenate(slabs, axis=0).astype(jnp.float32)
        return fused_head_decode(tab, x_all, w_stack, c_stack,
                                 tile=tile, case=case)

    full = np.asarray(jax.block_until_ready(device_fn(x, tab, w_stack, c_stack)))

    # ---- host compaction (dynamic-shape boolean mask == torch boxes[mask]) --
    # TODO(synk): torch.nonzero / boolean-mask gather have dynamic shapes with
    # no Pallas equivalent; compaction happens here after one transfer.
    boxes_list, dense_list, off = [], [], 0
    for n_cells, rp in metas:
        blk = full[off:off + n_cells]            # drop zero-padded cell rows
        off += rp
        rows = blk.reshape(n_cells * NA, VP)[:, :V]
        dense_list.append(rows)
        keep = rows[:, 1] > thresh               # col 1 == sigmoid(objectness)
        boxes_list.append(rows[keep])
    boxes = np.concatenate(boxes_list, axis=0)
    if return_dense:
        return boxes, dense_list
    return boxes


# ----------------------------------------------------------------------------
# Numpy reference of the dense decode (for the self-check only)
# ----------------------------------------------------------------------------
def _reference_dense(feat, w, b, t, anchors_s, case):
    feat = np.asarray(feat, np.float32)
    n, cin, hs, ws = feat.shape
    v = np.einsum("nchw,ck->nhwk", feat, np.asarray(w, np.float32))
    v = (v + np.asarray(b, np.float32)).reshape(n, hs, ws, NA, V).astype(np.float32)
    nn, yy, xx, aa = np.meshgrid(np.arange(n), np.arange(hs), np.arange(ws),
                                 np.arange(NA), indexing="ij")
    aw = np.asarray([a[0] for a in anchors_s], np.float32)
    ah = np.asarray([a[1] for a in anchors_s], np.float32)
    sig = lambda z: 1.0 / (1.0 + np.exp(-z))
    cy = (yy + v[..., 2]) * t
    cx = (xx + v[..., 1]) * t
    bw = aw[aa] * np.exp(v[..., 3])
    bh = ah[aa] * np.exp(v[..., 4])
    diag = np.sqrt(bw * bw + bh * bh)
    out = np.array(v)
    out[..., 0] = nn
    out[..., 1] = sig(v[..., 0])
    out[..., 2] = cx
    out[..., 3] = cy
    out[..., 4] = bw
    out[..., 5] = bh
    out[..., 6:18] = v[..., 6:18] * (diag / case)[..., None]
    for i in range(18, 90, 3):
        out[..., i] = v[..., i] * diag / case
        out[..., i + 1] = sig(v[..., i + 1])
        out[..., i + 2] = sig(v[..., i + 2])
    return out.reshape(n * hs * ws * NA, V)


if __name__ == "__main__":
    key = jax.random.PRNGKey(0)
    k_x, k13, k26, k52, kb = jax.random.split(key, 5)

    N, Cin, H, W = 2, 4, 64, 64
    x = jax.random.normal(k_x, (N, Cin, H, W), dtype=jnp.float32)

    params = {
        "w13": 0.05 * jax.random.normal(k13, (Cin, COUT), dtype=jnp.float32),
        "w26": 0.05 * jax.random.normal(k26, (Cin, COUT), dtype=jnp.float32),
        "w52": 0.05 * jax.random.normal(k52, (Cin, COUT), dtype=jnp.float32),
        "b13": 0.05 * jax.random.normal(kb, (COUT,), dtype=jnp.float32),
        "b26": jnp.zeros((COUT,), dtype=jnp.float32),
        "b52": jnp.full((COUT,), 0.02, dtype=jnp.float32),
    }
    anchors = {
        13: [[116.0, 90.0], [156.0, 198.0], [373.0, 326.0]],
        26: [[30.0, 61.0], [62.0, 45.0], [59.0, 119.0]],
        52: [[10.0, 13.0], [16.0, 30.0], [33.0, 23.0]],
    }
    thresh = 0.5
    case = 4.0

    boxes, dense = detector_forward(x, thresh, anchors, case, params,
                                    return_dense=True)
    assert boxes.ndim == 2 and boxes.shape[1] == V

    # Loose structural self-check of the dense decode against numpy _parse.
    x_np = np.asarray(x, np.float32)
    for s, (stride, akey, wname, bname) in enumerate(SCALE_CFG):
        feat = x_np[:, :, ::stride, ::stride]
        ref = _reference_dense(feat, params[wname], params[bname],
                               stride, anchors[akey], case)
        got = dense[s]
        assert np.all(np.isfinite(got))
        assert np.allclose(got, ref, rtol=5e-2, atol=1.0), (
            "scale %d max abs err %.4f" % (akey, float(np.max(np.abs(got - ref)))))
        sgc = got[:, [1, 19, 20]]                # sigmoid columns stay in (0,1)
        assert np.all((sgc > 0.0) & (sgc < 1.0))

    print("KERNEL_OK")
</pallas_src>

<mosaic_0001>
module attributes {stable_mosaic.version = 11 : i64} {
  func.func @kernel(%arg0: i32, %arg1: memref<3x4xi32, #tpu.memory_space<smem>>, %arg2: memref<128x8xf32, #tpu.memory_space<vmem>>, %arg3: memref<1x8x384xf32, #tpu.memory_space<vmem>>, %arg4: memref<1x16x384xf32, #tpu.memory_space<vmem>>, %arg5: memref<128x384xf32, #tpu.memory_space<vmem>>) attributes {dimension_semantics = [#tpu.dimension_semantics<parallel>], iteration_bounds = array<i64: 3>, scalar_prefetch = 1 : i64, scratch_operands = 0 : i64, tpu.core_type = #tpu.core_type<tc>, window_params = [{transform_indices = @transform_0, window_bounds = array<i64: 128, 8>}, {transform_indices = @transform_1, window_bounds = array<i64: 1, 8, 384>}, {transform_indices = @transform_2, window_bounds = array<i64: 1, 16, 384>}, {transform_indices = @transform_3, window_bounds = array<i64: 128, 384>}]} {
    %0 = arith.index_cast %arg0 : i32 to index
    %c1 = arith.constant 1 : index
    %1 = memref.load %arg1[%0, %c1] : memref<3x4xi32, #tpu.memory_space<smem>>
    %2 = arith.sitofp %1 : i32 to f32
    %3 = arith.index_cast %arg0 : i32 to index
    %c2 = arith.constant 2 : index
    %4 = memref.load %arg1[%3, %c2] : memref<3x4xi32, #tpu.memory_space<smem>>
    %5 = arith.sitofp %4 : i32 to f32
    %6 = arith.index_cast %arg0 : i32 to index
    %c3 = arith.constant 3 : index
    %7 = memref.load %arg1[%6, %c3] : memref<3x4xi32, #tpu.memory_space<smem>>
    %8 = arith.sitofp %7 : i32 to f32
    %c0 = arith.constant 0 : index
    %c0_0 = arith.constant 0 : index
    %c0_1 = arith.constant 0 : index
    %9 = vector.load %arg4[%c0, %c0_0, %c0_1] : memref<1x16x384xf32, #tpu.memory_space<vmem>>, vector<1x1x384xf32>
    %10 = vector.shape_cast %9 : vector<1x1x384xf32> to vector<1x384xf32>
    %c0_2 = arith.constant 0 : index
    %c1_3 = arith.constant 1 : index
    %c0_4 = arith.constant 0 : index
    %11 = vector.load %arg4[%c0_2, %c1_3, %c0_4] : memref<1x16x384xf32, #tpu.memory_space<vmem>>, vector<1x1x384xf32>
    %12 = vector.shape_cast %11 : vector<1x1x384xf32> to vector<1x384xf32>
    %c0_5 = arith.constant 0 : index
    %c2_6 = arith.constant 2 : index
    %c0_7 = arith.constant 0 : index
    %13 = vector.load %arg4[%c0_5, %c2_6, %c0_7] : memref<1x16x384xf32, #tpu.memory_space<vmem>>, vector<1x1x384xf32>
    %14 = vector.shape_cast %13 : vector<1x1x384xf32> to vector<1x384xf32>
    %c0_8 = arith.constant 0 : index
    %c3_9 = arith.constant 3 : index
    %c0_10 = arith.constant 0 : index
    %15 = vector.load %arg4[%c0_8, %c3_9, %c0_10] : memref<1x16x384xf32, #tpu.memory_space<vmem>>, vector<1x1x384xf32>
    %16 = vector.shape_cast %15 : vector<1x1x384xf32> to vector<1x384xf32>
    %c0_11 = arith.constant 0 : index
    %c4 = arith.constant 4 : index
    %c0_12 = arith.constant 0 : index
    %17 = vector.load %arg4[%c0_11, %c4, %c0_12] : memref<1x16x384xf32, #tpu.memory_space<vmem>>, vector<1x1x384xf32>
    %18 = vector.shape_cast %17 : vector<1x1x384xf32> to vector<1x384xf32>
    %c0_13 = arith.constant 0 : index
    %c5 = arith.constant 5 : index
    %c0_14 = arith.constant 0 : index
    %19 = vector.load %arg4[%c0_13, %c5, %c0_14] : memref<1x16x384xf32, #tpu.memory_space<vmem>>, vector<1x1x384xf32>
    %20 = vector.shape_cast %19 : vector<1x1x384xf32> to vector<1x384xf32>
    %c0_15 = arith.constant 0 : index
    %c6 = arith.constant 6 : index
    %c0_16 = arith.constant 0 : index
    %21 = vector.load %arg4[%c0_15, %c6, %c0_16] : memref<1x16x384xf32, #tpu.memory_space<vmem>>, vector<1x1x384xf32>
    %22 = vector.shape_cast %21 : vector<1x1x384xf32> to vector<1x384xf32>
    %c0_17 = arith.constant 0 : index
    %c7 = arith.constant 7 : index
    %c0_18 = arith.constant 0 : index
    %23 = vector.load %arg4[%c0_17, %c7, %c0_18] : memref<1x16x384xf32, #tpu.memory_space<vmem>>, vector<1x1x384xf32>
    %24 = vector.shape_cast %23 : vector<1x1x384xf32> to vector<1x384xf32>
    %cst = arith.constant 5.000000e-01 : f32
    %25 = vector.broadcast %cst : f32 to vector<1x384xf32>
    %26 = arith.cmpf ogt, %24, %25 : vector<1x384xf32>
    %c0_19 = arith.constant 0 : index
    %c8 = arith.constant 8 : index
    %c0_20 = arith.constant 0 : index
    %27 = vector.load %arg4[%c0_19, %c8, %c0_20] : memref<1x16x384xf32, #tpu.memory_space<vmem>>, vector<1x1x384xf32>
    %28 = vector.shape_cast %27 : vector<1x1x384xf32> to vector<1x384xf32>
    %cst_21 = arith.constant 5.000000e-01 : f32
    %29 = vector.broadcast %cst_21 : f32 to vector<1x384xf32>
    %30 = arith.cmpf ogt, %28, %29 : vector<1x384xf32>
    %c0_22 = arith.constant 0 : index
    %c9 = arith.constant 9 : index
    %c0_23 = arith.constant 0 : index
    %31 = vector.load %arg4[%c0_22, %c9, %c0_23] : memref<1x16x384xf32, #tpu.memory_space<vmem>>, vector<1x1x384xf32>
    %32 = vector.shape_cast %31 : vector<1x1x384xf32> to vector<1x384xf32>
    %cst_24 = arith.constant 5.000000e-01 : f32
    %33 = vector.broadcast %cst_24 : f32 to vector<1x384xf32>
    %34 = arith.cmpf ogt, %32, %33 : vector<1x384xf32>
    %c0_25 = arith.constant 0 : index
    %c10 = arith.constant 10 : index
    %c0_26 = arith.constant 0 : index
    %35 = vector.load %arg4[%c0_25, %c10, %c0_26] : memref<1x16x384xf32, #tpu.memory_space<vmem>>, vector<1x1x384xf32>
    %36 = vector.shape_cast %35 : vector<1x1x384xf32> to vector<1x384xf32>
    %cst_27 = arith.constant 5.000000e-01 : f32
    %37 = vector.broadcast %cst_27 : f32 to vector<1x384xf32>
    %38 = arith.cmpf ogt, %36, %37 : vector<1x384xf32>
    %c0_28 = arith.constant 0 : index
    %c11 = arith.constant 11 : index
    %c0_29 = arith.constant 0 : index
    %39 = vector.load %arg4[%c0_28, %c11, %c0_29] : memref<1x16x384xf32, #tpu.memory_space<vmem>>, vector<1x1x384xf32>
    %40 = vector.shape_cast %39 : vector<1x1x384xf32> to vector<1x384xf32>
    %cst_30 = arith.constant 5.000000e-01 : f32
    %41 = vector.broadcast %cst_30 : f32 to vector<1x384xf32>
    %42 = arith.cmpf ogt, %40, %41 : vector<1x384xf32>
    %c0_31 = arith.constant 0 : index
    %c0_32 = arith.constant 0 : index
    %43 = vector.load %arg2[%c0_31, %c0_32] : memref<128x8xf32, #tpu.memory_space<vmem>>, vector<128x8xf32>
    %c0_33 = arith.constant 0 : index
    %c0_34 = arith.constant 0 : index
    %c0_35 = arith.constant 0 : index
    %44 = vector.load %arg3[%c0_33, %c0_34, %c0_35] : memref<1x8x384xf32, #tpu.memory_space<vmem>>, vector<1x8x384xf32>
    %45 = vector.shape_cast %44 : vector<1x8x384xf32> to vector<8x384xf32>
    %cst_36 = arith.constant dense<0.000000e+00> : vector<128x384xf32>
    %46 = tpu.matmul %43, %45, %cst_36 {dimension_numbers = #tpu.dot_dimension_numbers<[1], [0], [0], [1], [0, 0, 1, 1], [], []>} : vector<128x8xf32>, vector<8x384xf32>, vector<128x384xf32> -> vector<128x384xf32>
    %47 = vector.broadcast %10 : vector<1x384xf32> to vector<128x384xf32>
    %48 = arith.addf %46, %47 : vector<128x384xf32>
    %49 = tpu.iota {dimensions = array<i32: 0>} : vector<128x1xi32>
    %50 = arith.sitofp %49 : vector<128x1xi32> to vector<128x1xf32>
    %51 = vector.broadcast %2 : f32 to vector<128x1xf32>
    %52 = arith.addf %51, %50 : vector<128x1xf32>
    %cst_37 = arith.constant 5.000000e-01 : f32
    %53 = vector.broadcast %cst_37 : f32 to vector<128x1xf32>
    %54 = arith.addf %52, %53 : vector<128x1xf32>
    %55 = vector.broadcast %5 : f32 to vector<128x1xf32>
    %56 = arith.divf %54, %55 : vector<128x1xf32>
    %57 = math.floor %56 : vector<128x1xf32>
    %58 = vector.broadcast %5 : f32 to vector<128x1xf32>
    %59 = arith.mulf %57, %58 : vector<128x1xf32>
    %60 = arith.subf %52, %59 : vector<128x1xf32>
    %cst_38 = arith.constant 5.000000e-01 : f32
    %61 = vector.broadcast %cst_38 : f32 to vector<128x1xf32>
    %62 = arith.addf %60, %61 : vector<128x1xf32>
    %63 = vector.broadcast %8 : f32 to vector<128x1xf32>
    %64 = arith.divf %62, %63 : vector<128x1xf32>
    %65 = math.floor %64 : vector<128x1xf32>
    %66 = vector.broadcast %8 : f32 to vector<128x1xf32>
    %67 = arith.mulf %65, %66 : vector<128x1xf32>
    %68 = arith.subf %60, %67 : vector<128x1xf32>
    %69 = vector.broadcast %12 : vector<1x384xf32> to vector<128x384xf32>
    %70 = arith.mulf %48, %69 : vector<128x384xf32>
    %71 = math.exp %70 : vector<128x384xf32>
    %72 = vector.broadcast %14 : vector<1x384xf32> to vector<128x384xf32>
    %73 = arith.mulf %72, %71 : vector<128x384xf32>
    %74 = arith.mulf %73, %73 : vector<128x384xf32>
    %75 = vector.extract_strided_slice %74 {offsets = [0, 4], sizes = [128, 1], strides = [1, 1]} : vector<128x384xf32> to vector<128x1xf32>
    %76 = vector.extract_strided_slice %74 {offsets = [0, 5], sizes = [128, 1], strides = [1, 1]} : vector<128x384xf32> to vector<128x1xf32>
    %77 = arith.addf %75, %76 : vector<128x1xf32>
    %cst_39 = arith.constant 6.250000e-02 : f32
    %78 = vector.broadcast %cst_39 : f32 to vector<128x1xf32>
    %79 = arith.mulf %77, %78 : vector<128x1xf32>
    %80 = math.sqrt %79 : vector<128x1xf32>
    %81 = vector.extract_strided_slice %74 {offsets = [0, 132], sizes = [128, 1], strides = [1, 1]} : vector<128x384xf32> to vector<128x1xf32>
    %82 = vector.extract_strided_slice %74 {offsets = [0, 133], sizes = [128, 1], strides = [1, 1]} : vector<128x384xf32> to vector<128x1xf32>
    %83 = arith.addf %81, %82 : vector<128x1xf32>
    %cst_40 = arith.constant 6.250000e-02 : f32
    %84 = vector.broadcast %cst_40 : f32 to vector<128x1xf32>
    %85 = arith.mulf %83, %84 : vector<128x1xf32>
    %86 = math.sqrt %85 : vector<128x1xf32>
    %87 = vector.extract_strided_slice %74 {offsets = [0, 260], sizes = [128, 1], strides = [1, 1]} : vector<128x384xf32> to vector<128x1xf32>
    %88 = vector.extract_strided_slice %74 {offsets = [0, 261], sizes = [128, 1], strides = [1, 1]} : vector<128x384xf32> to vector<128x1xf32>
    %89 = arith.addf %87, %88 : vector<128x1xf32>
    %cst_41 = arith.constant 6.250000e-02 : f32
    %90 = vector.broadcast %cst_41 : f32 to vector<128x1xf32>
    %91 = arith.mulf %89, %90 : vector<128x1xf32>
    %92 = math.sqrt %91 : vector<128x1xf32>
    %93 = vector.shape_cast %42 : vector<1x384xi1> to vector<1x384xi1>
    %94 = vector.broadcast %93 : vector<1x384xi1> to vector<128x384xi1>
    %95 = vector.shape_cast %86 : vector<128x1xf32> to vector<128x1xf32>
    %96 = vector.broadcast %95 : vector<128x1xf32> to vector<128x384xf32>
    %97 = vector.shape_cast %92 : vector<128x1xf32> to vector<128x1xf32>
    %98 = vector.broadcast %97 : vector<128x1xf32> to vector<128x384xf32>
    %99 = arith.select %94, %96, %98 : vector<128x384xi1>, vector<128x384xf32>
    %100 = vector.shape_cast %38 : vector<1x384xi1> to vector<1x384xi1>
    %101 = vector.broadcast %100 : vector<1x384xi1> to vector<128x384xi1>
    %102 = vector.shape_cast %80 : vector<128x1xf32> to vector<128x1xf32>
    %103 = vector.broadcast %102 : vector<128x1xf32> to vector<128x384xf32>
    %104 = arith.select %101, %103, %99 : vector<128x384xi1>, vector<128x384xf32>
    %105 = arith.negf %48 : vector<128x384xf32>
    %106 = math.exp %105 : vector<128x384xf32>
    %cst_42 = arith.constant 1.000000e+00 : f32
    %107 = vector.broadcast %cst_42 : f32 to vector<128x384xf32>
    %108 = arith.addf %107, %106 : vector<128x384xf32>
    %109 = arith.divf %107, %108 : vector<128x384xf32>
    %110 = vector.broadcast %16 : vector<1x384xf32> to vector<128x384xf32>
    %111 = vector.broadcast %57 : vector<128x1xf32> to vector<128x384xf32>
    %112 = arith.mulf %110, %111 : vector<128x384xf32>
    %113 = vector.broadcast %18 : vector<1x384xf32> to vector<128x384xf32>
    %114 = vector.broadcast %68 : vector<128x1xf32> to vector<128x384xf32>
    %115 = arith.mulf %113, %114 : vector<128x384xf32>
    %116 = arith.addf %112, %115 : vector<128x384xf32>
    %117 = vector.broadcast %20 : vector<1x384xf32> to vector<128x384xf32>
    %118 = vector.broadcast %65 : vector<128x1xf32> to vector<128x384xf32>
    %119 = arith.mulf %117, %118 : vector<128x384xf32>
    %120 = arith.addf %116, %119 : vector<128x384xf32>
    %121 = vector.broadcast %22 : vector<1x384xf32> to vector<128x384xf32>
    %122 = arith.mulf %121, %48 : vector<128x384xf32>
    %123 = arith.addf %120, %122 : vector<128x384xf32>
    %124 = arith.addf %123, %73 : vector<128x384xf32>
    %125 = arith.mulf %48, %104 : vector<128x384xf32>
    %126 = vector.shape_cast %34 : vector<1x384xi1> to vector<1x384xi1>
    %127 = vector.broadcast %126 : vector<1x384xi1> to vector<128x384xi1>
    %128 = arith.select %127, %124, %48 : vector<128x384xi1>, vector<128x384xf32>
    %129 = vector.shape_cast %30 : vector<1x384xi1> to vector<1x384xi1>
    %130 = vector.broadcast %129 : vector<1x384xi1> to vector<128x384xi1>
    %131 = arith.select %130, %109, %128 : vector<128x384xi1>, vector<128x384xf32>
    %132 = vector.shape_cast %26 : vector<1x384xi1> to vector<1x384xi1>
    %133 = vector.broadcast %132 : vector<1x384xi1> to vector<128x384xi1>
    %134 = arith.select %133, %125, %131 : vector<128x384xi1>, vector<128x384xf32>
    %c0_43 = arith.constant 0 : index
    %c0_44 = arith.constant 0 : index
    %135 = vector.load %arg5[%c0_43, %c0_44] : memref<128x384xf32, #tpu.memory_space<vmem>>, vector<128x384xf32>
    tpu.vector_store %arg5[%c0_43, %c0_44], %134 {strides = array<i32>} : memref<128x384xf32, #tpu.memory_space<vmem>>, vector<128x384xf32>,
    return
  }
  func.func @transform_0(%arg0: i32, %arg1: memref<3x4xi32, #tpu.memory_space<smem>>) -> (i32, i32) {
    %c0_i32 = arith.constant 0 : i32
    %c0_i32_0 = arith.constant 0 : i32
    return %arg0, %c0_i32 : i32, i32
  }
  func.func @transform_1(%arg0: i32, %arg1: memref<3x4xi32, #tpu.memory_space<smem>>) -> (i32, i32, i32) {
    %0 = arith.index_cast %arg0 : i32 to index
    %c0 = arith.constant 0 : index
    %1 = memref.load %arg1[%0, %c0] : memref<3x4xi32, #tpu.memory_space<smem>>
    %c0_i32 = arith.constant 0 : i32
    %c0_i32_0 = arith.constant 0 : i32
    %c0_i32_1 = arith.constant 0 : i32
    return %1, %c0_i32, %c0_i32_0 : i32, i32, i32
  }
  func.func @transform_2(%arg0: i32, %arg1: memref<3x4xi32, #tpu.memory_space<smem>>) -> (i32, i32, i32) {
    %0 = arith.index_cast %arg0 : i32 to index
    %c0 = arith.constant 0 : index
    %1 = memref.load %arg1[%0, %c0] : memref<3x4xi32, #tpu.memory_space<smem>>
    %c0_i32 = arith.constant 0 : i32
    %c0_i32_0 = arith.constant 0 : i32
    %c0_i32_1 = arith.constant 0 : i32
    return %1, %c0_i32, %c0_i32_0 : i32, i32, i32
  }
  func.func @transform_3(%arg0: i32, %arg1: memref<3x4xi32, #tpu.memory_space<smem>>) -> (i32, i32) {
    %c0_i32 = arith.constant 0 : i32
    %c0_i32_0 = arith.constant 0 : i32
    return %arg0, %c0_i32 : i32, i32
  }
}

</mosaic_0001>

<llo_original>
// kernel: device_fn.1
$region0: #{device_fn.1}
  #allocation0 [shape = 'u32[]', space=smem, size = 0x4, offset = 0x4, fixed_abs, tag = 'smem constant byte address 0x4 - core index']
  #allocation1 [shape = 'u32[72,128]{1,0:T(1,128)}', space=vmem, size = 0x9000, scoped, tag = 'internal scratch']
  #allocation2 [shape = 's32[1]{0}', space=sflag, size = 0x4, scoped, tag = 'scoped memory for device_fn.1']
  #allocation3 [shape = 'u8[2048]{0}', space=smem, size = 0x800, scoped, tag = 'prefetched SMEM operand 0']
  %s0 = inlined_call_operand.vmem [shape: s32[3,4], index: 0, kind: input, shape index: {}]
  %s1 = inlined_call_operand.vmem [shape: f32[384,8], index: 1, kind: input, shape index: {}]
  %s2 = inlined_call_operand.vmem [shape: f32[3,8,384], index: 2, kind: input, shape index: {}]
  %s3 = inlined_call_operand.vmem [shape: f32[3,16,384], index: 3, kind: input, shape index: {}]
  %s4 = inlined_call_operand.hbm [shape: f32[384,384], index: 4, kind: output, shape index: {}]
  %s5 = sld [smem:[#allocation0]]
  $region45: #{device_fn.1} parent=0
    _
  %s7 = ssub.s32 1, %s5
  %s8 = scalar_select 0, %s7, %s5
  %s10 = sshll.u32 %s0, 4
  %s11 = int_to_ptr.vmem [resolvable:$true] %s10
  %13 = dma.vmem_to_smem %s11, 64, [#allocation3], [#allocation2]
  %15 = dma.done [#allocation2], 64
  %16 = sfence
  $region1: #{device_fn.1} parent=0
    #allocation4 [shape = 'u8[393216]{0}', space=vmem, size = 0x60000, scoped, tag = 'output window, operand 0']
    #allocation5 [shape = 's32[2]{0}', space=sflag, size = 0x8, scoped, tag = 'scoped memory for device_fn.1']
    %17 = vsyncpa [#allocation5], 0
    %s18 = scalar_lea.sflag [#allocation5], 1
    %19 = vsyncpa %s18, 0
    loop: start=0, step=1, limit=5
    $region2: #{device_fn.1} parent=1 // loop_pre_header
      _
    $region3: #{device_fn.1} parent=1 // loop_header
      %s21 = sphi 0, %s25
      %p22 = scmp.ge.s32.totalorder %s21, 5
      %s31 = sphi 0, %s33
      %s34 = sphi 0, %s31
      %s35 = sphi 0, %s34
      %s51 = sphi 0, %s35
      %s61 = sphi 0, %s63
      %s64 = sphi 0, %s61
      %s65 = sphi 0, %s64
      %s81 = sphi 0, %s65
      %s91 = sphi 0, %s93
      %s94 = sphi 0, %s91
      %s95 = sphi 0, %s94
      %s111 = sphi 0, %s95
      %s117 = sphi 0, %s119
      %s120 = sphi 0, %s117
      %s121 = sphi 0, %s120
      %s137 = sphi 0, %s121
    $region4: #{device_fn.1} parent=1 // loop_header_branch
      %24 = sbr.rel (%p22) target = $region8
    $region5: #{device_fn.1} parent=1 // loop_body
      %s26 = ssub.s32 %s21, 1
      %s27 = ssub.s32 %s21, 2
      %s28 = sadd.s32 %s21, 1
      %s29 = ssub.s32 %s21, %s28
      %p30 = scmp.eq.s32.totalorder %s29, 0
      %s32 = sadd.s32 %s31, 1
      %s33 = scalar_select %p30, %s31, %s32
      %p36 = pneg %p30
      %p37 = scmp.eq.s32.totalorder %s21, 2
      %p38 = por %p36, %p37
      %p39 = scmp.ne.s32.totalorder %s31, %s34
      %p40 = scmp.eq.s32.totalorder %s21, 0
      %p41 = por %p39, %p40
      %p42 = scmp.ne.s32.totalorder %s31, %s34
      %p43 = scmp.eq.s32.totalorder %s26, 2
      %p44 = por %p42, %p43
      %p45 = scmp.ne.s32.totalorder %s34, %s35
      %p46 = scmp.eq.s32.totalorder %s26, 0
      %p47 = por %p45, %p46
      %p48 = scmp.ne.s32.totalorder %s34, %s35
      %p49 = scmp.eq.s32.totalorder %s27, 2
      %p50 = por %p48, %p49
      %p52 = scmp.ne.s32.totalorder %s35, %s51
      %p53 = scmp.eq.s32.totalorder %s27, 0
      %p54 = por %p52, %p53
      %s55 = smul.u32 %s21, 128
      %s56 = sld [smem:[#allocation3 + %s55]]
      %s57 = smul.u32 %s28, 128
      %s58 = sld [smem:[#allocation3 + %s57]]
      %s59 = ssub.s32 %s56, %s58
      %p60 = scmp.eq.s32.totalorder %s59, 0
      %s62 = sadd.s32 %s61, 1
      %s63 = scalar_select %p60, %s61, %s62
      %p66 = pneg %p60
      %p67 = scmp.eq.s32.totalorder %s21, 2
      %p68 = por %p66, %p67
      %p69 = scmp.ne.s32.totalorder %s61, %s64
      %p70 = scmp.eq.s32.totalorder %s21, 0
      %p71 = por %p69, %p70
      %p72 = scmp.ne.s32.totalorder %s61, %s64
      %p73 = scmp.eq.s32.totalorder %s26, 2
      %p74 = por %p72, %p73
      %p75 = scmp.ne.s32.totalorder %s64, %s65
      %p76 = scmp.eq.s32.totalorder %s26, 0
      %p77 = por %p75, %p76
      %p78 = scmp.ne.s32.totalorder %s64, %s65
      %p79 = scmp.eq.s32.totalorder %s27, 2
      %p80 = por %p78, %p79
      %p82 = scmp.ne.s32.totalorder %s65, %s81
      %p83 = scmp.eq.s32.totalorder %s27, 0
      %p84 = por %p82, %p83
      %s85 = smul.u32 %s21, 128
      %s86 = sld [smem:[#allocation3 + %s85]]
      %s87 = smul.u32 %s28, 128
      %s88 = sld [smem:[#allocation3 + %s87]]
      %s89 = ssub.s32 %s86, %s88
      %p90 = scmp.eq.s32.totalorder %s89, 0
      %s92 = sadd.s32 %s91, 1
      %s93 = scalar_select %p90, %s91, %s92
      %p96 = pneg %p90
      %p97 = scmp.eq.s32.totalorder %s21, 2
      %p98 = por %p96, %p97
      %p99 = scmp.ne.s32.totalorder %s91, %s94
      %p100 = scmp.eq.s32.totalorder %s21, 0
      %p101 = por %p99, %p100
      %p102 = scmp.ne.s32.totalorder %s91, %s94
      %p103 = scmp.eq.s32.totalorder %s26, 2
      %p104 = por %p102, %p103
      %p105 = scmp.ne.s32.totalorder %s94, %s95
      %p106 = scmp.eq.s32.totalorder %s26, 0
      %p107 = por %p105, %p106
      %p108 = scmp.ne.s32.totalorder %s94, %s95
      %p109 = scmp.eq.s32.totalorder %s27, 2
      %p110 = por %p108, %p109
      %p112 = scmp.ne.s32.totalorder %s95, %s111
      %p113 = scmp.eq.s32.totalorder %s27, 0
      %p114 = por %p112, %p113
      %s115 = ssub.s32 %s21, %s28
      %p116 = scmp.eq.s32.totalorder %s115, 0
      %s118 = sadd.s32 %s117, 1
      %s119 = scalar_select %p116, %s117, %s118
      %p122 = pneg %p116
      %p123 = scmp.eq.s32.totalorder %s21, 2
      %p124 = por %p122, %p123
      %p125 = scmp.ne.s32.totalorder %s117, %s120
      %p126 = scmp.eq.s32.totalorder %s21, 0
      %p127 = por %p125, %p126
      %p128 = scmp.ne.s32.totalorder %s117, %s120
      %p129 = scmp.eq.s32.totalorder %s26, 2
      %p130 = por %p128, %p129
      %p131 = scmp.ne.s32.totalorder %s120, %s121
      %p132 = scmp.eq.s32.totalorder %s26, 0
      %p133 = por %p131, %p132
      %p134 = scmp.ne.s32.totalorder %s120, %s121
      %p135 = scmp.eq.s32.totalorder %s27, 2
      %p136 = por %p134, %p135
      %p138 = scmp.ne.s32.totalorder %s121, %s137
      %p139 = scmp.eq.s32.totalorder %s27, 0
      %p140 = por %p138, %p139
      %p141 = scmp.le.s32.totalorder 1, %s21
      %p142 = scmp.lt.s32.totalorder %s21, 4
      %p143 = pnand %p141, %p142
      %p144 = pneg %p143
      // Predicated region
      $region9: #{device_fn.1} parent=5 // pred_check
        _
      $region10: #{device_fn.1} parent=5 // pred_check_branch
        %146 = sbr.rel (%p143) target = $region12
      $region11: #{device_fn.1} parent=5 // pred_region
        %s147 = ssub.s32 %s21, 1
      $region12: #{device_fn.1} parent=5 // pred_fallthru
        _
      %p148 = scmp.lt.s32.totalorder %s21, 3
      // Predicated region
      $region13: #{device_fn.1} parent=5 // pred_check
        %p149 = pneg %p148
      $region14: #{device_fn.1} parent=5 // pred_check_branch
        %151 = sbr.rel (%p149) target = $region16
      $region15: #{device_fn.1} parent=5 // pred_region
        // Predicated region
        $region17: #{device_fn.1} parent=15 // pred_check
          %p152 = pneg %p41
        $region18: #{device_fn.1} parent=15 // pred_check_branch
          %154 = sbr.rel (%p152) target = $region20
        $region19: #{device_fn.1} parent=15 // pred_region
          %s155 = smul.u32 16, %s21
          %p156 = scmp.lt.s32.totalorder %s155, 47
          %s157 = scalar_select %p156, %s155, 47
          %s158 = smul.addr %s157, 8
          %s159 = scalar_lea.vmem %s1, %s158
          %s160 = smul.u32 16, %s21
        $region20: #{device_fn.1} parent=15 // pred_fallthru
          _
        // Predicated region
        $region21: #{device_fn.1} parent=15 // pred_check
          %p161 = pneg %p71
        $region22: #{device_fn.1} parent=15 // pred_check_branch
          %163 = sbr.rel (%p161) target = $region24
        $region23: #{device_fn.1} parent=15 // pred_region
          %s164 = smul.u32 %s21, 128
          %s165 = sld [smem:[#allocation3 + %s164]]
          %p166 = scmp.lt.s32.totalorder %s165, 2
          %s167 = scalar_select %p166, %s165, 2
          %s168 = smul.addr %s167, 3
          %s169 = smul.addr %s168, 8
          %s170 = scalar_lea.vmem %s2, %s169
          %s171 = smul.u32 %s21, 128
          %s172 = sld [smem:[#allocation3 + %s171]]
        $region24: #{device_fn.1} parent=15 // pred_fallthru
          _
        // Predicated region
        $region25: #{device_fn.1} parent=15 // pred_check
          %p173 = pneg %p101
        $region26: #{device_fn.1} parent=15 // pred_check_branch
          %175 = sbr.rel (%p173) target = $region28
        $region27: #{device_fn.1} parent=15 // pred_region
          %s176 = smul.u32 %s21, 128
          %s177 = sld [smem:[#allocation3 + %s176]]
          %p178 = scmp.lt.s32.totalorder %s177, 2
          %s179 = scalar_select %p178, %s177, 2
          %s180 = smul.addr %s179, 6
          %s181 = smul.addr %s180, 8
          %s182 = scalar_lea.vmem %s3, %s181
          %s183 = smul.u32 %s21, 128
          %s184 = sld [smem:[#allocation3 + %s183]]
        $region28: #{device_fn.1} parent=15 // pred_fallthru
          _
      $region16: #{device_fn.1} parent=5 // pred_fallthru
        _
      %p185 = scmp.le.s32.totalorder 1, %s21
      %p186 = scmp.lt.s32.totalorder %s21, 4
      %p187 = pnand %p185, %p186
      %p188 = pneg %p187
      // Predicated region
      $region29: #{device_fn.1} parent=5 // pred_check
        _
      $region30: #{device_fn.1} parent=5 // pred_check_branch
        %190 = sbr.rel (%p187) target = $region32
      $region31: #{device_fn.1} parent=5 // pred_region
        %s191 = ssub.s32 %s21, 1
        %s192 = smul.u32 16, %s26
        %p193 = scmp.lt.s32.totalorder %s192, 47
        %s194 = scalar_select %p193, %s192, 47
        %s195 = smul.addr %s194, 8
        %s196 = scalar_lea.vmem %s1, %s195
        %p197 = pneg %p47
        %p198 = pneg %p44
        %s199 = smul.u32 %s26, 128
        %s200 = sld [smem:[#allocation3 + %s199]]
        %p201 = scmp.lt.s32.totalorder %s200, 2
        %s202 = scalar_select %p201, %s200, 2
        %s203 = smul.addr %s202, 3
        %s204 = smul.addr %s203, 8
        %s205 = scalar_lea.vmem %s2, %s204
        %p206 = pneg %p77
        %p207 = pneg %p74
        %s208 = smul.u32 %s26, 128
        %s209 = sld [smem:[#allocation3 + %s208]]
        %p210 = scmp.lt.s32.totalorder %s209, 2
        %s211 = scalar_select %p210, %s209, 2
        %s212 = smul.addr %s211, 6
        %s213 = smul.addr %s212, 8
        %s214 = scalar_lea.vmem %s3, %s213
        %p215 = pneg %p107
        %p216 = pneg %p104
        %p217 = pneg %p133
        %p218 = pneg %p130
        %s219 = sand.u32 %s120, 1
        %s220 = scalar_lea.sflag [#allocation5], %s219
        %s221 = sand.u32 %s120, 1
        %s222 = smul.addr %s221, 384
        %s223 = scalar_lea.vmem [#allocation4], %s222
        %s224 = smul.u32 16, %s26
        %p225 = scmp.lt.s32.totalorder %s224, 47
        %s226 = scalar_select %p225, %s224, 47
        %s227 = smul.addr %s226, 8
        %s228 = scalar_lea.vmem %s1, %s227
        %s229 = smul.u32 16, %s26
        %s230 = smul.u32 %s26, 128
        %s231 = sld [smem:[#allocation3 + %s230]]
        %p232 = scmp.lt.s32.totalorder %s231, 2
        %s233 = scalar_select %p232, %s231, 2
        %s234 = smul.addr %s233, 3
        %s235 = smul.addr %s234, 8
        %s236 = scalar_lea.vmem %s2, %s235
        %s237 = smul.u32 %s26, 128
        %s238 = sld [smem:[#allocation3 + %s237]]
        %s239 = smul.u32 %s26, 128
        %s240 = sld [smem:[#allocation3 + %s239]]
        %p241 = scmp.lt.s32.totalorder %s240, 2
        %s242 = scalar_select %p241, %s240, 2
        %s243 = smul.addr %s242, 6
        %s244 = smul.addr %s243, 8
        %s245 = scalar_lea.vmem %s3, %s244
        %s246 = smul.u32 %s26, 128
        %s247 = sld [smem:[#allocation3 + %s246]]
        %s248 = smul.u32 16, %s26
        %s249 = smul.u32 %s26, 128
        %s250 = sadd.s32 %s249, 1
        %s251 = sld [smem:[#allocation3 + %s250]]
        %s252 = scvt.s32.f32 %s251
        %s253 = sadd.s32 %s249, 2
        %s254 = sld [smem:[#allocation3 + %s253]]
        %s255 = scvt.s32.f32 %s254
        %s256 = sadd.s32 %s249, 3
        %s257 = sld [smem:[#allocation3 + %s256]]
        %s258 = scvt.s32.f32 %s257
        %v259 = vld [vmem:[%s245] ss:$8 sm:$0x7]
        %s260 = scalar_lea.vmem %s245, 1
        %v261 = vld [vmem:[%s260] ss:$8 sm:$0x7]
        %s262 = scalar_lea.vmem %s245, 2
        %v263 = vld [vmem:[%s262] ss:$8 sm:$0x7]
        %s264 = scalar_lea.vmem %s245, 3
        %v265 = vld [vmem:[%s264] ss:$8 sm:$0x7]
        %s266 = scalar_lea.vmem %s245, 4
        %v267 = vld [vmem:[%s266] ss:$8 sm:$0x7]
        %s268 = scalar_lea.vmem %s245, 5
        %v269 = vld [vmem:[%s268] ss:$8 sm:$0x7]
        %s270 = scalar_lea.vmem %s245, 6
        %v271 = vld [vmem:[%s270] ss:$8 sm:$0x7]
        %s272 = scalar_lea.vmem %s245, 7
        %v273 = vld [vmem:[%s272] ss:$8 sm:$0x7]
        %vm274 = vcmp.gt.f32.partialorder %v273, 0.5
        %s275 = scalar_lea.vmem %s245, 24
        %v276 = vld [vmem:[%s275] ss:$8 sm:$0x7]
        %vm277 = vcmp.gt.f32.partialorder %v276, 0.5
        %s278 = scalar_lea.vmem %s245, 25
        %v279 = vld [vmem:[%s278] ss:$8 sm:$0x7]
        %vm280 = vcmp.gt.f32.partialorder %v279, 0.5
        %s281 = scalar_lea.vmem %s245, 26
        %v282 = vld [vmem:[%s281] ss:$8 sm:$0x7]
        %vm283 = vcmp.gt.f32.partialorder %v282, 0.5
        %s284 = scalar_lea.vmem %s245, 27
        %v285 = vld [vmem:[%s284] ss:$8 sm:$0x7]
        %vm286 = vcmp.gt.f32.partialorder %v285, 0.5
        %v287 = vld [vmem:[%s228] sm:$0xff]
        %v288 = vld [vmem:[%s228 + $0x8] sm:$0xff]
        %v289 = vld [vmem:[%s228 + $0x10] sm:$0xff]
        %v290 = vld [vmem:[%s228 + $0x18] sm:$0xff]
        %v291 = vld [vmem:[%s228 + $0x20] sm:$0xff]
        %v292 = vld [vmem:[%s228 + $0x28] sm:$0xff]
        %v293 = vld [vmem:[%s228 + $0x30] sm:$0xff]
        %v294 = vld [vmem:[%s228 + $0x38] sm:$0xff]
        %v295 = vld [vmem:[%s228 + $0x40] sm:$0xff]
        %v296 = vld [vmem:[%s228 + $0x48] sm:$0xff]
        %v297 = vld [vmem:[%s228 + $0x50] sm:$0xff]
        %v298 = vld [vmem:[%s228 + $0x58] sm:$0xff]
        %v299 = vld [vmem:[%s228 + $0x60] sm:$0xff]
        %v300 = vld [vmem:[%s228 + $0x68] sm:$0xff]
        %v301 = vld [vmem:[%s228 + $0x70] sm:$0xff]
        %v302 = vld [vmem:[%s228 + $0x78] sm:$0xff]
        %v303 = vld [vmem:[%s236] sm:$0xff]
        %v304 = vld [vmem:[%s236 + $0x8] sm:$0xff]
        %v305 = vld [vmem:[%s236 + $0x10] sm:$0xff]
        %v307 = vperm.slane %v259, 0
        %v308 = vperm.slane %v259, 1
        %v309 = vperm.slane %v259, 2
        %vm313 = vcmask 64512
        %v315 = vsel %vm313, %v287, 0
        %v318 = vsel %vm313, %v288, 0
        %v321 = vsel %vm313, %v289, 0
        %v324 = vsel %vm313, %v290, 0
        %v327 = vsel %vm313, %v291, 0
        %v330 = vsel %vm313, %v292, 0
        %v333 = vsel %vm313, %v293, 0
        %v336 = vsel %vm313, %v294, 0
        %v339 = vsel %vm313, %v295, 0
        %v342 = vsel %vm313, %v296, 0
        %v345 = vsel %vm313, %v297, 0
        %v348 = vsel %vm313, %v298, 0
        %v351 = vsel %vm313, %v299, 0
        %v354 = vsel %vm313, %v300, 0
        %v357 = vsel %vm313, %v301, 0
        %v360 = vsel %vm313, %v302, 0
        %362 = vmatpush.msra.mxu0 0.0
        %363 = vmatpush.msra.mxu0 0.0
        %364 = vmatpush.msra.mxu0 0.0
        %365 = vmatpush.msra.mxu0 0.0
        %366 = vmatpush.msra.mxu0 0.0
        %367 = vmatpush.msra.mxu0 0.0
        %368 = vmatpush.msra.mxu0 0.0
        %369 = vmatpush.msra.mxu0 0.0
        %370 = vmatpush.msra.mxu0 0.0
        %371 = vmatpush.msra.mxu0 0.0
        %372 = vmatpush.msra.mxu0 0.0
        %373 = vmatpush.msra.mxu0 0.0
        %374 = vmatpush.msra.mxu0 0.0
        %375 = vmatpush.msra.mxu0 0.0
        %376 = vmatpush.msra.mxu0 0.0
        %377 = vmatpush.msra.mxu0 %v303
        %378 = vmatmul.f32.gmra.mxu0 %v315
        %v379 = vpop.f32.mrf.mxu0
        %v380 = vadd.f32 %v307, %v379
        %381 = vmatmul.f32.gmra.mxu0 %v318
        %v382 = vpop.f32.mrf.mxu0
        %v383 = vadd.f32 %v307, %v382
        %384 = vmatmul.f32.gmra.mxu0 %v321
        %v385 = vpop.f32.mrf.mxu0
        %v386 = vadd.f32 %v307, %v385
        %387 = vmatmul.f32.gmra.mxu0 %v324
        %v388 = vpop.f32.mrf.mxu0
        %v389 = vadd.f32 %v307, %v388
        %390 = vmatmul.f32.gmra.mxu0 %v327
        %v391 = vpop.f32.mrf.mxu0
        %v392 = vadd.f32 %v307, %v391
        %393 = vmatmul.f32.gmra.mxu0 %v330
        %v394 = vpop.f32.mrf.mxu0
        %v395 = vadd.f32 %v307, %v394
        %396 = vmatmul.f32.gmra.mxu0 %v333
        %v397 = vpop.f32.mrf.mxu0
        %v398 = vadd.f32 %v307, %v397
        %399 = vmatmul.f32.gmra.mxu0 %v336
        %v400 = vpop.f32.mrf.mxu0
        %v401 = vadd.f32 %v307, %v400
        %402 = vmatmul.f32.gmra.mxu0 %v339
        %v403 = vpop.f32.mrf.mxu0
        %v404 = vadd.f32 %v307, %v403
        %405 = vmatmul.f32.gmra.mxu0 %v342
        %v406 = vpop.f32.mrf.mxu0
        %v407 = vadd.f32 %v307, %v406
        %408 = vmatmul.f32.gmra.mxu0 %v345
        %v409 = vpop.f32.mrf.mxu0
        %v410 = vadd.f32 %v307, %v409
        %411 = vmatmul.f32.gmra.mxu0 %v348
        %v412 = vpop.f32.mrf.mxu0
        %v413 = vadd.f32 %v307, %v412
        %414 = vmatmul.f32.gmra.mxu0 %v351
        %v415 = vpop.f32.mrf.mxu0
        %v416 = vadd.f32 %v307, %v415
        %417 = vmatmul.f32.gmra.mxu0 %v354
        %v418 = vpop.f32.mrf.mxu0
        %v419 = vadd.f32 %v307, %v418
        %420 = vmatmul.f32.gmra.mxu0 %v357
        %v421 = vpop.f32.mrf.mxu0
        %v422 = vadd.f32 %v307, %v421
        %423 = vmatmul.f32.gmra.mxu0 %v360
        %v424 = vpop.f32.mrf.mxu0
        %v425 = vadd.f32 %v307, %v424
        %426 = vdwg.mxu0
        %427 = vmatpush.msra.mxu0 0.0
        %428 = vmatpush.msra.mxu0 0.0
        %429 = vmatpush.msra.mxu0 0.0
        %430 = vmatpush.msra.mxu0 0.0
        %431 = vmatpush.msra.mxu0 0.0
        %432 = vmatpush.msra.mxu0 0.0
        %433 = vmatpush.msra.mxu0 0.0
        %434 = vmatpush.msra.mxu0 0.0
        %435 = vmatpush.msra.mxu0 0.0
        %436 = vmatpush.msra.mxu0 0.0
        %437 = vmatpush.msra.mxu0 0.0
        %438 = vmatpush.msra.mxu0 0.0
        %439 = vmatpush.msra.mxu0 0.0
        %440 = vmatpush.msra.mxu0 0.0
        %441 = vmatpush.msra.mxu0 0.0
        %442 = vmatpush.msra.mxu0 %v304
        %443 = vmatmul.f32.gmra.mxu0 %v315
        %v444 = vpop.f32.mrf.mxu0
        %v445 = vadd.f32 %v308, %v444
        %446 = vmatmul.f32.gmra.mxu0 %v318
        %v447 = vpop.f32.mrf.mxu0
        %v448 = vadd.f32 %v308, %v447
        %449 = vmatmul.f32.gmra.mxu0 %v321
        %v450 = vpop.f32.mrf.mxu0
        %v451 = vadd.f32 %v308, %v450
        %452 = vmatmul.f32.gmra.mxu0 %v324
        %v453 = vpop.f32.mrf.mxu0
        %v454 = vadd.f32 %v308, %v453
        %455 = vmatmul.f32.gmra.mxu0 %v327
        %v456 = vpop.f32.mrf.mxu0
        %v457 = vadd.f32 %v308, %v456
        %458 = vmatmul.f32.gmra.mxu0 %v330
        %v459 = vpop.f32.mrf.mxu0
        %v460 = vadd.f32 %v308, %v459
        %461 = vmatmul.f32.gmra.mxu0 %v333
        %v462 = vpop.f32.mrf.mxu0
        %v463 = vadd.f32 %v308, %v462
        %464 = vmatmul.f32.gmra.mxu0 %v336
        %v465 = vpop.f32.mrf.mxu0
        %v466 = vadd.f32 %v308, %v465
        %467 = vmatmul.f32.gmra.mxu0 %v339
        %v468 = vpop.f32.mrf.mxu0
        %v469 = vadd.f32 %v308, %v468
        %470 = vmatmul.f32.gmra.mxu0 %v342
        %v471 = vpop.f32.mrf.mxu0
        %v472 = vadd.f32 %v308, %v471
        %473 = vmatmul.f32.gmra.mxu0 %v345
        %v474 = vpop.f32.mrf.mxu0
        %v475 = vadd.f32 %v308, %v474
        %476 = vmatmul.f32.gmra.mxu0 %v348
        %v477 = vpop.f32.mrf.mxu0
        %v478 = vadd.f32 %v308, %v477
        %479 = vmatmul.f32.gmra.mxu0 %v351
        %v480 = vpop.f32.mrf.mxu0
        %v481 = vadd.f32 %v308, %v480
        %482 = vmatmul.f32.gmra.mxu0 %v354
        %v483 = vpop.f32.mrf.mxu0
        %v484 = vadd.f32 %v308, %v483
        %485 = vmatmul.f32.gmra.mxu0 %v357
        %v486 = vpop.f32.mrf.mxu0
        %v487 = vadd.f32 %v308, %v486
        %488 = vmatmul.f32.gmra.mxu0 %v360
        %v489 = vpop.f32.mrf.mxu0
        %v490 = vadd.f32 %v308, %v489
        %491 = vdwg.mxu0
        %492 = vmatpush.msra.mxu0 0.0
        %493 = vmatpush.msra.mxu0 0.0
        %494 = vmatpush.msra.mxu0 0.0
        %495 = vmatpush.msra.mxu0 0.0
        %496 = vmatpush.msra.mxu0 0.0
        %497 = vmatpush.msra.mxu0 0.0
        %498 = vmatpush.msra.mxu0 0.0
        %499 = vmatpush.msra.mxu0 0.0
        %500 = vmatpush.msra.mxu0 0.0
        %501 = vmatpush.msra.mxu0 0.0
        %502 = vmatpush.msra.mxu0 0.0
        %503 = vmatpush.msra.mxu0 0.0
        %504 = vmatpush.msra.mxu0 0.0
        %505 = vmatpush.msra.mxu0 0.0
        %506 = vmatpush.msra.mxu0 0.0
        %507 = vmatpush.msra.mxu0 %v305
        %508 = vmatmul.f32.gmra.mxu0 %v315
        %v509 = vpop.f32.mrf.mxu0
        %v510 = vadd.f32 %v309, %v509
        %511 = vmatmul.f32.gmra.mxu0 %v318
        %v512 = vpop.f32.mrf.mxu0
        %v513 = vadd.f32 %v309, %v512
        %514 = vmatmul.f32.gmra.mxu0 %v321
        %v515 = vpop.f32.mrf.mxu0
        %v516 = vadd.f32 %v309, %v515
        %517 = vmatmul.f32.gmra.mxu0 %v324
        %v518 = vpop.f32.mrf.mxu0
        %v519 = vadd.f32 %v309, %v518
        %520 = vmatmul.f32.gmra.mxu0 %v327
        %v521 = vpop.f32.mrf.mxu0
        %v522 = vadd.f32 %v309, %v521
        %523 = vmatmul.f32.gmra.mxu0 %v330
        %v524 = vpop.f32.mrf.mxu0
        %v525 = vadd.f32 %v309, %v524
        %526 = vmatmul.f32.gmra.mxu0 %v333
        %v527 = vpop.f32.mrf.mxu0
        %v528 = vadd.f32 %v309, %v527
        %529 = vmatmul.f32.gmra.mxu0 %v336
        %v530 = vpop.f32.mrf.mxu0
        %v531 = vadd.f32 %v309, %v530
        %532 = vmatmul.f32.gmra.mxu0 %v339
        %v533 = vpop.f32.mrf.mxu0
        %v534 = vadd.f32 %v309, %v533
        %535 = vmatmul.f32.gmra.mxu0 %v342
        %v536 = vpop.f32.mrf.mxu0
        %v537 = vadd.f32 %v309, %v536
        %538 = vmatmul.f32.gmra.mxu0 %v345
        %v539 = vpop.f32.mrf.mxu0
        %v540 = vadd.f32 %v309, %v539
        %541 = vmatmul.f32.gmra.mxu0 %v348
        %v542 = vpop.f32.mrf.mxu0
        %v543 = vadd.f32 %v309, %v542
        %544 = vmatmul.f32.gmra.mxu0 %v351
        %v545 = vpop.f32.mrf.mxu0
        %v546 = vadd.f32 %v309, %v545
        %547 = vmatmul.f32.gmra.mxu0 %v354
        %v548 = vpop.f32.mrf.mxu0
        %v549 = vadd.f32 %v309, %v548
        %550 = vmatmul.f32.gmra.mxu0 %v357
        %v551 = vpop.f32.mrf.mxu0
        %v552 = vadd.f32 %v309, %v551
        %553 = vmatmul.f32.gmra.mxu0 %v360
        %v554 = vpop.f32.mrf.mxu0
        %v555 = vadd.f32 %v309, %v554
        %556 = vdwg.mxu0
        %v557 = vlaneseq
        %v558 = vshrl.u32 %v557, 7
        %v559 = vadd.s32 %v558, 8
        %v560 = vadd.s32 %v558, 16
        %v561 = vadd.s32 %v558, 24
        %v562 = vadd.s32 %v558, 32
        %v563 = vadd.s32 %v558, 40
        %v564 = vadd.s32 %v558, 48
        %v565 = vadd.s32 %v558, 56
        %v566 = vadd.s32 %v558, 64
        %v567 = vadd.s32 %v558, 72
        %v568 = vadd.s32 %v558, 80
        %v569 = vadd.s32 %v558, 88
        %v570 = vadd.s32 %v558, 96
        %v571 = vadd.s32 %v558, 104
        %v572 = vadd.s32 %v558, 112
        %v573 = vadd.s32 %v558, 120
        %v574 = vcvt.s32.f32 %v558
        %v575 = vcvt.s32.f32 %v559
        %v576 = vcvt.s32.f32 %v560
        %v577 = vcvt.s32.f32 %v561
        %v578 = vcvt.s32.f32 %v562
        %v579 = vcvt.s32.f32 %v563
        %v580 = vcvt.s32.f32 %v564
        %v581 = vcvt.s32.f32 %v565
        %v582 = vcvt.s32.f32 %v566
        %v583 = vcvt.s32.f32 %v567
        %v584 = vcvt.s32.f32 %v568
        %v585 = vcvt.s32.f32 %v569
        %v586 = vcvt.s32.f32 %v570
        %v587 = vcvt.s32.f32 %v571
        %v588 = vcvt.s32.f32 %v572
        %v589 = vcvt.s32.f32 %v573
        %v590 = vstv %s252
        %v591 = vadd.f32 %v590, %v574
        %v592 = vadd.f32 %v590, %v575
        %v593 = vadd.f32 %v590, %v576
        %v594 = vadd.f32 %v590, %v577
        %v595 = vadd.f32 %v590, %v578
        %v596 = vadd.f32 %v590, %v579
        %v597 = vadd.f32 %v590, %v580
        %v598 = vadd.f32 %v590, %v581
        %v599 = vadd.f32 %v590, %v582
        %v600 = vadd.f32 %v590, %v583
        %v601 = vadd.f32 %v590, %v584
        %v602 = vadd.f32 %v590, %v585
        %v603 = vadd.f32 %v590, %v586
        %v604 = vadd.f32 %v590, %v587
        %v605 = vadd.f32 %v590, %v588
        %v606 = vadd.f32 %v590, %v589
        %v607 = vadd.f32 %v591, 0.5
        %v608 = vadd.f32 %v592, 0.5
        %v609 = vadd.f32 %v593, 0.5
        %v610 = vadd.f32 %v594, 0.5
        %v611 = vadd.f32 %v595, 0.5
        %v612 = vadd.f32 %v596, 0.5
        %v613 = vadd.f32 %v597, 0.5
        %v614 = vadd.f32 %v598, 0.5
        %v615 = vadd.f32 %v599, 0.5
        %v616 = vadd.f32 %v600, 0.5
        %v617 = vadd.f32 %v601, 0.5
        %v618 = vadd.f32 %v602, 0.5
        %v619 = vadd.f32 %v603, 0.5
        %v620 = vadd.f32 %v604, 0.5
        %v621 = vadd.f32 %v605, 0.5
        %v622 = vadd.f32 %v606, 0.5
        %v623 = vstv %s255
        %v624 = vrcp.pop %v623
        %v625 = vmul.f32 %v623, %v624
        %v626 = vsub.f32 1.0, %v625
        %v627 = vmul.f32 %v624, %v626
        %v628 = vadd.f32 %v624, %v627
        %vm629 = vweird.f32 %v623
        %vm630 = vweird.f32 %v624
        %vm631 = vmor %vm629, %vm630
        %v632 = vsel %vm631, %v624, %v628
        %v633 = vand.u32 2147483647, %v623
        %vm634 = vcmp.eq.f32.partialorder %v633, 8.507059e+37
        %v635 = vand.u32 %v623, 2147483648
        %v636 = vor.u32 1.1754944e-38, %v635
        %v637 = vsel %vm634, %v636, %v632
        %v638 = vmul.f32 %v607, %v637
        %v639 = vmul.f32 %v608, %v637
        %v640 = vmul.f32 %v609, %v637
        %v641 = vmul.f32 %v610, %v637
        %v642 = vmul.f32 %v611, %v637
        %v643 = vmul.f32 %v612, %v637
        %v644 = vmul.f32 %v613, %v637
        %v645 = vmul.f32 %v614, %v637
        %v646 = vmul.f32 %v615, %v637
        %v647 = vmul.f32 %v616, %v637
        %v648 = vmul.f32 %v617, %v637
        %v649 = vmul.f32 %v618, %v637
        %v650 = vmul.f32 %v619, %v637
        %v651 = vmul.f32 %v620, %v637
        %v652 = vmul.f32 %v621, %v637
        %v653 = vmul.f32 %v622, %v637
        %v654 = vfloor.f32 %v638
        %v655 = vfloor.f32 %v639
        %v656 = vfloor.f32 %v640
        %v657 = vfloor.f32 %v641
        %v658 = vfloor.f32 %v642
        %v659 = vfloor.f32 %v643
        %v660 = vfloor.f32 %v644
        %v661 = vfloor.f32 %v645
        %v662 = vfloor.f32 %v646
        %v663 = vfloor.f32 %v647
        %v664 = vfloor.f32 %v648
        %v665 = vfloor.f32 %v649
        %v666 = vfloor.f32 %v650
        %v667 = vfloor.f32 %v651
        %v668 = vfloor.f32 %v652
        %v669 = vfloor.f32 %v653
        %v670 = vmul.f32 %v654, %v623
        %v671 = vmul.f32 %v655, %v623
        %v672 = vmul.f32 %v656, %v623
        %v673 = vmul.f32 %v657, %v623
        %v674 = vmul.f32 %v658, %v623
        %v675 = vmul.f32 %v659, %v623
        %v676 = vmul.f32 %v660, %v623
        %v677 = vmul.f32 %v661, %v623
        %v678 = vmul.f32 %v662, %v623
        %v679 = vmul.f32 %v663, %v623
        %v680 = vmul.f32 %v664, %v623
        %v681 = vmul.f32 %v665, %v623
        %v682 = vmul.f32 %v666, %v623
        %v683 = vmul.f32 %v667, %v623
        %v684 = vmul.f32 %v668, %v623
        %v685 = vmul.f32 %v669, %v623
        %v686 = vsub.f32 %v591, %v670
        %v687 = vsub.f32 %v592, %v671
        %v688 = vsub.f32 %v593, %v672
        %v689 = vsub.f32 %v594, %v673
        %v690 = vsub.f32 %v595, %v674
        %v691 = vsub.f32 %v596, %v675
        %v692 = vsub.f32 %v597, %v676
        %v693 = vsub.f32 %v598, %v677
        %v694 = vsub.f32 %v599, %v678
        %v695 = vsub.f32 %v600, %v679
        %v696 = vsub.f32 %v601, %v680
        %v697 = vsub.f32 %v602, %v681
        %v698 = vsub.f32 %v603, %v682
        %v699 = vsub.f32 %v604, %v683
        %v700 = vsub.f32 %v605, %v684
        %v701 = vsub.f32 %v606, %v685
        %v702 = vadd.f32 %v686, 0.5
        %v703 = vadd.f32 %v687, 0.5
        %v704 = vadd.f32 %v688, 0.5
        %v705 = vadd.f32 %v689, 0.5
        %v706 = vadd.f32 %v690, 0.5
        %v707 = vadd.f32 %v691, 0.5
        %v708 = vadd.f32 %v692, 0.5
        %v709 = vadd.f32 %v693, 0.5
        %v710 = vadd.f32 %v694, 0.5
        %v711 = vadd.f32 %v695, 0.5
        %v712 = vadd.f32 %v696, 0.5
        %v713 = vadd.f32 %v697, 0.5
        %v714 = vadd.f32 %v698, 0.5
        %v715 = vadd.f32 %v699, 0.5
        %v716 = vadd.f32 %v700, 0.5
        %v717 = vadd.f32 %v701, 0.5
        %v718 = vstv %s258
        %v719 = vrcp.pop %v718
        %v720 = vmul.f32 %v718, %v719
        %v721 = vsub.f32 1.0, %v720
        %v722 = vmul.f32 %v719, %v721
        %v723 = vadd.f32 %v719, %v722
        %vm724 = vweird.f32 %v718
        %vm725 = vweird.f32 %v719
        %vm726 = vmor %vm724, %vm725
        %v727 = vsel %vm726, %v719, %v723
        %v728 = vand.u32 2147483647, %v718
        %vm729 = vcmp.eq.f32.partialorder %v728, 8.507059e+37
        %v730 = vand.u32 %v718, 2147483648
        %v731 = vor.u32 1.1754944e-38, %v730
        %v732 = vsel %vm729, %v731, %v727
        %v733 = vmul.f32 %v702, %v732
        %v734 = vmul.f32 %v703, %v732
        %v735 = vmul.f32 %v704, %v732
        %v736 = vmul.f32 %v705, %v732
        %v737 = vmul.f32 %v706, %v732
        %v738 = vmul.f32 %v707, %v732
        %v739 = vmul.f32 %v708, %v732
        %v740 = vmul.f32 %v709, %v732
        %v741 = vmul.f32 %v710, %v732
        %v742 = vmul.f32 %v711, %v732
        %v743 = vmul.f32 %v712, %v732
        %v744 = vmul.f32 %v713, %v732
        %v745 = vmul.f32 %v714, %v732
        %v746 = vmul.f32 %v715, %v732
        %v747 = vmul.f32 %v716, %v732
        %v748 = vmul.f32 %v717, %v732
        %v749 = vfloor.f32 %v733
        %v750 = vfloor.f32 %v734
        %v751 = vfloor.f32 %v735
        %v752 = vfloor.f32 %v736
        %v753 = vfloor.f32 %v737
        %v754 = vfloor.f32 %v738
        %v755 = vfloor.f32 %v739
        %v756 = vfloor.f32 %v740
        %v757 = vfloor.f32 %v741
        %v758 = vfloor.f32 %v742
        %v759 = vfloor.f32 %v743
        %v760 = vfloor.f32 %v744
        %v761 = vfloor.f32 %v745
        %v762 = vfloor.f32 %v746
        %v763 = vfloor.f32 %v747
        %v764 = vfloor.f32 %v748
        %v765 = vmul.f32 %v749, %v718
        %v766 = vmul.f32 %v750, %v718
        %v767 = vmul.f32 %v751, %v718
        %v768 = vmul.f32 %v752, %v718
        %v769 = vmul.f32 %v753, %v718
        %v770 = vmul.f32 %v754, %v718
        %v771 = vmul.f32 %v755, %v718
        %v772 = vmul.f32 %v756, %v718
        %v773 = vmul.f32 %v757, %v718
        %v774 = vmul.f32 %v758, %v718
        %v775 = vmul.f32 %v759, %v718
        %v776 = vmul.f32 %v760, %v718
        %v777 = vmul.f32 %v761, %v718
        %v778 = vmul.f32 %v762, %v718
        %v779 = vmul.f32 %v763, %v718
        %v780 = vmul.f32 %v764, %v718
        %v781 = vsub.f32 %v686, %v765
        %v782 = vsub.f32 %v687, %v766
        %v783 = vsub.f32 %v688, %v767
        %v784 = vsub.f32 %v689, %v768
        %v785 = vsub.f32 %v690, %v769
        %v786 = vsub.f32 %v691, %v770
        %v787 = vsub.f32 %v692, %v771
        %v788 = vsub.f32 %v693, %v772
        %v789 = vsub.f32 %v694, %v773
        %v790 = vsub.f32 %v695, %v774
        %v791 = vsub.f32 %v696, %v775
        %v792 = vsub.f32 %v697, %v776
        %v793 = vsub.f32 %v698, %v777
        %v794 = vsub.f32 %v699, %v778
        %v795 = vsub.f32 %v700, %v779
        %v796 = vsub.f32 %v701, %v780
        %v798 = vperm.slane %v261, 0
        %v799 = vperm.slane %v261, 1
        %v800 = vperm.slane %v261, 2
        %v804 = vmul.f32 %v380, %v798
        %v805 = vmul.f32 %v445, %v799
        %v806 = vmul.f32 %v510, %v800
        %v807 = vmul.f32 %v383, %v798
        %v808 = vmul.f32 %v448, %v799
        %v809 = vmul.f32 %v513, %v800
        %v810 = vmul.f32 %v386, %v798
        %v811 = vmul.f32 %v451, %v799
        %v812 = vmul.f32 %v516, %v800
        %v813 = vmul.f32 %v389, %v798
        %v814 = vmul.f32 %v454, %v799
        %v815 = vmul.f32 %v519, %v800
        %v816 = vmul.f32 %v392, %v798
        %v817 = vmul.f32 %v457, %v799
        %v818 = vmul.f32 %v522, %v800
        %v819 = vmul.f32 %v395, %v798
        %v820 = vmul.f32 %v460, %v799
        %v821 = vmul.f32 %v525, %v800
        %v822 = vmul.f32 %v398, %v798
        %v823 = vmul.f32 %v463, %v799
        %v824 = vmul.f32 %v528, %v800
        %v825 = vmul.f32 %v401, %v798
        %v826 = vmul.f32 %v466, %v799
        %v827 = vmul.f32 %v531, %v800
        %v828 = vmul.f32 %v404, %v798
        %v829 = vmul.f32 %v469, %v799
        %v830 = vmul.f32 %v534, %v800
        %v831 = vmul.f32 %v407, %v798
        %v832 = vmul.f32 %v472, %v799
        %v833 = vmul.f32 %v537, %v800
        %v834 = vmul.f32 %v410, %v798
        %v835 = vmul.f32 %v475, %v799
        %v836 = vmul.f32 %v540, %v800
        %v837 = vmul.f32 %v413, %v798
        %v838 = vmul.f32 %v478, %v799
        %v839 = vmul.f32 %v543, %v800
        %v840 = vmul.f32 %v416, %v798
        %v841 = vmul.f32 %v481, %v799
        %v842 = vmul.f32 %v546, %v800
        %v843 = vmul.f32 %v419, %v798
        %v844 = vmul.f32 %v484, %v799
        %v845 = vmul.f32 %v549, %v800
        %v846 = vmul.f32 %v422, %v798
        %v847 = vmul.f32 %v487, %v799
        %v848 = vmul.f32 %v552, %v800
        %v849 = vmul.f32 %v425, %v798
        %v850 = vmul.f32 %v490, %v799
        %v851 = vmul.f32 %v555, %v800
        %v852 = vmul.f32 %v804, 1.442695
        %v853 = vpow.pop %v852
        %v854 = vmul.f32 %v805, 1.442695
        %v855 = vpow.pop %v854
        %v856 = vmul.f32 %v806, 1.442695
        %v857 = vpow.pop %v856
        %v858 = vmul.f32 %v807, 1.442695
        %v859 = vpow.pop %v858
        %v860 = vmul.f32 %v808, 1.442695
        %v861 = vpow.pop %v860
        %v862 = vmul.f32 %v809, 1.442695
        %v863 = vpow.pop %v862
        %v864 = vmul.f32 %v810, 1.442695
        %v865 = vpow.pop %v864
        %v866 = vmul.f32 %v811, 1.442695
        %v867 = vpow.pop %v866
        %v868 = vmul.f32 %v812, 1.442695
        %v869 = vpow.pop %v868
        %v870 = vmul.f32 %v813, 1.442695
        %v871 = vpow.pop %v870
        %v872 = vmul.f32 %v814, 1.442695
        %v873 = vpow.pop %v872
        %v874 = vmul.f32 %v815, 1.442695
        %v875 = vpow.pop %v874
        %v876 = vmul.f32 %v816, 1.442695
        %v877 = vpow.pop %v876
        %v878 = vmul.f32 %v817, 1.442695
        %v879 = vpow.pop %v878
        %v880 = vmul.f32 %v818, 1.442695
        %v881 = vpow.pop %v880
        %v882 = vmul.f32 %v819, 1.442695
        %v883 = vpow.pop %v882
        %v884 = vmul.f32 %v820, 1.442695
        %v885 = vpow.pop %v884
        %v886 = vmul.f32 %v821, 1.442695
        %v887 = vpow.pop %v886
        %v888 = vmul.f32 %v822, 1.442695
        %v889 = vpow.pop %v888
        %v890 = vmul.f32 %v823, 1.442695
        %v891 = vpow.pop %v890
        %v892 = vmul.f32 %v824, 1.442695
        %v893 = vpow.pop %v892
        %v894 = vmul.f32 %v825, 1.442695
        %v895 = vpow.pop %v894
        %v896 = vmul.f32 %v826, 1.442695
        %v897 = vpow.pop %v896
        %v898 = vmul.f32 %v827, 1.442695
        %v899 = vpow.pop %v898
        %v900 = vmul.f32 %v828, 1.442695
        %v901 = vpow.pop %v900
        %v902 = vmul.f32 %v829, 1.442695
        %v903 = vpow.pop %v902
        %v904 = vmul.f32 %v830, 1.442695
        %v905 = vpow.pop %v904
        %v906 = vmul.f32 %v831, 1.442695
        %v907 = vpow.pop %v906
        %v908 = vmul.f32 %v832, 1.442695
        %v909 = vpow.pop %v908
        %v910 = vmul.f32 %v833, 1.442695
        %v911 = vpow.pop %v910
        %v912 = vmul.f32 %v834, 1.442695
        %v913 = vpow.pop %v912
        %v914 = vmul.f32 %v835, 1.442695
        %v915 = vpow.pop %v914
        %v916 = vmul.f32 %v836, 1.442695
        %v917 = vpow.pop %v916
        %v918 = vmul.f32 %v837, 1.442695
        %v919 = vpow.pop %v918
        %v920 = vmul.f32 %v838, 1.442695
        %v921 = vpow.pop %v920
        %v922 = vmul.f32 %v839, 1.442695
        %v923 = vpow.pop %v922
        %v924 = vmul.f32 %v840, 1.442695
        %v925 = vpow.pop %v924
        %v926 = vmul.f32 %v841, 1.442695
        %v927 = vpow.pop %v926
        %v928 = vmul.f32 %v842, 1.442695
        %v929 = vpow.pop %v928
        %v930 = vmul.f32 %v843, 1.442695
        %v931 = vpow.pop %v930
        %v932 = vmul.f32 %v844, 1.442695
        %v933 = vpow.pop %v932
        %v934 = vmul.f32 %v845, 1.442695
        %v935 = vpow.pop %v934
        %v936 = vmul.f32 %v846, 1.442695
        %v937 = vpow.pop %v936
        %v938 = vmul.f32 %v847, 1.442695
        %v939 = vpow.pop %v938
        %v940 = vmul.f32 %v848, 1.442695
        %v941 = vpow.pop %v940
        %v942 = vmul.f32 %v849, 1.442695
        %v943 = vpow.pop %v942
        %v944 = vmul.f32 %v850, 1.442695
        %v945 = vpow.pop %v944
        %v946 = vmul.f32 %v851, 1.442695
        %v947 = vpow.pop %v946
        %v949 = vperm.slane %v263, 0
        %v950 = vperm.slane %v263, 1
        %v951 = vperm.slane %v263, 2
        %v955 = vmul.f32 %v949, %v853
        %v956 = vmul.f32 %v950, %v855
        %v957 = vmul.f32 %v951, %v857
        %v958 = vmul.f32 %v949, %v859
        %v959 = vmul.f32 %v950, %v861
        %v960 = vmul.f32 %v951, %v863
        %v961 = vmul.f32 %v949, %v865
        %v962 = vmul.f32 %v950, %v867
        %v963 = vmul.f32 %v951, %v869
        %v964 = vmul.f32 %v949, %v871
        %v965 = vmul.f32 %v950, %v873
        %v966 = vmul.f32 %v951, %v875
        %v967 = vmul.f32 %v949, %v877
        %v968 = vmul.f32 %v950, %v879
        %v969 = vmul.f32 %v951, %v881
        %v970 = vmul.f32 %v949, %v883
        %v971 = vmul.f32 %v950, %v885
        %v972 = vmul.f32 %v951, %v887
        %v973 = vmul.f32 %v949, %v889
        %v974 = vmul.f32 %v950, %v891
        %v975 = vmul.f32 %v951, %v893
        %v976 = vmul.f32 %v949, %v895
        %v977 = vmul.f32 %v950, %v897
        %v978 = vmul.f32 %v951, %v899
        %v979 = vmul.f32 %v949, %v901
        %v980 = vmul.f32 %v950, %v903
        %v981 = vmul.f32 %v951, %v905
        %v982 = vmul.f32 %v949, %v907
        %v983 = vmul.f32 %v950, %v909
        %v984 = vmul.f32 %v951, %v911
        %v985 = vmul.f32 %v949, %v913
        %v986 = vmul.f32 %v950, %v915
        %v987 = vmul.f32 %v951, %v917
        %v988 = vmul.f32 %v949, %v919
        %v989 = vmul.f32 %v950, %v921
        %v990 = vmul.f32 %v951, %v923
        %v991 = vmul.f32 %v949, %v925
        %v992 = vmul.f32 %v950, %v927
        %v993 = vmul.f32 %v951, %v929
        %v994 = vmul.f32 %v949, %v931
        %v995 = vmul.f32 %v950, %v933
        %v996 = vmul.f32 %v951, %v935
        %v997 = vmul.f32 %v949, %v937
        %v998 = vmul.f32 %v950, %v939
        %v999 = vmul.f32 %v951, %v941
        %v1000 = vmul.f32 %v949, %v943
        %v1001 = vmul.f32 %v950, %v945
        %v1002 = vmul.f32 %v951, %v947
        %v1003 = vmul.f32 %v955, %v955
        %v1004 = vmul.f32 %v956, %v956
        %v1005 = vmul.f32 %v957, %v957
        %v1006 = vmul.f32 %v958, %v958
        %v1007 = vmul.f32 %v959, %v959
        %v1008 = vmul.f32 %v960, %v960
        %v1009 = vmul.f32 %v961, %v961
        %v1010 = vmul.f32 %v962, %v962
        %v1011 = vmul.f32 %v963, %v963
        %v1012 = vmul.f32 %v964, %v964
        %v1013 = vmul.f32 %v965, %v965
        %v1014 = vmul.f32 %v966, %v966
        %v1015 = vmul.f32 %v967, %v967
        %v1016 = vmul.f32 %v968, %v968
        %v1017 = vmul.f32 %v969, %v969
        %v1018 = vmul.f32 %v970, %v970
        %v1019 = vmul.f32 %v971, %v971
        %v1020 = vmul.f32 %v972, %v972
        %v1021 = vmul.f32 %v973, %v973
        %v1022 = vmul.f32 %v974, %v974
        %v1023 = vmul.f32 %v975, %v975
        %v1024 = vmul.f32 %v976, %v976
        %v1025 = vmul.f32 %v977, %v977
        %v1026 = vmul.f32 %v978, %v978
        %v1027 = vmul.f32 %v979, %v979
        %v1028 = vmul.f32 %v980, %v980
        %v1029 = vmul.f32 %v981, %v981
        %v1030 = vmul.f32 %v982, %v982
        %v1031 = vmul.f32 %v983, %v983
        %v1032 = vmul.f32 %v984, %v984
        %v1033 = vmul.f32 %v985, %v985
        %v1034 = vmul.f32 %v986, %v986
        %v1035 = vmul.f32 %v987, %v987
        %v1036 = vmul.f32 %v988, %v988
        %v1037 = vmul.f32 %v989, %v989
        %v1038 = vmul.f32 %v990, %v990
        %v1039 = vmul.f32 %v991, %v991
        %v1040 = vmul.f32 %v992, %v992
        %v1041 = vmul.f32 %v993, %v993
        %v1042 = vmul.f32 %v994, %v994
        %v1043 = vmul.f32 %v995, %v995
        %v1044 = vmul.f32 %v996, %v996
        %v1045 = vmul.f32 %v997, %v997
        %v1046 = vmul.f32 %v998, %v998
        %v1047 = vmul.f32 %v999, %v999
        %v1048 = vmul.f32 %v1000, %v1000
        %v1049 = vmul.f32 %v1001, %v1001
        %v1050 = vmul.f32 %v1002, %v1002
        %1067 = vrot.lane.b32.xlu0 %v1003, 127
        %v1068 = vpop.permute.xlu0 %1067
        %1069 = vrot.lane.b32.xlu0 %v1006, 127
        %v1070 = vpop.permute.xlu0 %1069
        %1071 = vrot.lane.b32.xlu0 %v1009, 127
        %v1072 = vpop.permute.xlu0 %1071
        %1073 = vrot.lane.b32.xlu0 %v1012, 127
        %v1074 = vpop.permute.xlu0 %1073
        %1075 = vrot.lane.b32.xlu0 %v1015, 127
        %v1076 = vpop.permute.xlu0 %1075
        %1077 = vrot.lane.b32.xlu0 %v1018, 127
        %v1078 = vpop.permute.xlu0 %1077
        %1079 = vrot.lane.b32.xlu0 %v1021, 127
        %v1080 = vpop.permute.xlu0 %1079
        %1081 = vrot.lane.b32.xlu0 %v1024, 127
        %v1082 = vpop.permute.xlu0 %1081
        %1083 = vrot.lane.b32.xlu0 %v1027, 127
        %v1084 = vpop.permute.xlu0 %1083
        %1085 = vrot.lane.b32.xlu0 %v1030, 127
        %v1086 = vpop.permute.xlu0 %1085
        %1087 = vrot.lane.b32.xlu0 %v1033, 127
        %v1088 = vpop.permute.xlu0 %1087
        %1089 = vrot.lane.b32.xlu0 %v1036, 127
        %v1090 = vpop.permute.xlu0 %1089
        %1091 = vrot.lane.b32.xlu0 %v1039, 127
        %v1092 = vpop.permute.xlu0 %1091
        %1093 = vrot.lane.b32.xlu0 %v1042, 127
        %v1094 = vpop.permute.xlu0 %1093
        %1095 = vrot.lane.b32.xlu0 %v1045, 127
        %v1096 = vpop.permute.xlu0 %1095
        %1097 = vrot.lane.b32.xlu0 %v1048, 127
        %v1098 = vpop.permute.xlu0 %1097
        %v1115 = vadd.f32 %v1003, %v1068
        %v1116 = vadd.f32 %v1006, %v1070
        %v1117 = vadd.f32 %v1009, %v1072
        %v1118 = vadd.f32 %v1012, %v1074
        %v1119 = vadd.f32 %v1015, %v1076
        %v1120 = vadd.f32 %v1018, %v1078
        %v1121 = vadd.f32 %v1021, %v1080
        %v1122 = vadd.f32 %v1024, %v1082
        %v1123 = vadd.f32 %v1027, %v1084
        %v1124 = vadd.f32 %v1030, %v1086
        %v1125 = vadd.f32 %v1033, %v1088
        %v1126 = vadd.f32 %v1036, %v1090
        %v1127 = vadd.f32 %v1039, %v1092
        %v1128 = vadd.f32 %v1042, %v1094
        %v1129 = vadd.f32 %v1045, %v1096
        %v1130 = vadd.f32 %v1048, %v1098
        %v1131 = vmul.f32 %v1115, 0.0625
        %v1132 = vmul.f32 %v1116, 0.0625
        %v1133 = vmul.f32 %v1117, 0.0625
        %v1134 = vmul.f32 %v1118, 0.0625
        %v1135 = vmul.f32 %v1119, 0.0625
        %v1136 = vmul.f32 %v1120, 0.0625
        %v1137 = vmul.f32 %v1121, 0.0625
        %v1138 = vmul.f32 %v1122, 0.0625
        %v1139 = vmul.f32 %v1123, 0.0625
        %v1140 = vmul.f32 %v1124, 0.0625
        %v1141 = vmul.f32 %v1125, 0.0625
        %v1142 = vmul.f32 %v1126, 0.0625
        %v1143 = vmul.f32 %v1127, 0.0625
        %v1144 = vmul.f32 %v1128, 0.0625
        %v1145 = vmul.f32 %v1129, 0.0625
        %v1146 = vmul.f32 %v1130, 0.0625
        %v1147 = vrsqrt.pop %v1131
        %v1148 = vmul.f32 %v1147, %v1131
        %v1149 = vmul.f32 %v1148, %v1147
        %v1150 = vmul.f32 0.5, %v1149
        %v1151 = vsub.f32 1.5, %v1150
        %v1152 = vmul.f32 %v1147, %v1151
        %v1153 = vmul.f32 %v1131, %v1152
        %vm1154 = vcmp.eq.f32.partialorder %v1131, inf
        %v1155 = vsel %vm1154, %v1131, %v1153
        %vm1156 = vcmp.eq.f32.partialorder %v1131, 0.0
        %v1157 = vand.u32 %v1131, 2147483648
        %v1158 = vsel %vm1156, %v1157, %v1155
        %v1159 = vrsqrt.pop %v1132
        %v1160 = vmul.f32 %v1159, %v1132
        %v1161 = vmul.f32 %v1160, %v1159
        %v1162 = vmul.f32 0.5, %v1161
        %v1163 = vsub.f32 1.5, %v1162
        %v1164 = vmul.f32 %v1159, %v1163
        %v1165 = vmul.f32 %v1132, %v1164
        %vm1166 = vcmp.eq.f32.partialorder %v1132, inf
        %v1167 = vsel %vm1166, %v1132, %v1165
        %vm1168 = vcmp.eq.f32.partialorder %v1132, 0.0
        %v1169 = vand.u32 %v1132, 2147483648
        %v1170 = vsel %vm1168, %v1169, %v1167
        %v1171 = vrsqrt.pop %v1133
        %v1172 = vmul.f32 %v1171, %v1133
        %v1173 = vmul.f32 %v1172, %v1171
        %v1174 = vmul.f32 0.5, %v1173
        %v1175 = vsub.f32 1.5, %v1174
        %v1176 = vmul.f32 %v1171, %v1175
        %v1177 = vmul.f32 %v1133, %v1176
        %vm1178 = vcmp.eq.f32.partialorder %v1133, inf
        %v1179 = vsel %vm1178, %v1133, %v1177
        %vm1180 = vcmp.eq.f32.partialorder %v1133, 0.0
        %v1181 = vand.u32 %v1133, 2147483648
        %v1182 = vsel %vm1180, %v1181, %v1179
        %v1183 = vrsqrt.pop %v1134
        %v1184 = vmul.f32 %v1183, %v1134
        %v1185 = vmul.f32 %v1184, %v1183
        %v1186 = vmul.f32 0.5, %v1185
        %v1187 = vsub.f32 1.5, %v1186
        %v1188 = vmul.f32 %v1183, %v1187
        %v1189 = vmul.f32 %v1134, %v1188
        %vm1190 = vcmp.eq.f32.partialorder %v1134, inf
        %v1191 = vsel %vm1190, %v1134, %v1189
        %vm1192 = vcmp.eq.f32.partialorder %v1134, 0.0
        %v1193 = vand.u32 %v1134, 2147483648
        %v1194 = vsel %vm1192, %v1193, %v1191
        %v1195 = vrsqrt.pop %v1135
        %v1196 = vmul.f32 %v1195, %v1135
        %v1197 = vmul.f32 %v1196, %v1195
        %v1198 = vmul.f32 0.5, %v1197
        %v1199 = vsub.f32 1.5, %v1198
        %v1200 = vmul.f32 %v1195, %v1199
        %v1201 = vmul.f32 %v1135, %v1200
        %vm1202 = vcmp.eq.f32.partialorder %v1135, inf
        %v1203 = vsel %vm1202, %v1135, %v1201
        %vm1204 = vcmp.eq.f32.partialorder %v1135, 0.0
        %v1205 = vand.u32 %v1135, 2147483648
        %v1206 = vsel %vm1204, %v1205, %v1203
        %v1207 = vrsqrt.pop %v1136
        %v1208 = vmul.f32 %v1207, %v1136
        %v1209 = vmul.f32 %v1208, %v1207
        %v1210 = vmul.f32 0.5, %v1209
        %v1211 = vsub.f32 1.5, %v1210
        %v1212 = vmul.f32 %v1207, %v1211
        %v1213 = vmul.f32 %v1136, %v1212
        %vm1214 = vcmp.eq.f32.partialorder %v1136, inf
        %v1215 = vsel %vm1214, %v1136, %v1213
        %vm1216 = vcmp.eq.f32.partialorder %v1136, 0.0
        %v1217 = vand.u32 %v1136, 2147483648
        %v1218 = vsel %vm1216, %v1217, %v1215
        %v1219 = vrsqrt.pop %v1137
        %v1220 = vmul.f32 %v1219, %v1137
        %v1221 = vmul.f32 %v1220, %v1219
        %v1222 = vmul.f32 0.5, %v1221
        %v1223 = vsub.f32 1.5, %v1222
        %v1224 = vmul.f32 %v1219, %v1223
        %v1225 = vmul.f32 %v1137, %v1224
        %vm1226 = vcmp.eq.f32.partialorder %v1137, inf
        %v1227 = vsel %vm1226, %v1137, %v1225
        %vm1228 = vcmp.eq.f32.partialorder %v1137, 0.0
        %v1229 = vand.u32 %v1137, 2147483648
        %v1230 = vsel %vm1228, %v1229, %v1227
        %v1231 = vrsqrt.pop %v1138
        %v1232 = vmul.f32 %v1231, %v1138
        %v1233 = vmul.f32 %v1232, %v1231
        %v1234 = vmul.f32 0.5, %v1233
        %v1235 = vsub.f32 1.5, %v1234
        %v1236 = vmul.f32 %v1231, %v1235
        %v1237 = vmul.f32 %v1138, %v1236
        %vm1238 = vcmp.eq.f32.partialorder %v1138, inf
        %v1239 = vsel %vm1238, %v1138, %v1237
        %vm1240 = vcmp.eq.f32.partialorder %v1138, 0.0
        %v1241 = vand.u32 %v1138, 2147483648
        %v1242 = vsel %vm1240, %v1241, %v1239
        %v1243 = vrsqrt.pop %v1139
        %v1244 = vmul.f32 %v1243, %v1139
        %v1245 = vmul.f32 %v1244, %v1243
        %v1246 = vmul.f32 0.5, %v1245
        %v1247 = vsub.f32 1.5, %v1246
        %v1248 = vmul.f32 %v1243, %v1247
        %v1249 = vmul.f32 %v1139, %v1248
        %vm1250 = vcmp.eq.f32.partialorder %v1139, inf
        %v1251 = vsel %vm1250, %v1139, %v1249
        %vm1252 = vcmp.eq.f32.partialorder %v1139, 0.0
        %v1253 = vand.u32 %v1139, 2147483648
        %v1254 = vsel %vm1252, %v1253, %v1251
        %v1255 = vrsqrt.pop %v1140
        %v1256 = vmul.f32 %v1255, %v1140
        %v1257 = vmul.f32 %v1256, %v1255
        %v1258 = vmul.f32 0.5, %v1257
        %v1259 = vsub.f32 1.5, %v1258
        %v1260 = vmul.f32 %v1255, %v1259
        %v1261 = vmul.f32 %v1140, %v1260
        %vm1262 = vcmp.eq.f32.partialorder %v1140, inf
        %v1263 = vsel %vm1262, %v1140, %v1261
        %vm1264 = vcmp.eq.f32.partialorder %v1140, 0.0
        %v1265 = vand.u32 %v1140, 2147483648
        %v1266 = vsel %vm1264, %v1265, %v1263
        %v1267 = vrsqrt.pop %v1141
        %v1268 = vmul.f32 %v1267, %v1141
        %v1269 = vmul.f32 %v1268, %v1267
        %v1270 = vmul.f32 0.5, %v1269
        %v1271 = vsub.f32 1.5, %v1270
        %v1272 = vmul.f32 %v1267, %v1271
        %v1273 = vmul.f32 %v1141, %v1272
        %vm1274 = vcmp.eq.f32.partialorder %v1141, inf
        %v1275 = vsel %vm1274, %v1141, %v1273
        %vm1276 = vcmp.eq.f32.partialorder %v1141, 0.0
        %v1277 = vand.u32 %v1141, 2147483648
        %v1278 = vsel %vm1276, %v1277, %v1275
        %v1279 = vrsqrt.pop %v1142
        %v1280 = vmul.f32 %v1279, %v1142
        %v1281 = vmul.f32 %v1280, %v1279
        %v1282 = vmul.f32 0.5, %v1281
        %v1283 = vsub.f32 1.5, %v1282
        %v1284 = vmul.f32 %v1279, %v1283
        %v1285 = vmul.f32 %v1142, %v1284
        %vm1286 = vcmp.eq.f32.partialorder %v1142, inf
        %v1287 = vsel %vm1286, %v1142, %v1285
        %vm1288 = vcmp.eq.f32.partialorder %v1142, 0.0
        %v1289 = vand.u32 %v1142, 2147483648
        %v1290 = vsel %vm1288, %v1289, %v1287
        %v1291 = vrsqrt.pop %v1143
        %v1292 = vmul.f32 %v1291, %v1143
        %v1293 = vmul.f32 %v1292, %v1291
        %v1294 = vmul.f32 0.5, %v1293
        %v1295 = vsub.f32 1.5, %v1294
        %v1296 = vmul.f32 %v1291, %v1295
        %v1297 = vmul.f32 %v1143, %v1296
        %vm1298 = vcmp.eq.f32.partialorder %v1143, inf
        %v1299 = vsel %vm1298, %v1143, %v1297
        %vm1300 = vcmp.eq.f32.partialorder %v1143, 0.0
        %v1301 = vand.u32 %v1143, 2147483648
        %v1302 = vsel %vm1300, %v1301, %v1299
        %v1303 = vrsqrt.pop %v1144
        %v1304 = vmul.f32 %v1303, %v1144
        %v1305 = vmul.f32 %v1304, %v1303
        %v1306 = vmul.f32 0.5, %v1305
        %v1307 = vsub.f32 1.5, %v1306
        %v1308 = vmul.f32 %v1303, %v1307
        %v1309 = vmul.f32 %v1144, %v1308
        %vm1310 = vcmp.eq.f32.partialorder %v1144, inf
        %v1311 = vsel %vm1310, %v1144, %v1309
        %vm1312 = vcmp.eq.f32.partialorder %v1144, 0.0
        %v1313 = vand.u32 %v1144, 2147483648
        %v1314 = vsel %vm1312, %v1313, %v1311
        %v1315 = vrsqrt.pop %v1145
        %v1316 = vmul.f32 %v1315, %v1145
        %v1317 = vmul.f32 %v1316, %v1315
        %v1318 = vmul.f32 0.5, %v1317
        %v1319 = vsub.f32 1.5, %v1318
        %v1320 = vmul.f32 %v1315, %v1319
        %v1321 = vmul.f32 %v1145, %v1320
        %vm1322 = vcmp.eq.f32.partialorder %v1145, inf
        %v1323 = vsel %vm1322, %v1145, %v1321
        %vm1324 = vcmp.eq.f32.partialorder %v1145, 0.0
        %v1325 = vand.u32 %v1145, 2147483648
        %v1326 = vsel %vm1324, %v1325, %v1323
        %v1327 = vrsqrt.pop %v1146
        %v1328 = vmul.f32 %v1327, %v1146
        %v1329 = vmul.f32 %v1328, %v1327
        %v1330 = vmul.f32 0.5, %v1329
        %v1331 = vsub.f32 1.5, %v1330
        %v1332 = vmul.f32 %v1327, %v1331
        %v1333 = vmul.f32 %v1146, %v1332
        %vm1334 = vcmp.eq.f32.partialorder %v1146, inf
        %v1335 = vsel %vm1334, %v1146, %v1333
        %vm1336 = vcmp.eq.f32.partialorder %v1146, 0.0
        %v1337 = vand.u32 %v1146, 2147483648
        %v1338 = vsel %vm1336, %v1337, %v1335
        %1355 = vrot.lane.b32.xlu0 %v1004, 127
        %v1356 = vpop.permute.xlu0 %1355
        %1357 = vrot.lane.b32.xlu0 %v1007, 127
        %v1358 = vpop.permute.xlu0 %1357
        %1359 = vrot.lane.b32.xlu0 %v1010, 127
        %v1360 = vpop.permute.xlu0 %1359
        %1361 = vrot.lane.b32.xlu0 %v1013, 127
        %v1362 = vpop.permute.xlu0 %1361
        %1363 = vrot.lane.b32.xlu0 %v1016, 127
        %v1364 = vpop.permute.xlu0 %1363
        %1365 = vrot.lane.b32.xlu0 %v1019, 127
        %v1366 = vpop.permute.xlu0 %1365
        %1367 = vrot.lane.b32.xlu0 %v1022, 127
        %v1368 = vpop.permute.xlu0 %1367
        %1369 = vrot.lane.b32.xlu0 %v1025, 127
        %v1370 = vpop.permute.xlu0 %1369
        %1371 = vrot.lane.b32.xlu0 %v1028, 127
        %v1372 = vpop.permute.xlu0 %1371
        %1373 = vrot.lane.b32.xlu0 %v1031, 127
        %v1374 = vpop.permute.xlu0 %1373
        %1375 = vrot.lane.b32.xlu0 %v1034, 127
        %v1376 = vpop.permute.xlu0 %1375
        %1377 = vrot.lane.b32.xlu0 %v1037, 127
        %v1378 = vpop.permute.xlu0 %1377
        %1379 = vrot.lane.b32.xlu0 %v1040, 127
        %v1380 = vpop.permute.xlu0 %1379
        %1381 = vrot.lane.b32.xlu0 %v1043, 127
        %v1382 = vpop.permute.xlu0 %1381
        %1383 = vrot.lane.b32.xlu0 %v1046, 127
        %v1384 = vpop.permute.xlu0 %1383
        %1385 = vrot.lane.b32.xlu0 %v1049, 127
        %v1386 = vpop.permute.xlu0 %1385
        %v1403 = vadd.f32 %v1004, %v1356
        %v1404 = vadd.f32 %v1007, %v1358
        %v1405 = vadd.f32 %v1010, %v1360
        %v1406 = vadd.f32 %v1013, %v1362
        %v1407 = vadd.f32 %v1016, %v1364
        %v1408 = vadd.f32 %v1019, %v1366
        %v1409 = vadd.f32 %v1022, %v1368
        %v1410 = vadd.f32 %v1025, %v1370
        %v1411 = vadd.f32 %v1028, %v1372
        %v1412 = vadd.f32 %v1031, %v1374
        %v1413 = vadd.f32 %v1034, %v1376
        %v1414 = vadd.f32 %v1037, %v1378
        %v1415 = vadd.f32 %v1040, %v1380
        %v1416 = vadd.f32 %v1043, %v1382
        %v1417 = vadd.f32 %v1046, %v1384
        %v1418 = vadd.f32 %v1049, %v1386
        %v1419 = vmul.f32 %v1403, 0.0625
        %v1420 = vmul.f32 %v1404, 0.0625
        %v1421 = vmul.f32 %v1405, 0.0625
        %v1422 = vmul.f32 %v1406, 0.0625
        %v1423 = vmul.f32 %v1407, 0.0625
        %v1424 = vmul.f32 %v1408, 0.0625
        %v1425 = vmul.f32 %v1409, 0.0625
        %v1426 = vmul.f32 %v1410, 0.0625
        %v1427 = vmul.f32 %v1411, 0.0625
        %v1428 = vmul.f32 %v1412, 0.0625
        %v1429 = vmul.f32 %v1413, 0.0625
        %v1430 = vmul.f32 %v1414, 0.0625
        %v1431 = vmul.f32 %v1415, 0.0625
        %v1432 = vmul.f32 %v1416, 0.0625
        %v1433 = vmul.f32 %v1417, 0.0625
        %v1434 = vmul.f32 %v1418, 0.0625
        %v1435 = vrsqrt.pop %v1419
        %v1436 = vmul.f32 %v1435, %v1419
        %v1437 = vmul.f32 %v1436, %v1435
        %v1438 = vmul.f32 0.5, %v1437
        %v1439 = vsub.f32 1.5, %v1438
        %v1440 = vmul.f32 %v1435, %v1439
        %v1441 = vmul.f32 %v1419, %v1440
        %vm1442 = vcmp.eq.f32.partialorder %v1419, inf
        %v1443 = vsel %vm1442, %v1419, %v1441
        %vm1444 = vcmp.eq.f32.partialorder %v1419, 0.0
        %v1445 = vand.u32 %v1419, 2147483648
        %v1446 = vsel %vm1444, %v1445, %v1443
        %v1447 = vrsqrt.pop %v1420
        %v1448 = vmul.f32 %v1447, %v1420
        %v1449 = vmul.f32 %v1448, %v1447
        %v1450 = vmul.f32 0.5, %v1449
        %v1451 = vsub.f32 1.5, %v1450
        %v1452 = vmul.f32 %v1447, %v1451
        %v1453 = vmul.f32 %v1420, %v1452
        %vm1454 = vcmp.eq.f32.partialorder %v1420, inf
        %v1455 = vsel %vm1454, %v1420, %v1453
        %vm1456 = vcmp.eq.f32.partialorder %v1420, 0.0
        %v1457 = vand.u32 %v1420, 2147483648
        %v1458 = vsel %vm1456, %v1457, %v1455
        %v1459 = vrsqrt.pop %v1421
        %v1460 = vmul.f32 %v1459, %v1421
        %v1461 = vmul.f32 %v1460, %v1459
        %v1462 = vmul.f32 0.5, %v1461
        %v1463 = vsub.f32 1.5, %v1462
        %v1464 = vmul.f32 %v1459, %v1463
        %v1465 = vmul.f32 %v1421, %v1464
        %vm1466 = vcmp.eq.f32.partialorder %v1421, inf
        %v1467 = vsel %vm1466, %v1421, %v1465
        %vm1468 = vcmp.eq.f32.partialorder %v1421, 0.0
        %v1469 = vand.u32 %v1421, 2147483648
        %v1470 = vsel %vm1468, %v1469, %v1467
        %v1471 = vrsqrt.pop %v1422
        %v1472 = vmul.f32 %v1471, %v1422
        %v1473 = vmul.f32 %v1472, %v1471
        %v1474 = vmul.f32 0.5, %v1473
        %v1475 = vsub.f32 1.5, %v1474
        %v1476 = vmul.f32 %v1471, %v1475
        %v1477 = vmul.f32 %v1422, %v1476
        %vm1478 = vcmp.eq.f32.partialorder %v1422, inf
        %v1479 = vsel %vm1478, %v1422, %v1477
        %vm1480 = vcmp.eq.f32.partialorder %v1422, 0.0
        %v1481 = vand.u32 %v1422, 2147483648
        %v1482 = vsel %vm1480, %v1481, %v1479
        %v1483 = vrsqrt.pop %v1423
        %v1484 = vmul.f32 %v1483, %v1423
        %v1485 = vmul.f32 %v1484, %v1483
        %v1486 = vmul.f32 0.5, %v1485
        %v1487 = vsub.f32 1.5, %v1486
        %v1488 = vmul.f32 %v1483, %v1487
        %v1489 = vmul.f32 %v1423, %v1488
        %vm1490 = vcmp.eq.f32.partialorder %v1423, inf
        %v1491 = vsel %vm1490, %v1423, %v1489
        %vm1492 = vcmp.eq.f32.partialorder %v1423, 0.0
        %v1493 = vand.u32 %v1423, 2147483648
        %v1494 = vsel %vm1492, %v1493, %v1491
        %v1495 = vrsqrt.pop %v1424
        %v1496 = vmul.f32 %v1495, %v1424
        %v1497 = vmul.f32 %v1496, %v1495
        %v1498 = vmul.f32 0.5, %v1497
        %v1499 = vsub.f32 1.5, %v1498
        %v1500 = vmul.f32 %v1495, %v1499
        %v1501 = vmul.f32 %v1424, %v1500
        %vm1502 = vcmp.eq.f32.partialorder %v1424, inf
        %v1503 = vsel %vm1502, %v1424, %v1501
        %vm1504 = vcmp.eq.f32.partialorder %v1424, 0.0
        %v1505 = vand.u32 %v1424, 2147483648
        %v1506 = vsel %vm1504, %v1505, %v1503
        %v1507 = vrsqrt.pop %v1425
        %v1508 = vmul.f32 %v1507, %v1425
        %v1509 = vmul.f32 %v1508, %v1507
        %v1510 = vmul.f32 0.5, %v1509
        %v1511 = vsub.f32 1.5, %v1510
        %v1512 = vmul.f32 %v1507, %v1511
        %v1513 = vmul.f32 %v1425, %v1512
        %vm1514 = vcmp.eq.f32.partialorder %v1425, inf
        %v1515 = vsel %vm1514, %v1425, %v1513
        %vm1516 = vcmp.eq.f32.partialorder %v1425, 0.0
        %v1517 = vand.u32 %v1425, 2147483648
        %v1518 = vsel %vm1516, %v1517, %v1515
        %v1519 = vrsqrt.pop %v1426
        %v1520 = vmul.f32 %v1519, %v1426
        %v1521 = vmul.f32 %v1520, %v1519
        %v1522 = vmul.f32 0.5, %v1521
        %v1523 = vsub.f32 1.5, %v1522
        %v1524 = vmul.f32 %v1519, %v1523
        %v1525 = vmul.f32 %v1426, %v1524
        %vm1526 = vcmp.eq.f32.partialorder %v1426, inf
        %v1527 = vsel %vm1526, %v1426, %v1525
        %vm1528 = vcmp.eq.f32.partialorder %v1426, 0.0
        %v1529 = vand.u32 %v1426, 2147483648
        %v1530 = vsel %vm1528, %v1529, %v1527
        %v1531 = vrsqrt.pop %v1427
        %v1532 = vmul.f32 %v1531, %v1427
        %v1533 = vmul.f32 %v1532, %v1531
        %v1534 = vmul.f32 0.5, %v1533
        %v1535 = vsub.f32 1.5, %v1534
        %v1536 = vmul.f32 %v1531, %v1535
        %v1537 = vmul.f32 %v1427, %v1536
        %vm1538 = vcmp.eq.f32.partialorder %v1427, inf
        %v1539 = vsel %vm1538, %v1427, %v1537
        %vm1540 = vcmp.eq.f32.partialorder %v1427, 0.0
        %v1541 = vand.u32 %v1427, 2147483648
        %v1542 = vsel %vm1540, %v1541, %v1539
        %v1543 = vrsqrt.pop %v1428
        %v1544 = vmul.f32 %v1543, %v1428
        %v1545 = vmul.f32 %v1544, %v1543
        %v1546 = vmul.f32 0.5, %v1545
        %v1547 = vsub.f32 1.5, %v1546
        %v1548 = vmul.f32 %v1543, %v1547
        %v1549 = vmul.f32 %v1428, %v1548
        %vm1550 = vcmp.eq.f32.partialorder %v1428, inf
        %v1551 = vsel %vm1550, %v1428, %v1549
        %vm1552 = vcmp.eq.f32.partialorder %v1428, 0.0
        %v1553 = vand.u32 %v1428, 2147483648
        %v1554 = vsel %vm1552, %v1553, %v1551
        %v1555 = vrsqrt.pop %v1429
        %v1556 = vmul.f32 %v1555, %v1429
        %v1557 = vmul.f32 %v1556, %v1555
        %v1558 = vmul.f32 0.5, %v1557
        %v1559 = vsub.f32 1.5, %v1558
        %v1560 = vmul.f32 %v1555, %v1559
        %v1561 = vmul.f32 %v1429, %v1560
        %vm1562 = vcmp.eq.f32.partialorder %v1429, inf
        %v1563 = vsel %vm1562, %v1429, %v1561
        %vm1564 = vcmp.eq.f32.partialorder %v1429, 0.0
        %v1565 = vand.u32 %v1429, 2147483648
        %v1566 = vsel %vm1564, %v1565, %v1563
        %v1567 = vrsqrt.pop %v1430
        %v1568 = vmul.f32 %v1567, %v1430
        %v1569 = vmul.f32 %v1568, %v1567
        %v1570 = vmul.f32 0.5, %v1569
        %v1571 = vsub.f32 1.5, %v1570
        %v1572 = vmul.f32 %v1567, %v1571
        %v1573 = vmul.f32 %v1430, %v1572
        %vm1574 = vcmp.eq.f32.partialorder %v1430, inf
        %v1575 = vsel %vm1574, %v1430, %v1573
        %vm1576 = vcmp.eq.f32.partialorder %v1430, 0.0
        %v1577 = vand.u32 %v1430, 2147483648
        %v1578 = vsel %vm1576, %v1577, %v1575
        %v1579 = vrsqrt.pop %v1431
        %v1580 = vmul.f32 %v1579, %v1431
        %v1581 = vmul.f32 %v1580, %v1579
        %v1582 = vmul.f32 0.5, %v1581
        %v1583 = vsub.f32 1.5, %v1582
        %v1584 = vmul.f32 %v1579, %v1583
        %v1585 = vmul.f32 %v1431, %v1584
        %vm1586 = vcmp.eq.f32.partialorder %v1431, inf
        %v1587 = vsel %vm1586, %v1431, %v1585
        %vm1588 = vcmp.eq.f32.partialorder %v1431, 0.0
        %v1589 = vand.u32 %v1431, 2147483648
        %v1590 = vsel %vm1588, %v1589, %v1587
        %v1591 = vrsqrt.pop %v1432
        %v1592 = vmul.f32 %v1591, %v1432
        %v1593 = vmul.f32 %v1592, %v1591
        %v1594 = vmul.f32 0.5, %v1593
        %v1595 = vsub.f32 1.5, %v1594
        %v1596 = vmul.f32 %v1591, %v1595
        %v1597 = vmul.f32 %v1432, %v1596
        %vm1598 = vcmp.eq.f32.partialorder %v1432, inf
        %v1599 = vsel %vm1598, %v1432, %v1597
        %vm1600 = vcmp.eq.f32.partialorder %v1432, 0.0
        %v1601 = vand.u32 %v1432, 2147483648
        %v1602 = vsel %vm1600, %v1601, %v1599
        %v1603 = vrsqrt.pop %v1433
        %v1604 = vmul.f32 %v1603, %v1433
        %v1605 = vmul.f32 %v1604, %v1603
        %v1606 = vmul.f32 0.5, %v1605
        %v1607 = vsub.f32 1.5, %v1606
        %v1608 = vmul.f32 %v1603, %v1607
        %v1609 = vmul.f32 %v1433, %v1608
        %vm1610 = vcmp.eq.f32.partialorder %v1433, inf
        %v1611 = vsel %vm1610, %v1433, %v1609
        %vm1612 = vcmp.eq.f32.partialorder %v1433, 0.0
        %v1613 = vand.u32 %v1433, 2147483648
        %v1614 = vsel %vm1612, %v1613, %v1611
        %v1615 = vrsqrt.pop %v1434
        %v1616 = vmul.f32 %v1615, %v1434
        %v1617 = vmul.f32 %v1616, %v1615
        %v1618 = vmul.f32 0.5, %v1617
        %v1619 = vsub.f32 1.5, %v1618
        %v1620 = vmul.f32 %v1615, %v1619
        %v1621 = vmul.f32 %v1434, %v1620
        %vm1622 = vcmp.eq.f32.partialorder %v1434, inf
        %v1623 = vsel %vm1622, %v1434, %v1621
        %vm1624 = vcmp.eq.f32.partialorder %v1434, 0.0
        %v1625 = vand.u32 %v1434, 2147483648
        %v1626 = vsel %vm1624, %v1625, %v1623
        %1643 = vrot.lane.b32.xlu0 %v1005, 127
        %v1644 = vpop.permute.xlu0 %1643
        %1645 = vrot.lane.b32.xlu0 %v1008, 127
        %v1646 = vpop.permute.xlu0 %1645
        %1647 = vrot.lane.b32.xlu0 %v1011, 127
        %v1648 = vpop.permute.xlu0 %1647
        %1649 = vrot.lane.b32.xlu0 %v1014, 127
        %v1650 = vpop.permute.xlu0 %1649
        %1651 = vrot.lane.b32.xlu0 %v1017, 127
        %v1652 = vpop.permute.xlu0 %1651
        %1653 = vrot.lane.b32.xlu0 %v1020, 127
        %v1654 = vpop.permute.xlu0 %1653
        %1655 = vrot.lane.b32.xlu0 %v1023, 127
        %v1656 = vpop.permute.xlu0 %1655
        %1657 = vrot.lane.b32.xlu0 %v1026, 127
        %v1658 = vpop.permute.xlu0 %1657
        %1659 = vrot.lane.b32.xlu0 %v1029, 127
        %v1660 = vpop.permute.xlu0 %1659
        %1661 = vrot.lane.b32.xlu0 %v1032, 127
        %v1662 = vpop.permute.xlu0 %1661
        %1663 = vrot.lane.b32.xlu0 %v1035, 127
        %v1664 = vpop.permute.xlu0 %1663
        %1665 = vrot.lane.b32.xlu0 %v1038, 127
        %v1666 = vpop.permute.xlu0 %1665
        %1667 = vrot.lane.b32.xlu0 %v1041, 127
        %v1668 = vpop.permute.xlu0 %1667
        %1669 = vrot.lane.b32.xlu0 %v1044, 127
        %v1670 = vpop.permute.xlu0 %1669
        %1671 = vrot.lane.b32.xlu0 %v1047, 127
        %v1672 = vpop.permute.xlu0 %1671
        %1673 = vrot.lane.b32.xlu0 %v1050, 127
        %v1674 = vpop.permute.xlu0 %1673
        %v1691 = vadd.f32 %v1005, %v1644
        %v1692 = vadd.f32 %v1008, %v1646
        %v1693 = vadd.f32 %v1011, %v1648
        %v1694 = vadd.f32 %v1014, %v1650
        %v1695 = vadd.f32 %v1017, %v1652
        %v1696 = vadd.f32 %v1020, %v1654
        %v1697 = vadd.f32 %v1023, %v1656
        %v1698 = vadd.f32 %v1026, %v1658
        %v1699 = vadd.f32 %v1029, %v1660
        %v1700 = vadd.f32 %v1032, %v1662
        %v1701 = vadd.f32 %v1035, %v1664
        %v1702 = vadd.f32 %v1038, %v1666
        %v1703 = vadd.f32 %v1041, %v1668
        %v1704 = vadd.f32 %v1044, %v1670
        %v1705 = vadd.f32 %v1047, %v1672
        %v1706 = vadd.f32 %v1050, %v1674
        %v1707 = vmul.f32 %v1691, 0.0625
        %v1708 = vmul.f32 %v1692, 0.0625
        %v1709 = vmul.f32 %v1693, 0.0625
        %v1710 = vmul.f32 %v1694, 0.0625
        %v1711 = vmul.f32 %v1695, 0.0625
        %v1712 = vmul.f32 %v1696, 0.0625
        %v1713 = vmul.f32 %v1697, 0.0625
        %v1714 = vmul.f32 %v1698, 0.0625
        %v1715 = vmul.f32 %v1699, 0.0625
        %v1716 = vmul.f32 %v1700, 0.0625
        %v1717 = vmul.f32 %v1701, 0.0625
        %v1718 = vmul.f32 %v1702, 0.0625
        %v1719 = vmul.f32 %v1703, 0.0625
        %v1720 = vmul.f32 %v1704, 0.0625
        %v1721 = vmul.f32 %v1705, 0.0625
        %v1722 = vmul.f32 %v1706, 0.0625
        %v1723 = vrsqrt.pop %v1707
        %v1724 = vmul.f32 %v1723, %v1707
        %v1725 = vmul.f32 %v1724, %v1723
        %v1726 = vmul.f32 0.5, %v1725
        %v1727 = vsub.f32 1.5, %v1726
        %v1728 = vmul.f32 %v1723, %v1727
        %v1729 = vmul.f32 %v1707, %v1728
        %vm1730 = vcmp.eq.f32.partialorder %v1707, inf
        %v1731 = vsel %vm1730, %v1707, %v1729
        %vm1732 = vcmp.eq.f32.partialorder %v1707, 0.0
        %v1733 = vand.u32 %v1707, 2147483648
        %v1734 = vsel %vm1732, %v1733, %v1731
        %v1735 = vrsqrt.pop %v1708
        %v1736 = vmul.f32 %v1735, %v1708
        %v1737 = vmul.f32 %v1736, %v1735
        %v1738 = vmul.f32 0.5, %v1737
        %v1739 = vsub.f32 1.5, %v1738
        %v1740 = vmul.f32 %v1735, %v1739
        %v1741 = vmul.f32 %v1708, %v1740
        %vm1742 = vcmp.eq.f32.partialorder %v1708, inf
        %v1743 = vsel %vm1742, %v1708, %v1741
        %vm1744 = vcmp.eq.f32.partialorder %v1708, 0.0
        %v1745 = vand.u32 %v1708, 2147483648
        %v1746 = vsel %vm1744, %v1745, %v1743
        %v1747 = vrsqrt.pop %v1709
        %v1748 = vmul.f32 %v1747, %v1709
        %v1749 = vmul.f32 %v1748, %v1747
        %v1750 = vmul.f32 0.5, %v1749
        %v1751 = vsub.f32 1.5, %v1750
        %v1752 = vmul.f32 %v1747, %v1751
        %v1753 = vmul.f32 %v1709, %v1752
        %vm1754 = vcmp.eq.f32.partialorder %v1709, inf
        %v1755 = vsel %vm1754, %v1709, %v1753
        %vm1756 = vcmp.eq.f32.partialorder %v1709, 0.0
        %v1757 = vand.u32 %v1709, 2147483648
        %v1758 = vsel %vm1756, %v1757, %v1755
        %v1759 = vrsqrt.pop %v1710
        %v1760 = vmul.f32 %v1759, %v1710
        %v1761 = vmul.f32 %v1760, %v1759
        %v1762 = vmul.f32 0.5, %v1761
        %v1763 = vsub.f32 1.5, %v1762
        %v1764 = vmul.f32 %v1759, %v1763
        %v1765 = vmul.f32 %v1710, %v1764
        %vm1766 = vcmp.eq.f32.partialorder %v1710, inf
        %v1767 = vsel %vm1766, %v1710, %v1765
        %vm1768 = vcmp.eq.f32.partialorder %v1710, 0.0
        %v1769 = vand.u32 %v1710, 2147483648
        %v1770 = vsel %vm1768, %v1769, %v1767
        %v1771 = vrsqrt.pop %v1711
        %v1772 = vmul.f32 %v1771, %v1711
        %v1773 = vmul.f32 %v1772, %v1771
        %v1774 = vmul.f32 0.5, %v1773
        %v1775 = vsub.f32 1.5, %v1774
        %v1776 = vmul.f32 %v1771, %v1775
        %v1777 = vmul.f32 %v1711, %v1776
        %vm1778 = vcmp.eq.f32.partialorder %v1711, inf
        %v1779 = vsel %vm1778, %v1711, %v1777
        %vm1780 = vcmp.eq.f32.partialorder %v1711, 0.0
        %v1781 = vand.u32 %v1711, 2147483648
        %v1782 = vsel %vm1780, %v1781, %v1779
        %v1783 = vrsqrt.pop %v1712
        %v1784 = vmul.f32 %v1783, %v1712
        %v1785 = vmul.f32 %v1784, %v1783
        %v1786 = vmul.f32 0.5, %v1785
        %v1787 = vsub.f32 1.5, %v1786
        %v1788 = vmul.f32 %v1783, %v1787
        %v1789 = vmul.f32 %v1712, %v1788
        %vm1790 = vcmp.eq.f32.partialorder %v1712, inf
        %v1791 = vsel %vm1790, %v1712, %v1789
        %vm1792 = vcmp.eq.f32.partialorder %v1712, 0.0
        %v1793 = vand.u32 %v1712, 2147483648
        %v1794 = vsel %vm1792, %v1793, %v1791
        %v1795 = vrsqrt.pop %v1713
        %v1796 = vmul.f32 %v1795, %v1713
        %v1797 = vmul.f32 %v1796, %v1795
        %v1798 = vmul.f32 0.5, %v1797
        %v1799 = vsub.f32 1.5, %v1798
        %v1800 = vmul.f32 %v1795, %v1799
        %v1801 = vmul.f32 %v1713, %v1800
        %vm1802 = vcmp.eq.f32.partialorder %v1713, inf
        %v1803 = vsel %vm1802, %v1713, %v1801
        %vm1804 = vcmp.eq.f32.partialorder %v1713, 0.0
        %v1805 = vand.u32 %v1713, 2147483648
        %v1806 = vsel %vm1804, %v1805, %v1803
        %v1807 = vrsqrt.pop %v1714
        %v1808 = vmul.f32 %v1807, %v1714
        %v1809 = vmul.f32 %v1808, %v1807
        %v1810 = vmul.f32 0.5, %v1809
        %v1811 = vsub.f32 1.5, %v1810
        %v1812 = vmul.f32 %v1807, %v1811
        %v1813 = vmul.f32 %v1714, %v1812
        %vm1814 = vcmp.eq.f32.partialorder %v1714, inf
        %v1815 = vsel %vm1814, %v1714, %v1813
        %vm1816 = vcmp.eq.f32.partialorder %v1714, 0.0
        %v1817 = vand.u32 %v1714, 2147483648
        %v1818 = vsel %vm1816, %v1817, %v1815
        %v1819 = vrsqrt.pop %v1715
        %v1820 = vmul.f32 %v1819, %v1715
        %v1821 = vmul.f32 %v1820, %v1819
        %v1822 = vmul.f32 0.5, %v1821
        %v1823 = vsub.f32 1.5, %v1822
        %v1824 = vmul.f32 %v1819, %v1823
        %v1825 = vmul.f32 %v1715, %v1824
        %vm1826 = vcmp.eq.f32.partialorder %v1715, inf
        %v1827 = vsel %vm1826, %v1715, %v1825
        %vm1828 = vcmp.eq.f32.partialorder %v1715, 0.0
        %v1829 = vand.u32 %v1715, 2147483648
        %v1830 = vsel %vm1828, %v1829, %v1827
        %v1831 = vrsqrt.pop %v1716
        %v1832 = vmul.f32 %v1831, %v1716
        %v1833 = vmul.f32 %v1832, %v1831
        %v1834 = vmul.f32 0.5, %v1833
        %v1835 = vsub.f32 1.5, %v1834
        %v1836 = vmul.f32 %v1831, %v1835
        %v1837 = vmul.f32 %v1716, %v1836
        %vm1838 = vcmp.eq.f32.partialorder %v1716, inf
        %v1839 = vsel %vm1838, %v1716, %v1837
        %vm1840 = vcmp.eq.f32.partialorder %v1716, 0.0
        %v1841 = vand.u32 %v1716, 2147483648
        %v1842 = vsel %vm1840, %v1841, %v1839
        %v1843 = vrsqrt.pop %v1717
        %v1844 = vmul.f32 %v1843, %v1717
        %v1845 = vmul.f32 %v1844, %v1843
        %v1846 = vmul.f32 0.5, %v1845
        %v1847 = vsub.f32 1.5, %v1846
        %v1848 = vmul.f32 %v1843, %v1847
        %v1849 = vmul.f32 %v1717, %v1848
        %vm1850 = vcmp.eq.f32.partialorder %v1717, inf
        %v1851 = vsel %vm1850, %v1717, %v1849
        %vm1852 = vcmp.eq.f32.partialorder %v1717, 0.0
        %v1853 = vand.u32 %v1717, 2147483648
        %v1854 = vsel %vm1852, %v1853, %v1851
        %v1855 = vrsqrt.pop %v1718
        %v1856 = vmul.f32 %v1855, %v1718
        %v1857 = vmul.f32 %v1856, %v1855
        %v1858 = vmul.f32 0.5, %v1857
        %v1859 = vsub.f32 1.5, %v1858
        %v1860 = vmul.f32 %v1855, %v1859
        %v1861 = vmul.f32 %v1718, %v1860
        %vm1862 = vcmp.eq.f32.partialorder %v1718, inf
        %v1863 = vsel %vm1862, %v1718, %v1861
        %vm1864 = vcmp.eq.f32.partialorder %v1718, 0.0
        %v1865 = vand.u32 %v1718, 2147483648
        %v1866 = vsel %vm1864, %v1865, %v1863
        %v1867 = vrsqrt.pop %v1719
        %v1868 = vmul.f32 %v1867, %v1719
        %v1869 = vmul.f32 %v1868, %v1867
        %v1870 = vmul.f32 0.5, %v1869
        %v1871 = vsub.f32 1.5, %v1870
        %v1872 = vmul.f32 %v1867, %v1871
        %v1873 = vmul.f32 %v1719, %v1872
        %vm1874 = vcmp.eq.f32.partialorder %v1719, inf
        %v1875 = vsel %vm1874, %v1719, %v1873
        %vm1876 = vcmp.eq.f32.partialorder %v1719, 0.0
        %v1877 = vand.u32 %v1719, 2147483648
        %v1878 = vsel %vm1876, %v1877, %v1875
        %v1879 = vrsqrt.pop %v1720
        %v1880 = vmul.f32 %v1879, %v1720
        %v1881 = vmul.f32 %v1880, %v1879
        %v1882 = vmul.f32 0.5, %v1881
        %v1883 = vsub.f32 1.5, %v1882
        %v1884 = vmul.f32 %v1879, %v1883
        %v1885 = vmul.f32 %v1720, %v1884
        %vm1886 = vcmp.eq.f32.partialorder %v1720, inf
        %v1887 = vsel %vm1886, %v1720, %v1885
        %vm1888 = vcmp.eq.f32.partialorder %v1720, 0.0
        %v1889 = vand.u32 %v1720, 2147483648
        %v1890 = vsel %vm1888, %v1889, %v1887
        %v1891 = vrsqrt.pop %v1721
        %v1892 = vmul.f32 %v1891, %v1721
        %v1893 = vmul.f32 %v1892, %v1891
        %v1894 = vmul.f32 0.5, %v1893
        %v1895 = vsub.f32 1.5, %v1894
        %v1896 = vmul.f32 %v1891, %v1895
        %v1897 = vmul.f32 %v1721, %v1896
        %vm1898 = vcmp.eq.f32.partialorder %v1721, inf
        %v1899 = vsel %vm1898, %v1721, %v1897
        %vm1900 = vcmp.eq.f32.partialorder %v1721, 0.0
        %v1901 = vand.u32 %v1721, 2147483648
        %v1902 = vsel %vm1900, %v1901, %v1899
        %v1903 = vrsqrt.pop %v1722
        %v1904 = vmul.f32 %v1903, %v1722
        %v1905 = vmul.f32 %v1904, %v1903
        %v1906 = vmul.f32 0.5, %v1905
        %v1907 = vsub.f32 1.5, %v1906
        %v1908 = vmul.f32 %v1903, %v1907
        %v1909 = vmul.f32 %v1722, %v1908
        %vm1910 = vcmp.eq.f32.partialorder %v1722, inf
        %v1911 = vsel %vm1910, %v1722, %v1909
        %vm1912 = vcmp.eq.f32.partialorder %v1722, 0.0
        %v1913 = vand.u32 %v1722, 2147483648
        %v1914 = vsel %vm1912, %v1913, %v1911
        %v1915 = vsel %vm286, 1, 0
        %v1916 = vperm.slane %v1915, 0
        %v1917 = vperm.slane %v1915, 1
        %v1918 = vperm.slane %v1915, 2
        %vm1919 = vcmp.eq.s32.totalorder %v1916, 1
        %vm1920 = vcmp.eq.s32.totalorder %v1917, 1
        %vm1921 = vcmp.eq.s32.totalorder %v1918, 1
        %1923 = vset.pattern.permute.xlu0 4
        %1924 = vperm.xlu0 %1923, %v1446
        %v1925 = vpop.permute.xlu0 %1924
        %1928 = vset.pattern.permute.xlu0 4
        %1929 = vperm.xlu0 %1928, %v1458
        %v1930 = vpop.permute.xlu0 %1929
        %1933 = vset.pattern.permute.xlu0 4
        %1934 = vperm.xlu0 %1933, %v1470
        %v1935 = vpop.permute.xlu0 %1934
        %1938 = vset.pattern.permute.xlu0 4
        %1939 = vperm.xlu0 %1938, %v1482
        %v1940 = vpop.permute.xlu0 %1939
        %1943 = vset.pattern.permute.xlu0 4
        %1944 = vperm.xlu0 %1943, %v1494
        %v1945 = vpop.permute.xlu0 %1944
        %1948 = vset.pattern.permute.xlu0 4
        %1949 = vperm.xlu0 %1948, %v1506
        %v1950 = vpop.permute.xlu0 %1949
        %1953 = vset.pattern.permute.xlu0 4
        %1954 = vperm.xlu0 %1953, %v1518
        %v1955 = vpop.permute.xlu0 %1954
        %1958 = vset.pattern.permute.xlu0 4
        %1959 = vperm.xlu0 %1958, %v1530
        %v1960 = vpop.permute.xlu0 %1959
        %1963 = vset.pattern.permute.xlu0 4
        %1964 = vperm.xlu0 %1963, %v1542
        %v1965 = vpop.permute.xlu0 %1964
        %1968 = vset.pattern.permute.xlu0 4
        %1969 = vperm.xlu0 %1968, %v1554
        %v1970 = vpop.permute.xlu0 %1969
        %1973 = vset.pattern.permute.xlu0 4
        %1974 = vperm.xlu0 %1973, %v1566
        %v1975 = vpop.permute.xlu0 %1974
        %1978 = vset.pattern.permute.xlu0 4
        %1979 = vperm.xlu0 %1978, %v1578
        %v1980 = vpop.permute.xlu0 %1979
        %1983 = vset.pattern.permute.xlu0 4
        %1984 = vperm.xlu0 %1983, %v1590
        %v1985 = vpop.permute.xlu0 %1984
        %1988 = vset.pattern.permute.xlu0 4
        %1989 = vperm.xlu0 %1988, %v1602
        %v1990 = vpop.permute.xlu0 %1989
        %1993 = vset.pattern.permute.xlu0 4
        %1994 = vperm.xlu0 %1993, %v1614
        %v1995 = vpop.permute.xlu0 %1994
        %1998 = vset.pattern.permute.xlu0 4
        %1999 = vperm.xlu0 %1998, %v1626
        %v2000 = vpop.permute.xlu0 %1999
        %2003 = vset.pattern.permute.xlu0 4
        %2004 = vperm.xlu0 %2003, %v1734
        %v2005 = vpop.permute.xlu0 %2004
        %2008 = vset.pattern.permute.xlu0 4
        %2009 = vperm.xlu0 %2008, %v1746
        %v2010 = vpop.permute.xlu0 %2009
        %2013 = vset.pattern.permute.xlu0 4
        %2014 = vperm.xlu0 %2013, %v1758
        %v2015 = vpop.permute.xlu0 %2014
        %2018 = vset.pattern.permute.xlu0 4
        %2019 = vperm.xlu0 %2018, %v1770
        %v2020 = vpop.permute.xlu0 %2019
        %2023 = vset.pattern.permute.xlu0 4
        %2024 = vperm.xlu0 %2023, %v1782
        %v2025 = vpop.permute.xlu0 %2024
        %2028 = vset.pattern.permute.xlu0 4
        %2029 = vperm.xlu0 %2028, %v1794
        %v2030 = vpop.permute.xlu0 %2029
        %2033 = vset.pattern.permute.xlu0 4
        %2034 = vperm.xlu0 %2033, %v1806
        %v2035 = vpop.permute.xlu0 %2034
        %2038 = vset.pattern.permute.xlu0 4
        %2039 = vperm.xlu0 %2038, %v1818
        %v2040 = vpop.permute.xlu0 %2039
        %2043 = vset.pattern.permute.xlu0 4
        %2044 = vperm.xlu0 %2043, %v1830
        %v2045 = vpop.permute.xlu0 %2044
        %2048 = vset.pattern.permute.xlu0 4
        %2049 = vperm.xlu0 %2048, %v1842
        %v2050 = vpop.permute.xlu0 %2049
        %2053 = vset.pattern.permute.xlu0 4
        %2054 = vperm.xlu0 %2053, %v1854
        %v2055 = vpop.permute.xlu0 %2054
        %2058 = vset.pattern.permute.xlu0 4
        %2059 = vperm.xlu0 %2058, %v1866
        %v2060 = vpop.permute.xlu0 %2059
        %2063 = vset.pattern.permute.xlu0 4
        %2064 = vperm.xlu0 %2063, %v1878
        %v2065 = vpop.permute.xlu0 %2064
        %2068 = vset.pattern.permute.xlu0 4
        %2069 = vperm.xlu0 %2068, %v1890
        %v2070 = vpop.permute.xlu0 %2069
        %2073 = vset.pattern.permute.xlu0 4
        %2074 = vperm.xlu0 %2073, %v1902
        %v2075 = vpop.permute.xlu0 %2074
        %2078 = vset.pattern.permute.xlu0 4
        %2079 = vperm.xlu0 %2078, %v1914
        %v2080 = vpop.permute.xlu0 %2079
        %v2082 = vsel %vm1919, %v1925, %v2005
        %v2083 = vsel %vm1920, %v1925, %v2005
        %v2084 = vsel %vm1921, %v1925, %v2005
        %v2085 = vsel %vm1919, %v1930, %v2010
        %v2086 = vsel %vm1920, %v1930, %v2010
        %v2087 = vsel %vm1921, %v1930, %v2010
        %v2088 = vsel %vm1919, %v1935, %v2015
        %v2089 = vsel %vm1920, %v1935, %v2015
        %v2090 = vsel %vm1921, %v1935, %v2015
        %v2091 = vsel %vm1919, %v1940, %v2020
        %v2092 = vsel %vm1920, %v1940, %v2020
        %v2093 = vsel %vm1921, %v1940, %v2020
        %v2094 = vsel %vm1919, %v1945, %v2025
        %v2095 = vsel %vm1920, %v1945, %v2025
        %v2096 = vsel %vm1921, %v1945, %v2025
        %v2097 = vsel %vm1919, %v1950, %v2030
        %v2098 = vsel %vm1920, %v1950, %v2030
        %v2099 = vsel %vm1921, %v1950, %v2030
        %v2100 = vsel %vm1919, %v1955, %v2035
        %v2101 = vsel %vm1920, %v1955, %v2035
        %v2102 = vsel %vm1921, %v1955, %v2035
        %v2103 = vsel %vm1919, %v1960, %v2040
        %v2104 = vsel %vm1920, %v1960, %v2040
        %v2105 = vsel %vm1921, %v1960, %v2040
        %v2106 = vsel %vm1919, %v1965, %v2045
        %v2107 = vsel %vm1920, %v1965, %v2045
        %v2108 = vsel %vm1921, %v1965, %v2045
        %v2109 = vsel %vm1919, %v1970, %v2050
        %v2110 = vsel %vm1920, %v1970, %v2050
        %v2111 = vsel %vm1921, %v1970, %v2050
        %v2112 = vsel %vm1919, %v1975, %v2055
        %v2113 = vsel %vm1920, %v1975, %v2055
        %v2114 = vsel %vm1921, %v1975, %v2055
        %v2115 = vsel %vm1919, %v1980, %v2060
        %v2116 = vsel %vm1920, %v1980, %v2060
        %v2117 = vsel %vm1921, %v1980, %v2060
        %v2118 = vsel %vm1919, %v1985, %v2065
        %v2119 = vsel %vm1920, %v1985, %v2065
        %v2120 = vsel %vm1921, %v1985, %v2065
        %v2121 = vsel %vm1919, %v1990, %v2070
        %v2122 = vsel %vm1920, %v1990, %v2070
        %v2123 = vsel %vm1921, %v1990, %v2070
        %v2124 = vsel %vm1919, %v1995, %v2075
        %v2125 = vsel %vm1920, %v1995, %v2075
        %v2126 = vsel %vm1921, %v1995, %v2075
        %v2127 = vsel %vm1919, %v2000, %v2080
        %v2128 = vsel %vm1920, %v2000, %v2080
        %v2129 = vsel %vm1921, %v2000, %v2080
        %v2130 = vsel %vm283, 1, 0
        %v2131 = vperm.slane %v2130, 0
        %v2132 = vperm.slane %v2130, 1
        %v2133 = vperm.slane %v2130, 2
        %vm2134 = vcmp.eq.s32.totalorder %v2131, 1
        %vm2135 = vcmp.eq.s32.totalorder %v2132, 1
        %vm2136 = vcmp.eq.s32.totalorder %v2133, 1
        %2138 = vset.pattern.permute.xlu0 4
        %2139 = vperm.xlu0 %2138, %v1158
        %v2140 = vpop.permute.xlu0 %2139
        %2143 = vset.pattern.permute.xlu0 4
        %2144 = vperm.xlu0 %2143, %v1170
        %v2145 = vpop.permute.xlu0 %2144
        %2148 = vset.pattern.permute.xlu0 4
        %2149 = vperm.xlu0 %2148, %v1182
        %v2150 = vpop.permute.xlu0 %2149
        %2153 = vset.pattern.permute.xlu0 4
        %2154 = vperm.xlu0 %2153, %v1194
        %v2155 = vpop.permute.xlu0 %2154
        %2158 = vset.pattern.permute.xlu0 4
        %2159 = vperm.xlu0 %2158, %v1206
        %v2160 = vpop.permute.xlu0 %2159
        %2163 = vset.pattern.permute.xlu0 4
        %2164 = vperm.xlu0 %2163, %v1218
        %v2165 = vpop.permute.xlu0 %2164
        %2168 = vset.pattern.permute.xlu0 4
        %2169 = vperm.xlu0 %2168, %v1230
        %v2170 = vpop.permute.xlu0 %2169
        %2173 = vset.pattern.permute.xlu0 4
        %2174 = vperm.xlu0 %2173, %v1242
        %v2175 = vpop.permute.xlu0 %2174
        %2178 = vset.pattern.permute.xlu0 4
        %2179 = vperm.xlu0 %2178, %v1254
        %v2180 = vpop.permute.xlu0 %2179
        %2183 = vset.pattern.permute.xlu0 4
        %2184 = vperm.xlu0 %2183, %v1266
        %v2185 = vpop.permute.xlu0 %2184
        %2188 = vset.pattern.permute.xlu0 4
        %2189 = vperm.xlu0 %2188, %v1278
        %v2190 = vpop.permute.xlu0 %2189
        %2193 = vset.pattern.permute.xlu0 4
        %2194 = vperm.xlu0 %2193, %v1290
        %v2195 = vpop.permute.xlu0 %2194
        %2198 = vset.pattern.permute.xlu0 4
        %2199 = vperm.xlu0 %2198, %v1302
        %v2200 = vpop.permute.xlu0 %2199
        %2203 = vset.pattern.permute.xlu0 4
        %2204 = vperm.xlu0 %2203, %v1314
        %v2205 = vpop.permute.xlu0 %2204
        %2208 = vset.pattern.permute.xlu0 4
        %2209 = vperm.xlu0 %2208, %v1326
        %v2210 = vpop.permute.xlu0 %2209
        %2213 = vset.pattern.permute.xlu0 4
        %2214 = vperm.xlu0 %2213, %v1338
        %v2215 = vpop.permute.xlu0 %2214
        %v2217 = vsel %vm2134, %v2140, %v2082
        %v2218 = vsel %vm2135, %v2140, %v2083
        %v2219 = vsel %vm2136, %v2140, %v2084
        %v2220 = vsel %vm2134, %v2145, %v2085
        %v2221 = vsel %vm2135, %v2145, %v2086
        %v2222 = vsel %vm2136, %v2145, %v2087
        %v2223 = vsel %vm2134, %v2150, %v2088
        %v2224 = vsel %vm2135, %v2150, %v2089
        %v2225 = vsel %vm2136, %v2150, %v2090
        %v2226 = vsel %vm2134, %v2155, %v2091
        %v2227 = vsel %vm2135, %v2155, %v2092
        %v2228 = vsel %vm2136, %v2155, %v2093
        %v2229 = vsel %vm2134, %v2160, %v2094
        %v2230 = vsel %vm2135, %v2160, %v2095
        %v2231 = vsel %vm2136, %v2160, %v2096
        %v2232 = vsel %vm2134, %v2165, %v2097
        %v2233 = vsel %vm2135, %v2165, %v2098
        %v2234 = vsel %vm2136, %v2165, %v2099
        %v2235 = vsel %vm2134, %v2170, %v2100
        %v2236 = vsel %vm2135, %v2170, %v2101
        %v2237 = vsel %vm2136, %v2170, %v2102
        %v2238 = vsel %vm2134, %v2175, %v2103
        %v2239 = vsel %vm2135, %v2175, %v2104
        %v2240 = vsel %vm2136, %v2175, %v2105
        %v2241 = vsel %vm2134, %v2180, %v2106
        %v2242 = vsel %vm2135, %v2180, %v2107
        %v2243 = vsel %vm2136, %v2180, %v2108
        %v2244 = vsel %vm2134, %v2185, %v2109
        %v2245 = vsel %vm2135, %v2185, %v2110
        %v2246 = vsel %vm2136, %v2185, %v2111
        %v2247 = vsel %vm2134, %v2190, %v2112
        %v2248 = vsel %vm2135, %v2190, %v2113
        %v2249 = vsel %vm2136, %v2190, %v2114
        %v2250 = vsel %vm2134, %v2195, %v2115
        %v2251 = vsel %vm2135, %v2195, %v2116
        %v2252 = vsel %vm2136, %v2195, %v2117
        %v2253 = vsel %vm2134, %v2200, %v2118
        %v2254 = vsel %vm2135, %v2200, %v2119
        %v2255 = vsel %vm2136, %v2200, %v2120
        %v2256 = vsel %vm2134, %v2205, %v2121
        %v2257 = vsel %vm2135, %v2205, %v2122
        %v2258 = vsel %vm2136, %v2205, %v2123
        %v2259 = vsel %vm2134, %v2210, %v2124
        %v2260 = vsel %vm2135, %v2210, %v2125
        %v2261 = vsel %vm2136, %v2210, %v2126
        %v2262 = vsel %vm2134, %v2215, %v2127
        %v2263 = vsel %vm2135, %v2215, %v2128
        %v2264 = vsel %vm2136, %v2215, %v2129
        %v2265 = vxor.u32 %v380, 2147483648
        %v2266 = vxor.u32 %v445, 2147483648
        %v2267 = vxor.u32 %v510, 2147483648
        %v2268 = vxor.u32 %v383, 2147483648
        %v2269 = vxor.u32 %v448, 2147483648
        %v2270 = vxor.u32 %v513, 2147483648
        %v2271 = vxor.u32 %v386, 2147483648
        %v2272 = vxor.u32 %v451, 2147483648
        %v2273 = vxor.u32 %v516, 2147483648
        %v2274 = vxor.u32 %v389, 2147483648
        %v2275 = vxor.u32 %v454, 2147483648
        %v2276 = vxor.u32 %v519, 2147483648
        %v2277 = vxor.u32 %v392, 2147483648
        %v2278 = vxor.u32 %v457, 2147483648
        %v2279 = vxor.u32 %v522, 2147483648
        %v2280 = vxor.u32 %v395, 2147483648
        %v2281 = vxor.u32 %v460, 2147483648
        %v2282 = vxor.u32 %v525, 2147483648
        %v2283 = vxor.u32 %v398, 2147483648
        %v2284 = vxor.u32 %v463, 2147483648
        %v2285 = vxor.u32 %v528, 2147483648
        %v2286 = vxor.u32 %v401, 2147483648
        %v2287 = vxor.u32 %v466, 2147483648
        %v2288 = vxor.u32 %v531, 2147483648
        %v2289 = vxor.u32 %v404, 2147483648
        %v2290 = vxor.u32 %v469, 2147483648
        %v2291 = vxor.u32 %v534, 2147483648
        %v2292 = vxor.u32 %v407, 2147483648
        %v2293 = vxor.u32 %v472, 2147483648
        %v2294 = vxor.u32 %v537, 2147483648
        %v2295 = vxor.u32 %v410, 2147483648
        %v2296 = vxor.u32 %v475, 2147483648
        %v2297 = vxor.u32 %v540, 2147483648
        %v2298 = vxor.u32 %v413, 2147483648
        %v2299 = vxor.u32 %v478, 2147483648
        %v2300 = vxor.u32 %v543, 2147483648
        %v2301 = vxor.u32 %v416, 2147483648
        %v2302 = vxor.u32 %v481, 2147483648
        %v2303 = vxor.u32 %v546, 2147483648
        %v2304 = vxor.u32 %v419, 2147483648
        %v2305 = vxor.u32 %v484, 2147483648
        %v2306 = vxor.u32 %v549, 2147483648
        %v2307 = vxor.u32 %v422, 2147483648
        %v2308 = vxor.u32 %v487, 2147483648
        %v2309 = vxor.u32 %v552, 2147483648
        %v2310 = vxor.u32 %v425, 2147483648
        %v2311 = vxor.u32 %v490, 2147483648
        %v2312 = vxor.u32 %v555, 2147483648
        %v2313 = vmul.f32 %v2265, 1.442695
        %v2314 = vpow.pop %v2313
        %v2315 = vmul.f32 %v2266, 1.442695
        %v2316 = vpow.pop %v2315
        %v2317 = vmul.f32 %v2267, 1.442695
        %v2318 = vpow.pop %v2317
        %v2319 = vmul.f32 %v2268, 1.442695
        %v2320 = vpow.pop %v2319
        %v2321 = vmul.f32 %v2269, 1.442695
        %v2322 = vpow.pop %v2321
        %v2323 = vmul.f32 %v2270, 1.442695
        %v2324 = vpow.pop %v2323
        %v2325 = vmul.f32 %v2271, 1.442695
        %v2326 = vpow.pop %v2325
        %v2327 = vmul.f32 %v2272, 1.442695
        %v2328 = vpow.pop %v2327
        %v2329 = vmul.f32 %v2273, 1.442695
        %v2330 = vpow.pop %v2329
        %v2331 = vmul.f32 %v2274, 1.442695
        %v2332 = vpow.pop %v2331
        %v2333 = vmul.f32 %v2275, 1.442695
        %v2334 = vpow.pop %v2333
        %v2335 = vmul.f32 %v2276, 1.442695
        %v2336 = vpow.pop %v2335
        %v2337 = vmul.f32 %v2277, 1.442695
        %v2338 = vpow.pop %v2337
        %v2339 = vmul.f32 %v2278, 1.442695
        %v2340 = vpow.pop %v2339
        %v2341 = vmul.f32 %v2279, 1.442695
        %v2342 = vpow.pop %v2341
        %v2343 = vmul.f32 %v2280, 1.442695
        %v2344 = vpow.pop %v2343
        %v2345 = vmul.f32 %v2281, 1.442695
        %v2346 = vpow.pop %v2345
        %v2347 = vmul.f32 %v2282, 1.442695
        %v2348 = vpow.pop %v2347
        %v2349 = vmul.f32 %v2283, 1.442695
        %v2350 = vpow.pop %v2349
        %v2351 = vmul.f32 %v2284, 1.442695
        %v2352 = vpow.pop %v2351
        %v2353 = vmul.f32 %v2285, 1.442695
        %v2354 = vpow.pop %v2353
        %v2355 = vmul.f32 %v2286, 1.442695
        %v2356 = vpow.pop %v2355
        %v2357 = vmul.f32 %v2287, 1.442695
        %v2358 = vpow.pop %v2357
        %v2359 = vmul.f32 %v2288, 1.442695
        %v2360 = vpow.pop %v2359
        %v2361 = vmul.f32 %v2289, 1.442695
        %v2362 = vpow.pop %v2361
        %v2363 = vmul.f32 %v2290, 1.442695
        %v2364 = vpow.pop %v2363
        %v2365 = vmul.f32 %v2291, 1.442695
        %v2366 = vpow.pop %v2365
        %v2367 = vmul.f32 %v2292, 1.442695
        %v2368 = vpow.pop %v2367
        %v2369 = vmul.f32 %v2293, 1.442695
        %v2370 = vpow.pop %v2369
        %v2371 = vmul.f32 %v2294, 1.442695
        %v2372 = vpow.pop %v2371
        %v2373 = vmul.f32 %v2295, 1.442695
        %v2374 = vpow.pop %v2373
        %v2375 = vmul.f32 %v2296, 1.442695
        %v2376 = vpow.pop %v2375
        %v2377 = vmul.f32 %v2297, 1.442695
        %v2378 = vpow.pop %v2377
        %v2379 = vmul.f32 %v2298, 1.442695
        %v2380 = vpow.pop %v2379
        %v2381 = vmul.f32 %v2299, 1.442695
        %v2382 = vpow.pop %v2381
        %v2383 = vmul.f32 %v2300, 1.442695
        %v2384 = vpow.pop %v2383
        %v2385 = vmul.f32 %v2301, 1.442695
        %v2386 = vpow.pop %v2385
        %v2387 = vmul.f32 %v2302, 1.442695
        %v2388 = vpow.pop %v2387
        %v2389 = vmul.f32 %v2303, 1.442695
        %v2390 = vpow.pop %v2389
        %v2391 = vmul.f32 %v2304, 1.442695
        %v2392 = vpow.pop %v2391
        %v2393 = vmul.f32 %v2305, 1.442695
        %v2394 = vpow.pop %v2393
        %v2395 = vmul.f32 %v2306, 1.442695
        %v2396 = vpow.pop %v2395
        %v2397 = vmul.f32 %v2307, 1.442695
        %v2398 = vpow.pop %v2397
        %v2399 = vmul.f32 %v2308, 1.442695
        %v2400 = vpow.pop %v2399
        %v2401 = vmul.f32 %v2309, 1.442695
        %v2402 = vpow.pop %v2401
        %v2403 = vmul.f32 %v2310, 1.442695
        %v2404 = vpow.pop %v2403
        %v2405 = vmul.f32 %v2311, 1.442695
        %v2406 = vpow.pop %v2405
        %v2407 = vmul.f32 %v2312, 1.442695
        %v2408 = vpow.pop %v2407
        %v2409 = vadd.f32 %v2314, 1.0
        %v2410 = vadd.f32 %v2316, 1.0
        %v2411 = vadd.f32 %v2318, 1.0
        %v2412 = vadd.f32 %v2320, 1.0
        %v2413 = vadd.f32 %v2322, 1.0
        %v2414 = vadd.f32 %v2324, 1.0
        %v2415 = vadd.f32 %v2326, 1.0
        %v2416 = vadd.f32 %v2328, 1.0
        %v2417 = vadd.f32 %v2330, 1.0
        %v2418 = vadd.f32 %v2332, 1.0
        %v2419 = vadd.f32 %v2334, 1.0
        %v2420 = vadd.f32 %v2336, 1.0
        %v2421 = vadd.f32 %v2338, 1.0
        %v2422 = vadd.f32 %v2340, 1.0
        %v2423 = vadd.f32 %v2342, 1.0
        %v2424 = vadd.f32 %v2344, 1.0
        %v2425 = vadd.f32 %v2346, 1.0
        %v2426 = vadd.f32 %v2348, 1.0
        %v2427 = vadd.f32 %v2350, 1.0
        %v2428 = vadd.f32 %v2352, 1.0
        %v2429 = vadd.f32 %v2354, 1.0
        %v2430 = vadd.f32 %v2356, 1.0
        %v2431 = vadd.f32 %v2358, 1.0
        %v2432 = vadd.f32 %v2360, 1.0
        %v2433 = vadd.f32 %v2362, 1.0
        %v2434 = vadd.f32 %v2364, 1.0
        %v2435 = vadd.f32 %v2366, 1.0
        %v2436 = vadd.f32 %v2368, 1.0
        %v2437 = vadd.f32 %v2370, 1.0
        %v2438 = vadd.f32 %v2372, 1.0
        %v2439 = vadd.f32 %v2374, 1.0
        %v2440 = vadd.f32 %v2376, 1.0
        %v2441 = vadd.f32 %v2378, 1.0
        %v2442 = vadd.f32 %v2380, 1.0
        %v2443 = vadd.f32 %v2382, 1.0
        %v2444 = vadd.f32 %v2384, 1.0
        %v2445 = vadd.f32 %v2386, 1.0
        %v2446 = vadd.f32 %v2388, 1.0
        %v2447 = vadd.f32 %v2390, 1.0
        %v2448 = vadd.f32 %v2392, 1.0
        %v2449 = vadd.f32 %v2394, 1.0
        %v2450 = vadd.f32 %v2396, 1.0
        %v2451 = vadd.f32 %v2398, 1.0
        %v2452 = vadd.f32 %v2400, 1.0
        %v2453 = vadd.f32 %v2402, 1.0
        %v2454 = vadd.f32 %v2404, 1.0
        %v2455 = vadd.f32 %v2406, 1.0
        %v2456 = vadd.f32 %v2408, 1.0
        %v2457 = vrcp.pop %v2409
        %v2458 = vmul.f32 %v2409, %v2457
        %v2459 = vsub.f32 1.0, %v2458
        %v2460 = vmul.f32 %v2457, %v2459
        %v2461 = vadd.f32 %v2457, %v2460
        %vm2462 = vweird.f32 %v2409
        %vm2463 = vweird.f32 %v2457
        %vm2464 = vmor %vm2462, %vm2463
        %v2465 = vsel %vm2464, %v2457, %v2461
        %v2466 = vand.u32 2147483647, %v2409
        %vm2467 = vcmp.eq.f32.partialorder %v2466, 8.507059e+37
        %v2468 = vand.u32 %v2409, 2147483648
        %v2469 = vor.u32 1.1754944e-38, %v2468
        %v2470 = vsel %vm2467, %v2469, %v2465
        %v2471 = vmul.f32 1.0, %v2470
        %v2472 = vrcp.pop %v2410
        %v2473 = vmul.f32 %v2410, %v2472
        %v2474 = vsub.f32 1.0, %v2473
        %v2475 = vmul.f32 %v2472, %v2474
        %v2476 = vadd.f32 %v2472, %v2475
        %vm2477 = vweird.f32 %v2410
        %vm2478 = vweird.f32 %v2472
        %vm2479 = vmor %vm2477, %vm2478
        %v2480 = vsel %vm2479, %v2472, %v2476
        %v2481 = vand.u32 2147483647, %v2410
        %vm2482 = vcmp.eq.f32.partialorder %v2481, 8.507059e+37
        %v2483 = vand.u32 %v2410, 2147483648
        %v2484 = vor.u32 1.1754944e-38, %v2483
        %v2485 = vsel %vm2482, %v2484, %v2480
        %v2486 = vmul.f32 1.0, %v2485
        %v2487 = vrcp.pop %v2411
        %v2488 = vmul.f32 %v2411, %v2487
        %v2489 = vsub.f32 1.0, %v2488
        %v2490 = vmul.f32 %v2487, %v2489
        %v2491 = vadd.f32 %v2487, %v2490
        %vm2492 = vweird.f32 %v2411
        %vm2493 = vweird.f32 %v2487
        %vm2494 = vmor %vm2492, %vm2493
        %v2495 = vsel %vm2494, %v2487, %v2491
        %v2496 = vand.u32 2147483647, %v2411
        %vm2497 = vcmp.eq.f32.partialorder %v2496, 8.507059e+37
        %v2498 = vand.u32 %v2411, 2147483648
        %v2499 = vor.u32 1.1754944e-38, %v2498
        %v2500 = vsel %vm2497, %v2499, %v2495
        %v2501 = vmul.f32 1.0, %v2500
        %v2502 = vrcp.pop %v2412
        %v2503 = vmul.f32 %v2412, %v2502
        %v2504 = vsub.f32 1.0, %v2503
        %v2505 = vmul.f32 %v2502, %v2504
        %v2506 = vadd.f32 %v2502, %v2505
        %vm2507 = vweird.f32 %v2412
        %vm2508 = vweird.f32 %v2502
        %vm2509 = vmor %vm2507, %vm2508
        %v2510 = vsel %vm2509, %v2502, %v2506
        %v2511 = vand.u32 2147483647, %v2412
        %vm2512 = vcmp.eq.f32.partialorder %v2511, 8.507059e+37
        %v2513 = vand.u32 %v2412, 2147483648
        %v2514 = vor.u32 1.1754944e-38, %v2513
        %v2515 = vsel %vm2512, %v2514, %v2510
        %v2516 = vmul.f32 1.0, %v2515
        %v2517 = vrcp.pop %v2413
        %v2518 = vmul.f32 %v2413, %v2517
        %v2519 = vsub.f32 1.0, %v2518
        %v2520 = vmul.f32 %v2517, %v2519
        %v2521 = vadd.f32 %v2517, %v2520
        %vm2522 = vweird.f32 %v2413
        %vm2523 = vweird.f32 %v2517
        %vm2524 = vmor %vm2522, %vm2523
        %v2525 = vsel %vm2524, %v2517, %v2521
        %v2526 = vand.u32 2147483647, %v2413
        %vm2527 = vcmp.eq.f32.partialorder %v2526, 8.507059e+37
        %v2528 = vand.u32 %v2413, 2147483648
        %v2529 = vor.u32 1.1754944e-38, %v2528
        %v2530 = vsel %vm2527, %v2529, %v2525
        %v2531 = vmul.f32 1.0, %v2530
        %v2532 = vrcp.pop %v2414
        %v2533 = vmul.f32 %v2414, %v2532
        %v2534 = vsub.f32 1.0, %v2533
        %v2535 = vmul.f32 %v2532, %v2534
        %v2536 = vadd.f32 %v2532, %v2535
        %vm2537 = vweird.f32 %v2414
        %vm2538 = vweird.f32 %v2532
        %vm2539 = vmor %vm2537, %vm2538
        %v2540 = vsel %vm2539, %v2532, %v2536
        %v2541 = vand.u32 2147483647, %v2414
        %vm2542 = vcmp.eq.f32.partialorder %v2541, 8.507059e+37
        %v2543 = vand.u32 %v2414, 2147483648
        %v2544 = vor.u32 1.1754944e-38, %v2543
        %v2545 = vsel %vm2542, %v2544, %v2540
        %v2546 = vmul.f32 1.0, %v2545
        %v2547 = vrcp.pop %v2415
        %v2548 = vmul.f32 %v2415, %v2547
        %v2549 = vsub.f32 1.0, %v2548
        %v2550 = vmul.f32 %v2547, %v2549
        %v2551 = vadd.f32 %v2547, %v2550
        %vm2552 = vweird.f32 %v2415
        %vm2553 = vweird.f32 %v2547
        %vm2554 = vmor %vm2552, %vm2553
        %v2555 = vsel %vm2554, %v2547, %v2551
        %v2556 = vand.u32 2147483647, %v2415
        %vm2557 = vcmp.eq.f32.partialorder %v2556, 8.507059e+37
        %v2558 = vand.u32 %v2415, 2147483648
        %v2559 = vor.u32 1.1754944e-38, %v2558
        %v2560 = vsel %vm2557, %v2559, %v2555
        %v2561 = vmul.f32 1.0, %v2560
        %v2562 = vrcp.pop %v2416
        %v2563 = vmul.f32 %v2416, %v2562
        %v2564 = vsub.f32 1.0, %v2563
        %v2565 = vmul.f32 %v2562, %v2564
        %v2566 = vadd.f32 %v2562, %v2565
        %vm2567 = vweird.f32 %v2416
        %vm2568 = vweird.f32 %v2562
        %vm2569 = vmor %vm2567, %vm2568
        %v2570 = vsel %vm2569, %v2562, %v2566
        %v2571 = vand.u32 2147483647, %v2416
        %vm2572 = vcmp.eq.f32.partialorder %v2571, 8.507059e+37
        %v2573 = vand.u32 %v2416, 2147483648
        %v2574 = vor.u32 1.1754944e-38, %v2573
        %v2575 = vsel %vm2572, %v2574, %v2570
        %v2576 = vmul.f32 1.0, %v2575
        %v2577 = vrcp.pop %v2417
        %v2578 = vmul.f32 %v2417, %v2577
        %v2579 = vsub.f32 1.0, %v2578
        %v2580 = vmul.f32 %v2577, %v2579
        %v2581 = vadd.f32 %v2577, %v2580
        %vm2582 = vweird.f32 %v2417
        %vm2583 = vweird.f32 %v2577
        %vm2584 = vmor %vm2582, %vm2583
        %v2585 = vsel %vm2584, %v2577, %v2581
        %v2586 = vand.u32 2147483647, %v2417
        %vm2587 = vcmp.eq.f32.partialorder %v2586, 8.507059e+37
        %v2588 = vand.u32 %v2417, 2147483648
        %v2589 = vor.u32 1.1754944e-38, %v2588
        %v2590 = vsel %vm2587, %v2589, %v2585
        %v2591 = vmul.f32 1.0, %v2590
        %v2592 = vrcp.pop %v2418
        %v2593 = vmul.f32 %v2418, %v2592
        %v2594 = vsub.f32 1.0, %v2593
        %v2595 = vmul.f32 %v2592, %v2594
        %v2596 = vadd.f32 %v2592, %v2595
        %vm2597 = vweird.f32 %v2418
        %vm2598 = vweird.f32 %v2592
        %vm2599 = vmor %vm2597, %vm2598
        %v2600 = vsel %vm2599, %v2592, %v2596
        %v2601 = vand.u32 2147483647, %v2418
        %vm2602 = vcmp.eq.f32.partialorder %v2601, 8.507059e+37
        %v2603 = vand.u32 %v2418, 2147483648
        %v2604 = vor.u32 1.1754944e-38, %v2603
        %v2605 = vsel %vm2602, %v2604, %v2600
        %v2606 = vmul.f32 1.0, %v2605
        %v2607 = vrcp.pop %v2419
        %v2608 = vmul.f32 %v2419, %v2607
        %v2609 = vsub.f32 1.0, %v2608
        %v2610 = vmul.f32 %v2607, %v2609
        %v2611 = vadd.f32 %v2607, %v2610
        %vm2612 = vweird.f32 %v2419
        %vm2613 = vweird.f32 %v2607
        %vm2614 = vmor %vm2612, %vm2613
        %v2615 = vsel %vm2614, %v2607, %v2611
        %v2616 = vand.u32 2147483647, %v2419
        %vm2617 = vcmp.eq.f32.partialorder %v2616, 8.507059e+37
        %v2618 = vand.u32 %v2419, 2147483648
        %v2619 = vor.u32 1.1754944e-38, %v2618
        %v2620 = vsel %vm2617, %v2619, %v2615
        %v2621 = vmul.f32 1.0, %v2620
        %v2622 = vrcp.pop %v2420
        %v2623 = vmul.f32 %v2420, %v2622
        %v2624 = vsub.f32 1.0, %v2623
        %v2625 = vmul.f32 %v2622, %v2624
        %v2626 = vadd.f32 %v2622, %v2625
        %vm2627 = vweird.f32 %v2420
        %vm2628 = vweird.f32 %v2622
        %vm2629 = vmor %vm2627, %vm2628
        %v2630 = vsel %vm2629, %v2622, %v2626
        %v2631 = vand.u32 2147483647, %v2420
        %vm2632 = vcmp.eq.f32.partialorder %v2631, 8.507059e+37
        %v2633 = vand.u32 %v2420, 2147483648
        %v2634 = vor.u32 1.1754944e-38, %v2633
        %v2635 = vsel %vm2632, %v2634, %v2630
        %v2636 = vmul.f32 1.0, %v2635
        %v2637 = vrcp.pop %v2421
        %v2638 = vmul.f32 %v2421, %v2637
        %v2639 = vsub.f32 1.0, %v2638
        %v2640 = vmul.f32 %v2637, %v2639
        %v2641 = vadd.f32 %v2637, %v2640
        %vm2642 = vweird.f32 %v2421
        %vm2643 = vweird.f32 %v2637
        %vm2644 = vmor %vm2642, %vm2643
        %v2645 = vsel %vm2644, %v2637, %v2641
        %v2646 = vand.u32 2147483647, %v2421
        %vm2647 = vcmp.eq.f32.partialorder %v2646, 8.507059e+37
        %v2648 = vand.u32 %v2421, 2147483648
        %v2649 = vor.u32 1.1754944e-38, %v2648
        %v2650 = vsel %vm2647, %v2649, %v2645
        %v2651 = vmul.f32 1.0, %v2650
        %v2652 = vrcp.pop %v2422
        %v2653 = vmul.f32 %v2422, %v2652
        %v2654 = vsub.f32 1.0, %v2653
        %v2655 = vmul.f32 %v2652, %v2654
        %v2656 = vadd.f32 %v2652, %v2655
        %vm2657 = vweird.f32 %v2422
        %vm2658 = vweird.f32 %v2652
        %vm2659 = vmor %vm2657, %vm2658
        %v2660 = vsel %vm2659, %v2652, %v2656
        %v2661 = vand.u32 2147483647, %v2422
        %vm2662 = vcmp.eq.f32.partialorder %v2661, 8.507059e+37
        %v2663 = vand.u32 %v2422, 2147483648
        %v2664 = vor.u32 1.1754944e-38, %v2663
        %v2665 = vsel %vm2662, %v2664, %v2660
        %v2666 = vmul.f32 1.0, %v2665
        %v2667 = vrcp.pop %v2423
        %v2668 = vmul.f32 %v2423, %v2667
        %v2669 = vsub.f32 1.0, %v2668
        %v2670 = vmul.f32 %v2667, %v2669
        %v2671 = vadd.f32 %v2667, %v2670
        %vm2672 = vweird.f32 %v2423
        %vm2673 = vweird.f32 %v2667
        %vm2674 = vmor %vm2672, %vm2673
        %v2675 = vsel %vm2674, %v2667, %v2671
        %v2676 = vand.u32 2147483647, %v2423
        %vm2677 = vcmp.eq.f32.partialorder %v2676, 8.507059e+37
        %v2678 = vand.u32 %v2423, 2147483648
        %v2679 = vor.u32 1.1754944e-38, %v2678
        %v2680 = vsel %vm2677, %v2679, %v2675
        %v2681 = vmul.f32 1.0, %v2680
        %v2682 = vrcp.pop %v2424
        %v2683 = vmul.f32 %v2424, %v2682
        %v2684 = vsub.f32 1.0, %v2683
        %v2685 = vmul.f32 %v2682, %v2684
        %v2686 = vadd.f32 %v2682, %v2685
        %vm2687 = vweird.f32 %v2424
        %vm2688 = vweird.f32 %v2682
        %vm2689 = vmor %vm2687, %vm2688
        %v2690 = vsel %vm2689, %v2682, %v2686
        %v2691 = vand.u32 2147483647, %v2424
        %vm2692 = vcmp.eq.f32.partialorder %v2691, 8.507059e+37
        %v2693 = vand.u32 %v2424, 2147483648
        %v2694 = vor.u32 1.1754944e-38, %v2693
        %v2695 = vsel %vm2692, %v2694, %v2690
        %v2696 = vmul.f32 1.0, %v2695
        %v2697 = vrcp.pop %v2425
        %v2698 = vmul.f32 %v2425, %v2697
        %v2699 = vsub.f32 1.0, %v2698
        %v2700 = vmul.f32 %v2697, %v2699
        %v2701 = vadd.f32 %v2697, %v2700
        %vm2702 = vweird.f32 %v2425
        %vm2703 = vweird.f32 %v2697
        %vm2704 = vmor %vm2702, %vm2703
        %v2705 = vsel %vm2704, %v2697, %v2701
        %v2706 = vand.u32 2147483647, %v2425
        %vm2707 = vcmp.eq.f32.partialorder %v2706, 8.507059e+37
        %v2708 = vand.u32 %v2425, 2147483648
        %v2709 = vor.u32 1.1754944e-38, %v2708
        %v2710 = vsel %vm2707, %v2709, %v2705
        %v2711 = vmul.f32 1.0, %v2710
        %v2712 = vrcp.pop %v2426
        %v2713 = vmul.f32 %v2426, %v2712
        %v2714 = vsub.f32 1.0, %v2713
        %v2715 = vmul.f32 %v2712, %v2714
        %v2716 = vadd.f32 %v2712, %v2715
        %vm2717 = vweird.f32 %v2426
        %vm2718 = vweird.f32 %v2712
        %vm2719 = vmor %vm2717, %vm2718
        %v2720 = vsel %vm2719, %v2712, %v2716
        %v2721 = vand.u32 2147483647, %v2426
        %vm2722 = vcmp.eq.f32.partialorder %v2721, 8.507059e+37
        %v2723 = vand.u32 %v2426, 2147483648
        %v2724 = vor.u32 1.1754944e-38, %v2723
        %v2725 = vsel %vm2722, %v2724, %v2720
        %v2726 = vmul.f32 1.0, %v2725
        %v2727 = vrcp.pop %v2427
        %v2728 = vmul.f32 %v2427, %v2727
        %v2729 = vsub.f32 1.0, %v2728
        %v2730 = vmul.f32 %v2727, %v2729
        %v2731 = vadd.f32 %v2727, %v2730
        %vm2732 = vweird.f32 %v2427
        %vm2733 = vweird.f32 %v2727
        %vm2734 = vmor %vm2732, %vm2733
        %v2735 = vsel %vm2734, %v2727, %v2731
        %v2736 = vand.u32 2147483647, %v2427
        %vm2737 = vcmp.eq.f32.partialorder %v2736, 8.507059e+37
        %v2738 = vand.u32 %v2427, 2147483648
        %v2739 = vor.u32 1.1754944e-38, %v2738
        %v2740 = vsel %vm2737, %v2739, %v2735
        %v2741 = vmul.f32 1.0, %v2740
        %v2742 = vrcp.pop %v2428
        %v2743 = vmul.f32 %v2428, %v2742
        %v2744 = vsub.f32 1.0, %v2743
        %v2745 = vmul.f32 %v2742, %v2744
        %v2746 = vadd.f32 %v2742, %v2745
        %vm2747 = vweird.f32 %v2428
        %vm2748 = vweird.f32 %v2742
        %vm2749 = vmor %vm2747, %vm2748
        %v2750 = vsel %vm2749, %v2742, %v2746
        %v2751 = vand.u32 2147483647, %v2428
        %vm2752 = vcmp.eq.f32.partialorder %v2751, 8.507059e+37
        %v2753 = vand.u32 %v2428, 2147483648
        %v2754 = vor.u32 1.1754944e-38, %v2753
        %v2755 = vsel %vm2752, %v2754, %v2750
        %v2756 = vmul.f32 1.0, %v2755
        %v2757 = vrcp.pop %v2429
        %v2758 = vmul.f32 %v2429, %v2757
        %v2759 = vsub.f32 1.0, %v2758
        %v2760 = vmul.f32 %v2757, %v2759
        %v2761 = vadd.f32 %v2757, %v2760
        %vm2762 = vweird.f32 %v2429
        %vm2763 = vweird.f32 %v2757
        %vm2764 = vmor %vm2762, %vm2763
        %v2765 = vsel %vm2764, %v2757, %v2761
        %v2766 = vand.u32 2147483647, %v2429
        %vm2767 = vcmp.eq.f32.partialorder %v2766, 8.507059e+37
        %v2768 = vand.u32 %v2429, 2147483648
        %v2769 = vor.u32 1.1754944e-38, %v2768
        %v2770 = vsel %vm2767, %v2769, %v2765
        %v2771 = vmul.f32 1.0, %v2770
        %v2772 = vrcp.pop %v2430
        %v2773 = vmul.f32 %v2430, %v2772
        %v2774 = vsub.f32 1.0, %v2773
        %v2775 = vmul.f32 %v2772, %v2774
        %v2776 = vadd.f32 %v2772, %v2775
        %vm2777 = vweird.f32 %v2430
        %vm2778 = vweird.f32 %v2772
        %vm2779 = vmor %vm2777, %vm2778
        %v2780 = vsel %vm2779, %v2772, %v2776
        %v2781 = vand.u32 2147483647, %v2430
        %vm2782 = vcmp.eq.f32.partialorder %v2781, 8.507059e+37
        %v2783 = vand.u32 %v2430, 2147483648
        %v2784 = vor.u32 1.1754944e-38, %v2783
        %v2785 = vsel %vm2782, %v2784, %v2780
        %v2786 = vmul.f32 1.0, %v2785
        %v2787 = vrcp.pop %v2431
        %v2788 = vmul.f32 %v2431, %v2787
        %v2789 = vsub.f32 1.0, %v2788
        %v2790 = vmul.f32 %v2787, %v2789
        %v2791 = vadd.f32 %v2787, %v2790
        %vm2792 = vweird.f32 %v2431
        %vm2793 = vweird.f32 %v2787
        %vm2794 = vmor %vm2792, %vm2793
        %v2795 = vsel %vm2794, %v2787, %v2791
        %v2796 = vand.u32 2147483647, %v2431
        %vm2797 = vcmp.eq.f32.partialorder %v2796, 8.507059e+37
        %v2798 = vand.u32 %v2431, 2147483648
        %v2799 = vor.u32 1.1754944e-38, %v2798
        %v2800 = vsel %vm2797, %v2799, %v2795
        %v2801 = vmul.f32 1.0, %v2800
        %v2802 = vrcp.pop %v2432
        %v2803 = vmul.f32 %v2432, %v2802
        %v2804 = vsub.f32 1.0, %v2803
        %v2805 = vmul.f32 %v2802, %v2804
        %v2806 = vadd.f32 %v2802, %v2805
        %vm2807 = vweird.f32 %v2432
        %vm2808 = vweird.f32 %v2802
        %vm2809 = vmor %vm2807, %vm2808
        %v2810 = vsel %vm2809, %v2802, %v2806
        %v2811 = vand.u32 2147483647, %v2432
        %vm2812 = vcmp.eq.f32.partialorder %v2811, 8.507059e+37
        %v2813 = vand.u32 %v2432, 2147483648
        %v2814 = vor.u32 1.1754944e-38, %v2813
        %v2815 = vsel %vm2812, %v2814, %v2810
        %v2816 = vmul.f32 1.0, %v2815
        %v2817 = vrcp.pop %v2433
        %v2818 = vmul.f32 %v2433, %v2817
        %v2819 = vsub.f32 1.0, %v2818
        %v2820 = vmul.f32 %v2817, %v2819
        %v2821 = vadd.f32 %v2817, %v2820
        %vm2822 = vweird.f32 %v2433
        %vm2823 = vweird.f32 %v2817
        %vm2824 = vmor %vm2822, %vm2823
        %v2825 = vsel %vm2824, %v2817, %v2821
        %v2826 = vand.u32 2147483647, %v2433
        %vm2827 = vcmp.eq.f32.partialorder %v2826, 8.507059e+37
        %v2828 = vand.u32 %v2433, 2147483648
        %v2829 = vor.u32 1.1754944e-38, %v2828
        %v2830 = vsel %vm2827, %v2829, %v2825
        %v2831 = vmul.f32 1.0, %v2830
        %v2832 = vrcp.pop %v2434
        %v2833 = vmul.f32 %v2434, %v2832
        %v2834 = vsub.f32 1.0, %v2833
        %v2835 = vmul.f32 %v2832, %v2834
        %v2836 = vadd.f32 %v2832, %v2835
        %vm2837 = vweird.f32 %v2434
        %vm2838 = vweird.f32 %v2832
        %vm2839 = vmor %vm2837, %vm2838
        %v2840 = vsel %vm2839, %v2832, %v2836
        %v2841 = vand.u32 2147483647, %v2434
        %vm2842 = vcmp.eq.f32.partialorder %v2841, 8.507059e+37
        %v2843 = vand.u32 %v2434, 2147483648
        %v2844 = vor.u32 1.1754944e-38, %v2843
        %v2845 = vsel %vm2842, %v2844, %v2840
        %v2846 = vmul.f32 1.0, %v2845
        %v2847 = vrcp.pop %v2435
        %v2848 = vmul.f32 %v2435, %v2847
        %v2849 = vsub.f32 1.0, %v2848
        %v2850 = vmul.f32 %v2847, %v2849
        %v2851 = vadd.f32 %v2847, %v2850
        %vm2852 = vweird.f32 %v2435
        %vm2853 = vweird.f32 %v2847
        %vm2854 = vmor %vm2852, %vm2853
        %v2855 = vsel %vm2854, %v2847, %v2851
        %v2856 = vand.u32 2147483647, %v2435
        %vm2857 = vcmp.eq.f32.partialorder %v2856, 8.507059e+37
        %v2858 = vand.u32 %v2435, 2147483648
        %v2859 = vor.u32 1.1754944e-38, %v2858
        %v2860 = vsel %vm2857, %v2859, %v2855
        %v2861 = vmul.f32 1.0, %v2860
        %v2862 = vrcp.pop %v2436
        %v2863 = vmul.f32 %v2436, %v2862
        %v2864 = vsub.f32 1.0, %v2863
        %v2865 = vmul.f32 %v2862, %v2864
        %v2866 = vadd.f32 %v2862, %v2865
        %vm2867 = vweird.f32 %v2436
        %vm2868 = vweird.f32 %v2862
        %vm2869 = vmor %vm2867, %vm2868
        %v2870 = vsel %vm2869, %v2862, %v2866
        %v2871 = vand.u32 2147483647, %v2436
        %vm2872 = vcmp.eq.f32.partialorder %v2871, 8.507059e+37
        %v2873 = vand.u32 %v2436, 2147483648
        %v2874 = vor.u32 1.1754944e-38, %v2873
        %v2875 = vsel %vm2872, %v2874, %v2870
        %v2876 = vmul.f32 1.0, %v2875
        %v2877 = vrcp.pop %v2437
        %v2878 = vmul.f32 %v2437, %v2877
        %v2879 = vsub.f32 1.0, %v2878
        %v2880 = vmul.f32 %v2877, %v2879
        %v2881 = vadd.f32 %v2877, %v2880
        %vm2882 = vweird.f32 %v2437
        %vm2883 = vweird.f32 %v2877
        %vm2884 = vmor %vm2882, %vm2883
        %v2885 = vsel %vm2884, %v2877, %v2881
        %v2886 = vand.u32 2147483647, %v2437
        %vm2887 = vcmp.eq.f32.partialorder %v2886, 8.507059e+37
        %v2888 = vand.u32 %v2437, 2147483648
        %v2889 = vor.u32 1.1754944e-38, %v2888
        %v2890 = vsel %vm2887, %v2889, %v2885
        %v2891 = vmul.f32 1.0, %v2890
        %v2892 = vrcp.pop %v2438
        %v2893 = vmul.f32 %v2438, %v2892
        %v2894 = vsub.f32 1.0, %v2893
        %v2895 = vmul.f32 %v2892, %v2894
        %v2896 = vadd.f32 %v2892, %v2895
        %vm2897 = vweird.f32 %v2438
        %vm2898 = vweird.f32 %v2892
        %vm2899 = vmor %vm2897, %vm2898
        %v2900 = vsel %vm2899, %v2892, %v2896
        %v2901 = vand.u32 2147483647, %v2438
        %vm2902 = vcmp.eq.f32.partialorder %v2901, 8.507059e+37
        %v2903 = vand.u32 %v2438, 2147483648
        %v2904 = vor.u32 1.1754944e-38, %v2903
        %v2905 = vsel %vm2902, %v2904, %v2900
        %v2906 = vmul.f32 1.0, %v2905
        %v2907 = vrcp.pop %v2439
        %v2908 = vmul.f32 %v2439, %v2907
        %v2909 = vsub.f32 1.0, %v2908
        %v2910 = vmul.f32 %v2907, %v2909
        %v2911 = vadd.f32 %v2907, %v2910
        %vm2912 = vweird.f32 %v2439
        %vm2913 = vweird.f32 %v2907
        %vm2914 = vmor %vm2912, %vm2913
        %v2915 = vsel %vm2914, %v2907, %v2911
        %v2916 = vand.u32 2147483647, %v2439
        %vm2917 = vcmp.eq.f32.partialorder %v2916, 8.507059e+37
        %v2918 = vand.u32 %v2439, 2147483648
        %v2919 = vor.u32 1.1754944e-38, %v2918
        %v2920 = vsel %vm2917, %v2919, %v2915
        %v2921 = vmul.f32 1.0, %v2920
        %v2922 = vrcp.pop %v2440
        %v2923 = vmul.f32 %v2440, %v2922
        %v2924 = vsub.f32 1.0, %v2923
        %v2925 = vmul.f32 %v2922, %v2924
        %v2926 = vadd.f32 %v2922, %v2925
        %vm2927 = vweird.f32 %v2440
        %vm2928 = vweird.f32 %v2922
        %vm2929 = vmor %vm2927, %vm2928
        %v2930 = vsel %vm2929, %v2922, %v2926
        %v2931 = vand.u32 2147483647, %v2440
        %vm2932 = vcmp.eq.f32.partialorder %v2931, 8.507059e+37
        %v2933 = vand.u32 %v2440, 2147483648
        %v2934 = vor.u32 1.1754944e-38, %v2933
        %v2935 = vsel %vm2932, %v2934, %v2930
        %v2936 = vmul.f32 1.0, %v2935
        %v2937 = vrcp.pop %v2441
        %v2938 = vmul.f32 %v2441, %v2937
        %v2939 = vsub.f32 1.0, %v2938
        %v2940 = vmul.f32 %v2937, %v2939
        %v2941 = vadd.f32 %v2937, %v2940
        %vm2942 = vweird.f32 %v2441
        %vm2943 = vweird.f32 %v2937
        %vm2944 = vmor %vm2942, %vm2943
        %v2945 = vsel %vm2944, %v2937, %v2941
        %v2946 = vand.u32 2147483647, %v2441
        %vm2947 = vcmp.eq.f32.partialorder %v2946, 8.507059e+37
        %v2948 = vand.u32 %v2441, 2147483648
        %v2949 = vor.u32 1.1754944e-38, %v2948
        %v2950 = vsel %vm2947, %v2949, %v2945
        %v2951 = vmul.f32 1.0, %v2950
        %v2952 = vrcp.pop %v2442
        %v2953 = vmul.f32 %v2442, %v2952
        %v2954 = vsub.f32 1.0, %v2953
        %v2955 = vmul.f32 %v2952, %v2954
        %v2956 = vadd.f32 %v2952, %v2955
        %vm2957 = vweird.f32 %v2442
        %vm2958 = vweird.f32 %v2952
        %vm2959 = vmor %vm2957, %vm2958
        %v2960 = vsel %vm2959, %v2952, %v2956
        %v2961 = vand.u32 2147483647, %v2442
        %vm2962 = vcmp.eq.f32.partialorder %v2961, 8.507059e+37
        %v2963 = vand.u32 %v2442, 2147483648
        %v2964 = vor.u32 1.1754944e-38, %v2963
        %v2965 = vsel %vm2962, %v2964, %v2960
        %v2966 = vmul.f32 1.0, %v2965
        %v2967 = vrcp.pop %v2443
        %v2968 = vmul.f32 %v2443, %v2967
        %v2969 = vsub.f32 1.0, %v2968
        %v2970 = vmul.f32 %v2967, %v2969
        %v2971 = vadd.f32 %v2967, %v2970
        %vm2972 = vweird.f32 %v2443
        %vm2973 = vweird.f32 %v2967
        %vm2974 = vmor %vm2972, %vm2973
        %v2975 = vsel %vm2974, %v2967, %v2971
        %v2976 = vand.u32 2147483647, %v2443
        %vm2977 = vcmp.eq.f32.partialorder %v2976, 8.507059e+37
        %v2978 = vand.u32 %v2443, 2147483648
        %v2979 = vor.u32 1.1754944e-38, %v2978
        %v2980 = vsel %vm2977, %v2979, %v2975
        %v2981 = vmul.f32 1.0, %v2980
        %v2982 = vrcp.pop %v2444
        %v2983 = vmul.f32 %v2444, %v2982
        %v2984 = vsub.f32 1.0, %v2983
        %v2985 = vmul.f32 %v2982, %v2984
        %v2986 = vadd.f32 %v2982, %v2985
        %vm2987 = vweird.f32 %v2444
        %vm2988 = vweird.f32 %v2982
        %vm2989 = vmor %vm2987, %vm2988
        %v2990 = vsel %vm2989, %v2982, %v2986
        %v2991 = vand.u32 2147483647, %v2444
        %vm2992 = vcmp.eq.f32.partialorder %v2991, 8.507059e+37
        %v2993 = vand.u32 %v2444, 2147483648
        %v2994 = vor.u32 1.1754944e-38, %v2993
        %v2995 = vsel %vm2992, %v2994, %v2990
        %v2996 = vmul.f32 1.0, %v2995
        %v2997 = vrcp.pop %v2445
        %v2998 = vmul.f32 %v2445, %v2997
        %v2999 = vsub.f32 1.0, %v2998
        %v3000 = vmul.f32 %v2997, %v2999
        %v3001 = vadd.f32 %v2997, %v3000
        %vm3002 = vweird.f32 %v2445
        %vm3003 = vweird.f32 %v2997
        %vm3004 = vmor %vm3002, %vm3003
        %v3005 = vsel %vm3004, %v2997, %v3001
        %v3006 = vand.u32 2147483647, %v2445
        %vm3007 = vcmp.eq.f32.partialorder %v3006, 8.507059e+37
        %v3008 = vand.u32 %v2445, 2147483648
        %v3009 = vor.u32 1.1754944e-38, %v3008
        %v3010 = vsel %vm3007, %v3009, %v3005
        %v3011 = vmul.f32 1.0, %v3010
        %v3012 = vrcp.pop %v2446
        %v3013 = vmul.f32 %v2446, %v3012
        %v3014 = vsub.f32 1.0, %v3013
        %v3015 = vmul.f32 %v3012, %v3014
        %v3016 = vadd.f32 %v3012, %v3015
        %vm3017 = vweird.f32 %v2446
        %vm3018 = vweird.f32 %v3012
        %vm3019 = vmor %vm3017, %vm3018
        %v3020 = vsel %vm3019, %v3012, %v3016
        %v3021 = vand.u32 2147483647, %v2446
        %vm3022 = vcmp.eq.f32.partialorder %v3021, 8.507059e+37
        %v3023 = vand.u32 %v2446, 2147483648
        %v3024 = vor.u32 1.1754944e-38, %v3023
        %v3025 = vsel %vm3022, %v3024, %v3020
        %v3026 = vmul.f32 1.0, %v3025
        %v3027 = vrcp.pop %v2447
        %v3028 = vmul.f32 %v2447, %v3027
        %v3029 = vsub.f32 1.0, %v3028
        %v3030 = vmul.f32 %v3027, %v3029
        %v3031 = vadd.f32 %v3027, %v3030
        %vm3032 = vweird.f32 %v2447
        %vm3033 = vweird.f32 %v3027
        %vm3034 = vmor %vm3032, %vm3033
        %v3035 = vsel %vm3034, %v3027, %v3031
        %v3036 = vand.u32 2147483647, %v2447
        %vm3037 = vcmp.eq.f32.partialorder %v3036, 8.507059e+37
        %v3038 = vand.u32 %v2447, 2147483648
        %v3039 = vor.u32 1.1754944e-38, %v3038
        %v3040 = vsel %vm3037, %v3039, %v3035
        %v3041 = vmul.f32 1.0, %v3040
        %v3042 = vrcp.pop %v2448
        %v3043 = vmul.f32 %v2448, %v3042
        %v3044 = vsub.f32 1.0, %v3043
        %v3045 = vmul.f32 %v3042, %v3044
        %v3046 = vadd.f32 %v3042, %v3045
        %vm3047 = vweird.f32 %v2448
        %vm3048 = vweird.f32 %v3042
        %vm3049 = vmor %vm3047, %vm3048
        %v3050 = vsel %vm3049, %v3042, %v3046
        %v3051 = vand.u32 2147483647, %v2448
        %vm3052 = vcmp.eq.f32.partialorder %v3051, 8.507059e+37
        %v3053 = vand.u32 %v2448, 2147483648
        %v3054 = vor.u32 1.1754944e-38, %v3053
        %v3055 = vsel %vm3052, %v3054, %v3050
        %v3056 = vmul.f32 1.0, %v3055
        %v3057 = vrcp.pop %v2449
        %v3058 = vmul.f32 %v2449, %v3057
        %v3059 = vsub.f32 1.0, %v3058
        %v3060 = vmul.f32 %v3057, %v3059
        %v3061 = vadd.f32 %v3057, %v3060
        %vm3062 = vweird.f32 %v2449
        %vm3063 = vweird.f32 %v3057
        %vm3064 = vmor %vm3062, %vm3063
        %v3065 = vsel %vm3064, %v3057, %v3061
        %v3066 = vand.u32 2147483647, %v2449
        %vm3067 = vcmp.eq.f32.partialorder %v3066, 8.507059e+37
        %v3068 = vand.u32 %v2449, 2147483648
        %v3069 = vor.u32 1.1754944e-38, %v3068
        %v3070 = vsel %vm3067, %v3069, %v3065
        %v3071 = vmul.f32 1.0, %v3070
        %v3072 = vrcp.pop %v2450
        %v3073 = vmul.f32 %v2450, %v3072
        %v3074 = vsub.f32 1.0, %v3073
        %v3075 = vmul.f32 %v3072, %v3074
        %v3076 = vadd.f32 %v3072, %v3075
        %vm3077 = vweird.f32 %v2450
        %vm3078 = vweird.f32 %v3072
        %vm3079 = vmor %vm3077, %vm3078
        %v3080 = vsel %vm3079, %v3072, %v3076
        %v3081 = vand.u32 2147483647, %v2450
        %vm3082 = vcmp.eq.f32.partialorder %v3081, 8.507059e+37
        %v3083 = vand.u32 %v2450, 2147483648
        %v3084 = vor.u32 1.1754944e-38, %v3083
        %v3085 = vsel %vm3082, %v3084, %v3080
        %v3086 = vmul.f32 1.0, %v3085
        %v3087 = vrcp.pop %v2451
        %v3088 = vmul.f32 %v2451, %v3087
        %v3089 = vsub.f32 1.0, %v3088
        %v3090 = vmul.f32 %v3087, %v3089
        %v3091 = vadd.f32 %v3087, %v3090
        %vm3092 = vweird.f32 %v2451
        %vm3093 = vweird.f32 %v3087
        %vm3094 = vmor %vm3092, %vm3093
        %v3095 = vsel %vm3094, %v3087, %v3091
        %v3096 = vand.u32 2147483647, %v2451
        %vm3097 = vcmp.eq.f32.partialorder %v3096, 8.507059e+37
        %v3098 = vand.u32 %v2451, 2147483648
        %v3099 = vor.u32 1.1754944e-38, %v3098
        %v3100 = vsel %vm3097, %v3099, %v3095
        %v3101 = vmul.f32 1.0, %v3100
        %v3102 = vrcp.pop %v2452
        %v3103 = vmul.f32 %v2452, %v3102
        %v3104 = vsub.f32 1.0, %v3103
        %v3105 = vmul.f32 %v3102, %v3104
        %v3106 = vadd.f32 %v3102, %v3105
        %vm3107 = vweird.f32 %v2452
        %vm3108 = vweird.f32 %v3102
        %vm3109 = vmor %vm3107, %vm3108
        %v3110 = vsel %vm3109, %v3102, %v3106
        %v3111 = vand.u32 2147483647, %v2452
        %vm3112 = vcmp.eq.f32.partialorder %v3111, 8.507059e+37
        %v3113 = vand.u32 %v2452, 2147483648
        %v3114 = vor.u32 1.1754944e-38, %v3113
        %v3115 = vsel %vm3112, %v3114, %v3110
        %v3116 = vmul.f32 1.0, %v3115
        %v3117 = vrcp.pop %v2453
        %v3118 = vmul.f32 %v2453, %v3117
        %v3119 = vsub.f32 1.0, %v3118
        %v3120 = vmul.f32 %v3117, %v3119
        %v3121 = vadd.f32 %v3117, %v3120
        %vm3122 = vweird.f32 %v2453
        %vm3123 = vweird.f32 %v3117
        %vm3124 = vmor %vm3122, %vm3123
        %v3125 = vsel %vm3124, %v3117, %v3121
        %v3126 = vand.u32 2147483647, %v2453
        %vm3127 = vcmp.eq.f32.partialorder %v3126, 8.507059e+37
        %v3128 = vand.u32 %v2453, 2147483648
        %v3129 = vor.u32 1.1754944e-38, %v3128
        %v3130 = vsel %vm3127, %v3129, %v3125
        %v3131 = vmul.f32 1.0, %v3130
        %v3132 = vrcp.pop %v2454
        %v3133 = vmul.f32 %v2454, %v3132
        %v3134 = vsub.f32 1.0, %v3133
        %v3135 = vmul.f32 %v3132, %v3134
        %v3136 = vadd.f32 %v3132, %v3135
        %vm3137 = vweird.f32 %v2454
        %vm3138 = vweird.f32 %v3132
        %vm3139 = vmor %vm3137, %vm3138
        %v3140 = vsel %vm3139, %v3132, %v3136
        %v3141 = vand.u32 2147483647, %v2454
        %vm3142 = vcmp.eq.f32.partialorder %v3141, 8.507059e+37
        %v3143 = vand.u32 %v2454, 2147483648
        %v3144 = vor.u32 1.1754944e-38, %v3143
        %v3145 = vsel %vm3142, %v3144, %v3140
        %v3146 = vmul.f32 1.0, %v3145
        %v3147 = vrcp.pop %v2455
        %v3148 = vmul.f32 %v2455, %v3147
        %v3149 = vsub.f32 1.0, %v3148
        %v3150 = vmul.f32 %v3147, %v3149
        %v3151 = vadd.f32 %v3147, %v3150
        %vm3152 = vweird.f32 %v2455
        %vm3153 = vweird.f32 %v3147
        %vm3154 = vmor %vm3152, %vm3153
        %v3155 = vsel %vm3154, %v3147, %v3151
        %v3156 = vand.u32 2147483647, %v2455
        %vm3157 = vcmp.eq.f32.partialorder %v3156, 8.507059e+37
        %v3158 = vand.u32 %v2455, 2147483648
        %v3159 = vor.u32 1.1754944e-38, %v3158
        %v3160 = vsel %vm3157, %v3159, %v3155
        %v3161 = vmul.f32 1.0, %v3160
        %v3162 = vrcp.pop %v2456
        %v3163 = vmul.f32 %v2456, %v3162
        %v3164 = vsub.f32 1.0, %v3163
        %v3165 = vmul.f32 %v3162, %v3164
        %v3166 = vadd.f32 %v3162, %v3165
        %vm3167 = vweird.f32 %v2456
        %vm3168 = vweird.f32 %v3162
        %vm3169 = vmor %vm3167, %vm3168
        %v3170 = vsel %vm3169, %v3162, %v3166
        %v3171 = vand.u32 2147483647, %v2456
        %vm3172 = vcmp.eq.f32.partialorder %v3171, 8.507059e+37
        %v3173 = vand.u32 %v2456, 2147483648
        %v3174 = vor.u32 1.1754944e-38, %v3173
        %v3175 = vsel %vm3172, %v3174, %v3170
        %v3176 = vmul.f32 1.0, %v3175
        %v3178 = vperm.slane %v265, 0
        %v3179 = vperm.slane %v265, 1
        %v3180 = vperm.slane %v265, 2
        %v3184 = vmul.f32 %v3178, %v654
        %v3185 = vmul.f32 %v3179, %v654
        %v3186 = vmul.f32 %v3180, %v654
        %v3187 = vmul.f32 %v3178, %v655
        %v3188 = vmul.f32 %v3179, %v655
        %v3189 = vmul.f32 %v3180, %v655
        %v3190 = vmul.f32 %v3178, %v656
        %v3191 = vmul.f32 %v3179, %v656
        %v3192 = vmul.f32 %v3180, %v656
        %v3193 = vmul.f32 %v3178, %v657
        %v3194 = vmul.f32 %v3179, %v657
        %v3195 = vmul.f32 %v3180, %v657
        %v3196 = vmul.f32 %v3178, %v658
        %v3197 = vmul.f32 %v3179, %v658
        %v3198 = vmul.f32 %v3180, %v658
        %v3199 = vmul.f32 %v3178, %v659
        %v3200 = vmul.f32 %v3179, %v659
        %v3201 = vmul.f32 %v3180, %v659
        %v3202 = vmul.f32 %v3178, %v660
        %v3203 = vmul.f32 %v3179, %v660
        %v3204 = vmul.f32 %v3180, %v660
        %v3205 = vmul.f32 %v3178, %v661
        %v3206 = vmul.f32 %v3179, %v661
        %v3207 = vmul.f32 %v3180, %v661
        %v3208 = vmul.f32 %v3178, %v662
        %v3209 = vmul.f32 %v3179, %v662
        %v3210 = vmul.f32 %v3180, %v662
        %v3211 = vmul.f32 %v3178, %v663
        %v3212 = vmul.f32 %v3179, %v663
        %v3213 = vmul.f32 %v3180, %v663
        %v3214 = vmul.f32 %v3178, %v664
        %v3215 = vmul.f32 %v3179, %v664
        %v3216 = vmul.f32 %v3180, %v664
        %v3217 = vmul.f32 %v3178, %v665
        %v3218 = vmul.f32 %v3179, %v665
        %v3219 = vmul.f32 %v3180, %v665
        %v3220 = vmul.f32 %v3178, %v666
        %v3221 = vmul.f32 %v3179, %v666
        %v3222 = vmul.f32 %v3180, %v666
        %v3223 = vmul.f32 %v3178, %v667
        %v3224 = vmul.f32 %v3179, %v667
        %v3225 = vmul.f32 %v3180, %v667
        %v3226 = vmul.f32 %v3178, %v668
        %v3227 = vmul.f32 %v3179, %v668
        %v3228 = vmul.f32 %v3180, %v668
        %v3229 = vmul.f32 %v3178, %v669
        %v3230 = vmul.f32 %v3179, %v669
        %v3231 = vmul.f32 %v3180, %v669
        %v3233 = vperm.slane %v267, 0
        %v3234 = vperm.slane %v267, 1
        %v3235 = vperm.slane %v267, 2
        %v3239 = vmul.f32 %v3233, %v781
        %v3240 = vmul.f32 %v3234, %v781
        %v3241 = vmul.f32 %v3235, %v781
        %v3242 = vmul.f32 %v3233, %v782
        %v3243 = vmul.f32 %v3234, %v782
        %v3244 = vmul.f32 %v3235, %v782
        %v3245 = vmul.f32 %v3233, %v783
        %v3246 = vmul.f32 %v3234, %v783
        %v3247 = vmul.f32 %v3235, %v783
        %v3248 = vmul.f32 %v3233, %v784
        %v3249 = vmul.f32 %v3234, %v784
        %v3250 = vmul.f32 %v3235, %v784
        %v3251 = vmul.f32 %v3233, %v785
        %v3252 = vmul.f32 %v3234, %v785
        %v3253 = vmul.f32 %v3235, %v785
        %v3254 = vmul.f32 %v3233, %v786
        %v3255 = vmul.f32 %v3234, %v786
        %v3256 = vmul.f32 %v3235, %v786
        %v3257 = vmul.f32 %v3233, %v787
        %v3258 = vmul.f32 %v3234, %v787
        %v3259 = vmul.f32 %v3235, %v787
        %v3260 = vmul.f32 %v3233, %v788
        %v3261 = vmul.f32 %v3234, %v788
        %v3262 = vmul.f32 %v3235, %v788
        %v3263 = vmul.f32 %v3233, %v789
        %v3264 = vmul.f32 %v3234, %v789
        %v3265 = vmul.f32 %v3235, %v789
        %v3266 = vmul.f32 %v3233, %v790
        %v3267 = vmul.f32 %v3234, %v790
        %v3268 = vmul.f32 %v3235, %v790
        %v3269 = vmul.f32 %v3233, %v791
        %v3270 = vmul.f32 %v3234, %v791
        %v3271 = vmul.f32 %v3235, %v791
        %v3272 = vmul.f32 %v3233, %v792
        %v3273 = vmul.f32 %v3234, %v792
        %v3274 = vmul.f32 %v3235, %v792
        %v3275 = vmul.f32 %v3233, %v793
        %v3276 = vmul.f32 %v3234, %v793
        %v3277 = vmul.f32 %v3235, %v793
        %v3278 = vmul.f32 %v3233, %v794
        %v3279 = vmul.f32 %v3234, %v794
        %v3280 = vmul.f32 %v3235, %v794
        %v3281 = vmul.f32 %v3233, %v795
        %v3282 = vmul.f32 %v3234, %v795
        %v3283 = vmul.f32 %v3235, %v795
        %v3284 = vmul.f32 %v3233, %v796
        %v3285 = vmul.f32 %v3234, %v796
        %v3286 = vmul.f32 %v3235, %v796
        %v3287 = vadd.f32 %v3184, %v3239
        %v3288 = vadd.f32 %v3185, %v3240
        %v3289 = vadd.f32 %v3186, %v3241
        %v3290 = vadd.f32 %v3187, %v3242
        %v3291 = vadd.f32 %v3188, %v3243
        %v3292 = vadd.f32 %v3189, %v3244
        %v3293 = vadd.f32 %v3190, %v3245
        %v3294 = vadd.f32 %v3191, %v3246
        %v3295 = vadd.f32 %v3192, %v3247
        %v3296 = vadd.f32 %v3193, %v3248
        %v3297 = vadd.f32 %v3194, %v3249
        %v3298 = vadd.f32 %v3195, %v3250
        %v3299 = vadd.f32 %v3196, %v3251
        %v3300 = vadd.f32 %v3197, %v3252
        %v3301 = vadd.f32 %v3198, %v3253
        %v3302 = vadd.f32 %v3199, %v3254
        %v3303 = vadd.f32 %v3200, %v3255
        %v3304 = vadd.f32 %v3201, %v3256
        %v3305 = vadd.f32 %v3202, %v3257
        %v3306 = vadd.f32 %v3203, %v3258
        %v3307 = vadd.f32 %v3204, %v3259
        %v3308 = vadd.f32 %v3205, %v3260
        %v3309 = vadd.f32 %v3206, %v3261
        %v3310 = vadd.f32 %v3207, %v3262
        %v3311 = vadd.f32 %v3208, %v3263
        %v3312 = vadd.f32 %v3209, %v3264
        %v3313 = vadd.f32 %v3210, %v3265
        %v3314 = vadd.f32 %v3211, %v3266
        %v3315 = vadd.f32 %v3212, %v3267
        %v3316 = vadd.f32 %v3213, %v3268
        %v3317 = vadd.f32 %v3214, %v3269
        %v3318 = vadd.f32 %v3215, %v3270
        %v3319 = vadd.f32 %v3216, %v3271
        %v3320 = vadd.f32 %v3217, %v3272
        %v3321 = vadd.f32 %v3218, %v3273
        %v3322 = vadd.f32 %v3219, %v3274
        %v3323 = vadd.f32 %v3220, %v3275
        %v3324 = vadd.f32 %v3221, %v3276
        %v3325 = vadd.f32 %v3222, %v3277
        %v3326 = vadd.f32 %v3223, %v3278
        %v3327 = vadd.f32 %v3224, %v3279
        %v3328 = vadd.f32 %v3225, %v3280
        %v3329 = vadd.f32 %v3226, %v3281
        %v3330 = vadd.f32 %v3227, %v3282
        %v3331 = vadd.f32 %v3228, %v3283
        %v3332 = vadd.f32 %v3229, %v3284
        %v3333 = vadd.f32 %v3230, %v3285
        %v3334 = vadd.f32 %v3231, %v3286
        %v3336 = vperm.slane %v269, 0
        %v3337 = vperm.slane %v269, 1
        %v3338 = vperm.slane %v269, 2
        %v3342 = vmul.f32 %v3336, %v749
        %v3343 = vmul.f32 %v3337, %v749
        %v3344 = vmul.f32 %v3338, %v749
        %v3345 = vmul.f32 %v3336, %v750
        %v3346 = vmul.f32 %v3337, %v750
        %v3347 = vmul.f32 %v3338, %v750
        %v3348 = vmul.f32 %v3336, %v751
        %v3349 = vmul.f32 %v3337, %v751
        %v3350 = vmul.f32 %v3338, %v751
        %v3351 = vmul.f32 %v3336, %v752
        %v3352 = vmul.f32 %v3337, %v752
        %v3353 = vmul.f32 %v3338, %v752
        %v3354 = vmul.f32 %v3336, %v753
        %v3355 = vmul.f32 %v3337, %v753
        %v3356 = vmul.f32 %v3338, %v753
        %v3357 = vmul.f32 %v3336, %v754
        %v3358 = vmul.f32 %v3337, %v754
        %v3359 = vmul.f32 %v3338, %v754
        %v3360 = vmul.f32 %v3336, %v755
        %v3361 = vmul.f32 %v3337, %v755
        %v3362 = vmul.f32 %v3338, %v755
        %v3363 = vmul.f32 %v3336, %v756
        %v3364 = vmul.f32 %v3337, %v756
        %v3365 = vmul.f32 %v3338, %v756
        %v3366 = vmul.f32 %v3336, %v757
        %v3367 = vmul.f32 %v3337, %v757
        %v3368 = vmul.f32 %v3338, %v757
        %v3369 = vmul.f32 %v3336, %v758
        %v3370 = vmul.f32 %v3337, %v758
        %v3371 = vmul.f32 %v3338, %v758
        %v3372 = vmul.f32 %v3336, %v759
        %v3373 = vmul.f32 %v3337, %v759
        %v3374 = vmul.f32 %v3338, %v759
        %v3375 = vmul.f32 %v3336, %v760
        %v3376 = vmul.f32 %v3337, %v760
        %v3377 = vmul.f32 %v3338, %v760
        %v3378 = vmul.f32 %v3336, %v761
        %v3379 = vmul.f32 %v3337, %v761
        %v3380 = vmul.f32 %v3338, %v761
        %v3381 = vmul.f32 %v3336, %v762
        %v3382 = vmul.f32 %v3337, %v762
        %v3383 = vmul.f32 %v3338, %v762
        %v3384 = vmul.f32 %v3336, %v763
        %v3385 = vmul.f32 %v3337, %v763
        %v3386 = vmul.f32 %v3338, %v763
        %v3387 = vmul.f32 %v3336, %v764
        %v3388 = vmul.f32 %v3337, %v764
        %v3389 = vmul.f32 %v3338, %v764
        %v3390 = vadd.f32 %v3287, %v3342
        %v3391 = vadd.f32 %v3288, %v3343
        %v3392 = vadd.f32 %v3289, %v3344
        %v3393 = vadd.f32 %v3290, %v3345
        %v3394 = vadd.f32 %v3291, %v3346
        %v3395 = vadd.f32 %v3292, %v3347
        %v3396 = vadd.f32 %v3293, %v3348
        %v3397 = vadd.f32 %v3294, %v3349
        %v3398 = vadd.f32 %v3295, %v3350
        %v3399 = vadd.f32 %v3296, %v3351
        %v3400 = vadd.f32 %v3297, %v3352
        %v3401 = vadd.f32 %v3298, %v3353
        %v3402 = vadd.f32 %v3299, %v3354
        %v3403 = vadd.f32 %v3300, %v3355
        %v3404 = vadd.f32 %v3301, %v3356
        %v3405 = vadd.f32 %v3302, %v3357
        %v3406 = vadd.f32 %v3303, %v3358
        %v3407 = vadd.f32 %v3304, %v3359
        %v3408 = vadd.f32 %v3305, %v3360
        %v3409 = vadd.f32 %v3306, %v3361
        %v3410 = vadd.f32 %v3307, %v3362
        %v3411 = vadd.f32 %v3308, %v3363
        %v3412 = vadd.f32 %v3309, %v3364
        %v3413 = vadd.f32 %v3310, %v3365
        %v3414 = vadd.f32 %v3311, %v3366
        %v3415 = vadd.f32 %v3312, %v3367
        %v3416 = vadd.f32 %v3313, %v3368
        %v3417 = vadd.f32 %v3314, %v3369
        %v3418 = vadd.f32 %v3315, %v3370
        %v3419 = vadd.f32 %v3316, %v3371
        %v3420 = vadd.f32 %v3317, %v3372
        %v3421 = vadd.f32 %v3318, %v3373
        %v3422 = vadd.f32 %v3319, %v3374
        %v3423 = vadd.f32 %v3320, %v3375
        %v3424 = vadd.f32 %v3321, %v3376
        %v3425 = vadd.f32 %v3322, %v3377
        %v3426 = vadd.f32 %v3323, %v3378
        %v3427 = vadd.f32 %v3324, %v3379
        %v3428 = vadd.f32 %v3325, %v3380
        %v3429 = vadd.f32 %v3326, %v3381
        %v3430 = vadd.f32 %v3327, %v3382
        %v3431 = vadd.f32 %v3328, %v3383
        %v3432 = vadd.f32 %v3329, %v3384
        %v3433 = vadd.f32 %v3330, %v3385
        %v3434 = vadd.f32 %v3331, %v3386
        %v3435 = vadd.f32 %v3332, %v3387
        %v3436 = vadd.f32 %v3333, %v3388
        %v3437 = vadd.f32 %v3334, %v3389
        %v3439 = vperm.slane %v271, 0
        %v3440 = vperm.slane %v271, 1
        %v3441 = vperm.slane %v271, 2
        %v3445 = vmul.f32 %v3439, %v380
        %v3446 = vmul.f32 %v3440, %v445
        %v3447 = vmul.f32 %v3441, %v510
        %v3448 = vmul.f32 %v3439, %v383
        %v3449 = vmul.f32 %v3440, %v448
        %v3450 = vmul.f32 %v3441, %v513
        %v3451 = vmul.f32 %v3439, %v386
        %v3452 = vmul.f32 %v3440, %v451
        %v3453 = vmul.f32 %v3441, %v516
        %v3454 = vmul.f32 %v3439, %v389
        %v3455 = vmul.f32 %v3440, %v454
        %v3456 = vmul.f32 %v3441, %v519
        %v3457 = vmul.f32 %v3439, %v392
        %v3458 = vmul.f32 %v3440, %v457
        %v3459 = vmul.f32 %v3441, %v522
        %v3460 = vmul.f32 %v3439, %v395
        %v3461 = vmul.f32 %v3440, %v460
        %v3462 = vmul.f32 %v3441, %v525
        %v3463 = vmul.f32 %v3439, %v398
        %v3464 = vmul.f32 %v3440, %v463
        %v3465 = vmul.f32 %v3441, %v528
        %v3466 = vmul.f32 %v3439, %v401
        %v3467 = vmul.f32 %v3440, %v466
        %v3468 = vmul.f32 %v3441, %v531
        %v3469 = vmul.f32 %v3439, %v404
        %v3470 = vmul.f32 %v3440, %v469
        %v3471 = vmul.f32 %v3441, %v534
        %v3472 = vmul.f32 %v3439, %v407
        %v3473 = vmul.f32 %v3440, %v472
        %v3474 = vmul.f32 %v3441, %v537
        %v3475 = vmul.f32 %v3439, %v410
        %v3476 = vmul.f32 %v3440, %v475
        %v3477 = vmul.f32 %v3441, %v540
        %v3478 = vmul.f32 %v3439, %v413
        %v3479 = vmul.f32 %v3440, %v478
        %v3480 = vmul.f32 %v3441, %v543
        %v3481 = vmul.f32 %v3439, %v416
        %v3482 = vmul.f32 %v3440, %v481
        %v3483 = vmul.f32 %v3441, %v546
        %v3484 = vmul.f32 %v3439, %v419
        %v3485 = vmul.f32 %v3440, %v484
        %v3486 = vmul.f32 %v3441, %v549
        %v3487 = vmul.f32 %v3439, %v422
        %v3488 = vmul.f32 %v3440, %v487
        %v3489 = vmul.f32 %v3441, %v552
        %v3490 = vmul.f32 %v3439, %v425
        %v3491 = vmul.f32 %v3440, %v490
        %v3492 = vmul.f32 %v3441, %v555
        %v3493 = vadd.f32 %v3390, %v3445
        %v3494 = vadd.f32 %v3391, %v3446
        %v3495 = vadd.f32 %v3392, %v3447
        %v3496 = vadd.f32 %v3393, %v3448
        %v3497 = vadd.f32 %v3394, %v3449
        %v3498 = vadd.f32 %v3395, %v3450
        %v3499 = vadd.f32 %v3396, %v3451
        %v3500 = vadd.f32 %v3397, %v3452
        %v3501 = vadd.f32 %v3398, %v3453
        %v3502 = vadd.f32 %v3399, %v3454
        %v3503 = vadd.f32 %v3400, %v3455
        %v3504 = vadd.f32 %v3401, %v3456
        %v3505 = vadd.f32 %v3402, %v3457
        %v3506 = vadd.f32 %v3403, %v3458
        %v3507 = vadd.f32 %v3404, %v3459
        %v3508 = vadd.f32 %v3405, %v3460
        %v3509 = vadd.f32 %v3406, %v3461
        %v3510 = vadd.f32 %v3407, %v3462
        %v3511 = vadd.f32 %v3408, %v3463
        %v3512 = vadd.f32 %v3409, %v3464
        %v3513 = vadd.f32 %v3410, %v3465
        %v3514 = vadd.f32 %v3411, %v3466
        %v3515 = vadd.f32 %v3412, %v3467
        %v3516 = vadd.f32 %v3413, %v3468
        %v3517 = vadd.f32 %v3414, %v3469
        %v3518 = vadd.f32 %v3415, %v3470
        %v3519 = vadd.f32 %v3416, %v3471
        %v3520 = vadd.f32 %v3417, %v3472
        %v3521 = vadd.f32 %v3418, %v3473
        %v3522 = vadd.f32 %v3419, %v3474
        %v3523 = vadd.f32 %v3420, %v3475
        %v3524 = vadd.f32 %v3421, %v3476
        %v3525 = vadd.f32 %v3422, %v3477
        %v3526 = vadd.f32 %v3423, %v3478
        %v3527 = vadd.f32 %v3424, %v3479
        %v3528 = vadd.f32 %v3425, %v3480
        %v3529 = vadd.f32 %v3426, %v3481
        %v3530 = vadd.f32 %v3427, %v3482
        %v3531 = vadd.f32 %v3428, %v3483
        %v3532 = vadd.f32 %v3429, %v3484
        %v3533 = vadd.f32 %v3430, %v3485
        %v3534 = vadd.f32 %v3431, %v3486
        %v3535 = vadd.f32 %v3432, %v3487
        %v3536 = vadd.f32 %v3433, %v3488
        %v3537 = vadd.f32 %v3434, %v3489
        %v3538 = vadd.f32 %v3435, %v3490
        %v3539 = vadd.f32 %v3436, %v3491
        %v3540 = vadd.f32 %v3437, %v3492
        %v3541 = vadd.f32 %v3493, %v955
        %v3542 = vadd.f32 %v3494, %v956
        %v3543 = vadd.f32 %v3495, %v957
        %v3544 = vadd.f32 %v3496, %v958
        %v3545 = vadd.f32 %v3497, %v959
        %v3546 = vadd.f32 %v3498, %v960
        %v3547 = vadd.f32 %v3499, %v961
        %v3548 = vadd.f32 %v3500, %v962
        %v3549 = vadd.f32 %v3501, %v963
        %v3550 = vadd.f32 %v3502, %v964
        %v3551 = vadd.f32 %v3503, %v965
        %v3552 = vadd.f32 %v3504, %v966
        %v3553 = vadd.f32 %v3505, %v967
        %v3554 = vadd.f32 %v3506, %v968
        %v3555 = vadd.f32 %v3507, %v969
        %v3556 = vadd.f32 %v3508, %v970
        %v3557 = vadd.f32 %v3509, %v971
        %v3558 = vadd.f32 %v3510, %v972
        %v3559 = vadd.f32 %v3511, %v973
        %v3560 = vadd.f32 %v3512, %v974
        %v3561 = vadd.f32 %v3513, %v975
        %v3562 = vadd.f32 %v3514, %v976
        %v3563 = vadd.f32 %v3515, %v977
        %v3564 = vadd.f32 %v3516, %v978
        %v3565 = vadd.f32 %v3517, %v979
        %v3566 = vadd.f32 %v3518, %v980
        %v3567 = vadd.f32 %v3519, %v981
        %v3568 = vadd.f32 %v3520, %v982
        %v3569 = vadd.f32 %v3521, %v983
        %v3570 = vadd.f32 %v3522, %v984
        %v3571 = vadd.f32 %v3523, %v985
        %v3572 = vadd.f32 %v3524, %v986
        %v3573 = vadd.f32 %v3525, %v987
        %v3574 = vadd.f32 %v3526, %v988
        %v3575 = vadd.f32 %v3527, %v989
        %v3576 = vadd.f32 %v3528, %v990
        %v3577 = vadd.f32 %v3529, %v991
        %v3578 = vadd.f32 %v3530, %v992
        %v3579 = vadd.f32 %v3531, %v993
        %v3580 = vadd.f32 %v3532, %v994
        %v3581 = vadd.f32 %v3533, %v995
        %v3582 = vadd.f32 %v3534, %v996
        %v3583 = vadd.f32 %v3535, %v997
        %v3584 = vadd.f32 %v3536, %v998
        %v3585 = vadd.f32 %v3537, %v999
        %v3586 = vadd.f32 %v3538, %v1000
        %v3587 = vadd.f32 %v3539, %v1001
        %v3588 = vadd.f32 %v3540, %v1002
        %v3589 = vmul.f32 %v380, %v2217
        %v3590 = vmul.f32 %v445, %v2218
        %v3591 = vmul.f32 %v510, %v2219
        %v3592 = vmul.f32 %v383, %v2220
        %v3593 = vmul.f32 %v448, %v2221
        %v3594 = vmul.f32 %v513, %v2222
        %v3595 = vmul.f32 %v386, %v2223
        %v3596 = vmul.f32 %v451, %v2224
        %v3597 = vmul.f32 %v516, %v2225
        %v3598 = vmul.f32 %v389, %v2226
        %v3599 = vmul.f32 %v454, %v2227
        %v3600 = vmul.f32 %v519, %v2228
        %v3601 = vmul.f32 %v392, %v2229
        %v3602 = vmul.f32 %v457, %v2230
        %v3603 = vmul.f32 %v522, %v2231
        %v3604 = vmul.f32 %v395, %v2232
        %v3605 = vmul.f32 %v460, %v2233
        %v3606 = vmul.f32 %v525, %v2234
        %v3607 = vmul.f32 %v398, %v2235
        %v3608 = vmul.f32 %v463, %v2236
        %v3609 = vmul.f32 %v528, %v2237
        %v3610 = vmul.f32 %v401, %v2238
        %v3611 = vmul.f32 %v466, %v2239
        %v3612 = vmul.f32 %v531, %v2240
        %v3613 = vmul.f32 %v404, %v2241
        %v3614 = vmul.f32 %v469, %v2242
        %v3615 = vmul.f32 %v534, %v2243
        %v3616 = vmul.f32 %v407, %v2244
        %v3617 = vmul.f32 %v472, %v2245
        %v3618 = vmul.f32 %v537, %v2246
        %v3619 = vmul.f32 %v410, %v2247
        %v3620 = vmul.f32 %v475, %v2248
        %v3621 = vmul.f32 %v540, %v2249
        %v3622 = vmul.f32 %v413, %v2250
        %v3623 = vmul.f32 %v478, %v2251
        %v3624 = vmul.f32 %v543, %v2252
        %v3625 = vmul.f32 %v416, %v2253
        %v3626 = vmul.f32 %v481, %v2254
        %v3627 = vmul.f32 %v546, %v2255
        %v3628 = vmul.f32 %v419, %v2256
        %v3629 = vmul.f32 %v484, %v2257
        %v3630 = vmul.f32 %v549, %v2258
        %v3631 = vmul.f32 %v422, %v2259
        %v3632 = vmul.f32 %v487, %v2260
        %v3633 = vmul.f32 %v552, %v2261
        %v3634 = vmul.f32 %v425, %v2262
        %v3635 = vmul.f32 %v490, %v2263
        %v3636 = vmul.f32 %v555, %v2264
        %v3637 = vsel %vm280, 1, 0
        %v3638 = vperm.slane %v3637, 0
        %v3639 = vperm.slane %v3637, 1
        %v3640 = vperm.slane %v3637, 2
        %vm3641 = vcmp.eq.s32.totalorder %v3638, 1
        %vm3642 = vcmp.eq.s32.totalorder %v3639, 1
        %vm3643 = vcmp.eq.s32.totalorder %v3640, 1
        %v3644 = vsel %vm3641, %v3541, %v380
        %v3645 = vsel %vm3642, %v3542, %v445
        %v3646 = vsel %vm3643, %v3543, %v510
        %v3647 = vsel %vm3641, %v3544, %v383
        %v3648 = vsel %vm3642, %v3545, %v448
        %v3649 = vsel %vm3643, %v3546, %v513
        %v3650 = vsel %vm3641, %v3547, %v386
        %v3651 = vsel %vm3642, %v3548, %v451
        %v3652 = vsel %vm3643, %v3549, %v516
        %v3653 = vsel %vm3641, %v3550, %v389
        %v3654 = vsel %vm3642, %v3551, %v454
        %v3655 = vsel %vm3643, %v3552, %v519
        %v3656 = vsel %vm3641, %v3553, %v392
        %v3657 = vsel %vm3642, %v3554, %v457
        %v3658 = vsel %vm3643, %v3555, %v522
        %v3659 = vsel %vm3641, %v3556, %v395
        %v3660 = vsel %vm3642, %v3557, %v460
        %v3661 = vsel %vm3643, %v3558, %v525
        %v3662 = vsel %vm3641, %v3559, %v398
        %v3663 = vsel %vm3642, %v3560, %v463
        %v3664 = vsel %vm3643, %v3561, %v528
        %v3665 = vsel %vm3641, %v3562, %v401
        %v3666 = vsel %vm3642, %v3563, %v466
        %v3667 = vsel %vm3643, %v3564, %v531
        %v3668 = vsel %vm3641, %v3565, %v404
        %v3669 = vsel %vm3642, %v3566, %v469
        %v3670 = vsel %vm3643, %v3567, %v534
        %v3671 = vsel %vm3641, %v3568, %v407
        %v3672 = vsel %vm3642, %v3569, %v472
        %v3673 = vsel %vm3643, %v3570, %v537
        %v3674 = vsel %vm3641, %v3571, %v410
        %v3675 = vsel %vm3642, %v3572, %v475
        %v3676 = vsel %vm3643, %v3573, %v540
        %v3677 = vsel %vm3641, %v3574, %v413
        %v3678 = vsel %vm3642, %v3575, %v478
        %v3679 = vsel %vm3643, %v3576, %v543
        %v3680 = vsel %vm3641, %v3577, %v416
        %v3681 = vsel %vm3642, %v3578, %v481
        %v3682 = vsel %vm3643, %v3579, %v546
        %v3683 = vsel %vm3641, %v3580, %v419
        %v3684 = vsel %vm3642, %v3581, %v484
        %v3685 = vsel %vm3643, %v3582, %v549
        %v3686 = vsel %vm3641, %v3583, %v422
        %v3687 = vsel %vm3642, %v3584, %v487
        %v3688 = vsel %vm3643, %v3585, %v552
        %v3689 = vsel %vm3641, %v3586, %v425
        %v3690 = vsel %vm3642, %v3587, %v490
        %v3691 = vsel %vm3643, %v3588, %v555
        %v3692 = vsel %vm277, 1, 0
        %v3693 = vperm.slane %v3692, 0
        %v3694 = vperm.slane %v3692, 1
        %v3695 = vperm.slane %v3692, 2
        %vm3696 = vcmp.eq.s32.totalorder %v3693, 1
        %vm3697 = vcmp.eq.s32.totalorder %v3694, 1
        %vm3698 = vcmp.eq.s32.totalorder %v3695, 1
        %v3699 = vsel %vm3696, %v2471, %v3644
        %v3700 = vsel %vm3697, %v2486, %v3645
        %v3701 = vsel %vm3698, %v2501, %v3646
        %v3702 = vsel %vm3696, %v2516, %v3647
        %v3703 = vsel %vm3697, %v2531, %v3648
        %v3704 = vsel %vm3698, %v2546, %v3649
        %v3705 = vsel %vm3696, %v2561, %v3650
        %v3706 = vsel %vm3697, %v2576, %v3651
        %v3707 = vsel %vm3698, %v2591, %v3652
        %v3708 = vsel %vm3696, %v2606, %v3653
        %v3709 = vsel %vm3697, %v2621, %v3654
        %v3710 = vsel %vm3698, %v2636, %v3655
        %v3711 = vsel %vm3696, %v2651, %v3656
        %v3712 = vsel %vm3697, %v2666, %v3657
        %v3713 = vsel %vm3698, %v2681, %v3658
        %v3714 = vsel %vm3696, %v2696, %v3659
        %v3715 = vsel %vm3697, %v2711, %v3660
        %v3716 = vsel %vm3698, %v2726, %v3661
        %v3717 = vsel %vm3696, %v2741, %v3662
        %v3718 = vsel %vm3697, %v2756, %v3663
        %v3719 = vsel %vm3698, %v2771, %v3664
        %v3720 = vsel %vm3696, %v2786, %v3665
        %v3721 = vsel %vm3697, %v2801, %v3666
        %v3722 = vsel %vm3698, %v2816, %v3667
        %v3723 = vsel %vm3696, %v2831, %v3668
        %v3724 = vsel %vm3697, %v2846, %v3669
        %v3725 = vsel %vm3698, %v2861, %v3670
        %v3726 = vsel %vm3696, %v2876, %v3671
        %v3727 = vsel %vm3697, %v2891, %v3672
        %v3728 = vsel %vm3698, %v2906, %v3673
        %v3729 = vsel %vm3696, %v2921, %v3674
        %v3730 = vsel %vm3697, %v2936, %v3675
        %v3731 = vsel %vm3698, %v2951, %v3676
        %v3732 = vsel %vm3696, %v2966, %v3677
        %v3733 = vsel %vm3697, %v2981, %v3678
        %v3734 = vsel %vm3698, %v2996, %v3679
        %v3735 = vsel %vm3696, %v3011, %v3680
        %v3736 = vsel %vm3697, %v3026, %v3681
        %v3737 = vsel %vm3698, %v3041, %v3682
        %v3738 = vsel %vm3696, %v3056, %v3683
        %v3739 = vsel %vm3697, %v3071, %v3684
        %v3740 = vsel %vm3698, %v3086, %v3685
        %v3741 = vsel %vm3696, %v3101, %v3686
        %v3742 = vsel %vm3697, %v3116, %v3687
        %v3743 = vsel %vm3698, %v3131, %v3688
        %v3744 = vsel %vm3696, %v3146, %v3689
        %v3745 = vsel %vm3697, %v3161, %v3690
        %v3746 = vsel %vm3698, %v3176, %v3691
        %v3747 = vsel %vm274, 1, 0
        %v3748 = vperm.slane %v3747, 0
        %v3749 = vperm.slane %v3747, 1
        %v3750 = vperm.slane %v3747, 2
        %vm3751 = vcmp.eq.s32.totalorder %v3748, 1
        %vm3752 = vcmp.eq.s32.totalorder %v3749, 1
        %vm3753 = vcmp.eq.s32.totalorder %v3750, 1
        %v3754 = vsel %vm3751, %v3589, %v3699
        %v3755 = vsel %vm3752, %v3590, %v3700
        %v3756 = vsel %vm3753, %v3591, %v3701
        %v3757 = vsel %vm3751, %v3592, %v3702
        %v3758 = vsel %vm3752, %v3593, %v3703
        %v3759 = vsel %vm3753, %v3594, %v3704
        %v3760 = vsel %vm3751, %v3595, %v3705
        %v3761 = vsel %vm3752, %v3596, %v3706
        %v3762 = vsel %vm3753, %v3597, %v3707
        %v3763 = vsel %vm3751, %v3598, %v3708
        %v3764 = vsel %vm3752, %v3599, %v3709
        %v3765 = vsel %vm3753, %v3600, %v3710
        %v3766 = vsel %vm3751, %v3601, %v3711
        %v3767 = vsel %vm3752, %v3602, %v3712
        %v3768 = vsel %vm3753, %v3603, %v3713
        %v3769 = vsel %vm3751, %v3604, %v3714
        %v3770 = vsel %vm3752, %v3605, %v3715
        %v3771 = vsel %vm3753, %v3606, %v3716
        %v3772 = vsel %vm3751, %v3607, %v3717
        %v3773 = vsel %vm3752, %v3608, %v3718
        %v3774 = vsel %vm3753, %v3609, %v3719
        %v3775 = vsel %vm3751, %v3610, %v3720
        %v3776 = vsel %vm3752, %v3611, %v3721
        %v3777 = vsel %vm3753, %v3612, %v3722
        %v3778 = vsel %vm3751, %v3613, %v3723
        %v3779 = vsel %vm3752, %v3614, %v3724
        %v3780 = vsel %vm3753, %v3615, %v3725
        %v3781 = vsel %vm3751, %v3616, %v3726
        %v3782 = vsel %vm3752, %v3617, %v3727
        %v3783 = vsel %vm3753, %v3618, %v3728
        %v3784 = vsel %vm3751, %v3619, %v3729
        %v3785 = vsel %vm3752, %v3620, %v3730
        %v3786 = vsel %vm3753, %v3621, %v3731
        %v3787 = vsel %vm3751, %v3622, %v3732
        %v3788 = vsel %vm3752, %v3623, %v3733
        %v3789 = vsel %vm3753, %v3624, %v3734
        %v3790 = vsel %vm3751, %v3625, %v3735
        %v3791 = vsel %vm3752, %v3626, %v3736
        %v3792 = vsel %vm3753, %v3627, %v3737
        %v3793 = vsel %vm3751, %v3628, %v3738
        %v3794 = vsel %vm3752, %v3629, %v3739
        %v3795 = vsel %vm3753, %v3630, %v3740
        %v3796 = vsel %vm3751, %v3631, %v3741
        %v3797 = vsel %vm3752, %v3632, %v3742
        %v3798 = vsel %vm3753, %v3633, %v3743
        %v3799 = vsel %vm3751, %v3634, %v3744
        %v3800 = vsel %vm3752, %v3635, %v3745
        %v3801 = vsel %vm3753, %v3636, %v3746
        %3802 = vst [vmem:[%s223] sm:$0xff] %v3754
        %3803 = vst [vmem:[%s223 + $0x8] sm:$0xff] %v3755
        %3804 = vst [vmem:[%s223 + $0x10] sm:$0xff] %v3756
        %3805 = vst [vmem:[%s223 + $0x18] sm:$0xff] %v3757
        %3806 = vst [vmem:[%s223 + $0x20] sm:$0xff] %v3758
        %3807 = vst [vmem:[%s223 + $0x28] sm:$0xff] %v3759
        %3808 = vst [vmem:[%s223 + $0x30] sm:$0xff] %v3760
        %3809 = vst [vmem:[%s223 + $0x38] sm:$0xff] %v3761
        %3810 = vst [vmem:[%s223 + $0x40] sm:$0xff] %v3762
        %3811 = vst [vmem:[%s223 + $0x48] sm:$0xff] %v3763
        %3812 = vst [vmem:[%s223 + $0x50] sm:$0xff] %v3764
        %3813 = vst [vmem:[%s223 + $0x58] sm:$0xff] %v3765
        %3814 = vst [vmem:[%s223 + $0x60] sm:$0xff] %v3766
        %3815 = vst [vmem:[%s223 + $0x68] sm:$0xff] %v3767
        %3816 = vst [vmem:[%s223 + $0x70] sm:$0xff] %v3768
        %3817 = vst [vmem:[%s223 + $0x78] sm:$0xff] %v3769
        %3818 = vst [vmem:[%s223 + $0x80] sm:$0xff] %v3770
        %3819 = vst [vmem:[%s223 + $0x88] sm:$0xff] %v3771
        %3820 = vst [vmem:[%s223 + $0x90] sm:$0xff] %v3772
        %3821 = vst [vmem:[%s223 + $0x98] sm:$0xff] %v3773
        %3822 = vst [vmem:[%s223 + $0xa0] sm:$0xff] %v3774
        %3823 = vst [vmem:[%s223 + $0xa8] sm:$0xff] %v3775
        %3824 = vst [vmem:[%s223 + $0xb0] sm:$0xff] %v3776
        %3825 = vst [vmem:[%s223 + $0xb8] sm:$0xff] %v3777
        %3826 = vst [vmem:[%s223 + $0xc0] sm:$0xff] %v3778
        %3827 = vst [vmem:[%s223 + $0xc8] sm:$0xff] %v3779
        %3828 = vst [vmem:[%s223 + $0xd0] sm:$0xff] %v3780
        %3829 = vst [vmem:[%s223 + $0xd8] sm:$0xff] %v3781
        %3830 = vst [vmem:[%s223 + $0xe0] sm:$0xff] %v3782
        %3831 = vst [vmem:[%s223 + $0xe8] sm:$0xff] %v3783
        %3832 = vst [vmem:[%s223 + $0xf0] sm:$0xff] %v3784
        %3833 = vst [vmem:[%s223 + $0xf8] sm:$0xff] %v3785
        %3834 = vst [vmem:[%s223 + $0x100] sm:$0xff] %v3786
        %3835 = vst [vmem:[%s223 + $0x108] sm:$0xff] %v3787
        %3836 = vst [vmem:[%s223 + $0x110] sm:$0xff] %v3788
        %3837 = vst [vmem:[%s223 + $0x118] sm:$0xff] %v3789
        %3838 = vst [vmem:[%s223 + $0x120] sm:$0xff] %v3790
        %3839 = vst [vmem:[%s223 + $0x128] sm:$0xff] %v3791
        %3840 = vst [vmem:[%s223 + $0x130] sm:$0xff] %v3792
        %3841 = vst [vmem:[%s223 + $0x138] sm:$0xff] %v3793
        %3842 = vst [vmem:[%s223 + $0x140] sm:$0xff] %v3794
        %3843 = vst [vmem:[%s223 + $0x148] sm:$0xff] %v3795
        %3844 = vst [vmem:[%s223 + $0x150] sm:$0xff] %v3796
        %3845 = vst [vmem:[%s223 + $0x158] sm:$0xff] %v3797
        %3846 = vst [vmem:[%s223 + $0x160] sm:$0xff] %v3798
        %3847 = vst [vmem:[%s223 + $0x168] sm:$0xff] %v3799
        %3848 = vst [vmem:[%s223 + $0x170] sm:$0xff] %v3800
        %3849 = vst [vmem:[%s223 + $0x178] sm:$0xff] %v3801
        %s3850 = sand.u32 %s120, 1
        %s3851 = scalar_lea.sflag [#allocation5], %s3850
        %s3852 = sand.u32 %s120, 1
        %s3853 = smul.addr %s3852, 384
        %s3854 = scalar_lea.vmem [#allocation4], %s3853
        // Predicated region
        $region33: #{device_fn.1} parent=31 // pred_check
          %p3855 = pneg %p130
        $region34: #{device_fn.1} parent=31 // pred_check_branch
          %3857 = sbr.rel (%p3855) target = $region36
        $region35: #{device_fn.1} parent=31 // pred_region
          %s3858 = smul.u32 16, %s26
          %3860 = vsyncadd %s3851, 0
          %s3861 = smul.addr %s3858, 3
          %s3862 = smul.addr %s3861, 8
          %s3863 = scalar_lea.hbm %s4, %s3862
          %s3864 = sshll.u32 %s3854, 4
          %s3865 = int_to_ptr.vmem [resolvable:$true] %s3864
          %s3866 = sshll.u32 %s3863, 4
          %s3867 = int_to_ptr.hbm [resolvable:$true] %s3866
          %3872 = dma.vmem_to_hbm [thread:$0]  %s3865, 6144, %s3867, %s3851, 384, 384, 24
        $region36: #{device_fn.1} parent=31 // pred_fallthru
          _
      $region32: #{device_fn.1} parent=5 // pred_fallthru
        _
      %p3873 = scmp.le.s32.totalorder 2, %s21
      // Predicated region
      $region37: #{device_fn.1} parent=5 // pred_check
        %p3874 = pneg %p3873
      $region38: #{device_fn.1} parent=5 // pred_check_branch
        %3876 = sbr.rel (%p3874) target = $region40
      $region39: #{device_fn.1} parent=5 // pred_region
        %s3877 = ssub.s32 %s21, 2
        // Predicated region
        $region41: #{device_fn.1} parent=39 // pred_check
          %p3878 = pneg %p136
        $region42: #{device_fn.1} parent=39 // pred_check_branch
          %3880 = sbr.rel (%p3878) target = $region44
        $region43: #{device_fn.1} parent=39 // pred_region
          %s3881 = sand.u32 %s121, 1
          %s3882 = scalar_lea.sflag [#allocation5], %s3881
          %s3883 = sand.u32 %s121, 1
          %s3884 = smul.addr %s3883, 384
          %s3885 = scalar_lea.vmem [#allocation4], %s3884
          %3887 = dma.done %s3882, 6144
        $region44: #{device_fn.1} parent=39 // pred_fallthru
          _
      $region40: #{device_fn.1} parent=5 // pred_fallthru
        _
    $region6: #{device_fn.1} parent=1 // loop_footer
      %s25 = sadd.s32 1, %s21
    $region7: #{device_fn.1} parent=1 // loop_footer_branch
      %20 = sbr.rel target = $region3
    $region8: #{device_fn.1} parent=1 // loop_exit
      _
    %3888 = vsyncpa [#allocation5], 1
    %s3889 = scalar_lea.sflag [#allocation5], 1
    %3890 = vsyncpa %s3889, 1

</llo_original>
